<compile_context>
chip_gen: v5e
topology: v5e:2x2
jax: 0.10.0
libtpu: 0.0.40
codegen_flags: <defaults>
</compile_context>

<pallas_src>
import jax
import jax.numpy as jnp
from jax.experimental import pallas as pl
from jax.experimental.pallas import tpu as pltpu


def _round_up(x, m):
    return ((x + m - 1) // m) * m


# -----------------------------------------------------------------------------
# Kernels
# -----------------------------------------------------------------------------
def _stn_pool_kernel(x_ref, w1_ref, b1_ref, w2_ref, b2_ref, w3_ref, b3_ref, pool_ref):
    """STN3d conv stack (BN folded) + online max pool over the point-tile axis."""
    f32, bf16 = jnp.float32, jnp.bfloat16
    nt = pl.program_id(2)

    x = x_ref[0]                                                          # (TN, 3) bf16
    h = jnp.maximum(jnp.dot(x, w1_ref[...], preferred_element_type=f32) + b1_ref[...], 0.0)
    h = jnp.maximum(jnp.dot(h.astype(bf16), w2_ref[...], preferred_element_type=f32) + b2_ref[...], 0.0)
    h = jnp.maximum(jnp.dot(h.astype(bf16), w3_ref[...], preferred_element_type=f32) + b3_ref[...], 0.0)
    tile_max = jnp.max(h, axis=0, keepdims=True)                          # (1, 1024)

    @pl.when(nt == 0)
    def _():
        pool_ref[0, 0] = tile_max

    @pl.when(nt != 0)
    def _():
        pool_ref[0, 0] = jnp.maximum(pool_ref[0, 0], tile_max)


def _feat_pool_kernel(x_ref, w1e_ref, b1_ref, w2_ref, b2_ref, w3_ref, b3_ref, pool_ref):
    """Feature MLP (transform folded into W1_eff, BN folded) + online max pool."""
    f32, bf16 = jnp.float32, jnp.bfloat16
    nt = pl.program_id(2)

    x = x_ref[0]                                                          # (TN, 3) bf16
    w1e = w1e_ref[0]                                                      # (3, 64) bf16, per-batch
    h = jnp.maximum(jnp.dot(x, w1e, preferred_element_type=f32) + b1_ref[...], 0.0)
    h = jnp.maximum(jnp.dot(h.astype(bf16), w2_ref[...], preferred_element_type=f32) + b2_ref[...], 0.0)
    h3 = jnp.dot(h.astype(bf16), w3_ref[...], preferred_element_type=f32) + b3_ref[...]   # no ReLU
    tile_max = jnp.max(h3, axis=0, keepdims=True)                         # (1, 1024)

    # First-tile init (NOT zero-init): h3 has no ReLU, so all-negative rows are possible.
    @pl.when(nt == 0)
    def _():
        pool_ref[0, 0] = tile_max

    @pl.when(nt != 0)
    def _():
        pool_ref[0, 0] = jnp.maximum(pool_ref[0, 0], tile_max)


# -----------------------------------------------------------------------------
# Wrapper
# -----------------------------------------------------------------------------
def pointnetfeat_forward(x_ncl, params, *, tile_n=2048):
    """x_ncl: (B, 3, N) float32 in PyTorch NCL layout.
    Returns (global_feat (B, 1024), trans (B, 3, 3)).

    Numerics: conv stacks use bf16 operands with f32 accumulation; the learned 3x3
    transform is folded into the first feature-layer weight (also applied in bf16)."""
    B, C, N = x_ncl.shape
    assert C == 3
    assert tile_n % 16 == 0, "point tile must be a bf16 sublane-pack multiple"
    f32, bf16 = jnp.float32, jnp.bfloat16

    (sw1, sb1), (sw2, sb2), (sw3, sb3), (sfc1w, sfc1b), (sfc2w, sfc2b), (sfc3w, sfc3b), \
        (fw1, fb1), (fw2, fb2), (fw3, fb3) = params

    # ---- tiling / core-split choices -----------------------------------------
    # B==1: add a 2-way parallel split over the point range so both TensorCores on a
    # v7x chip are busy (harmless single extra grid step on 1-TC chips).
    split = 2 if B == 1 else 1
    per_split_n = pl.cdiv(N, split)
    # Single tile per (split, batch) whenever it fits; otherwise tile_n-sized tiles.
    tile = min(tile_n, _round_up(per_split_n, 16))
    tiles_per_split = pl.cdiv(per_split_n, tile)
    n_pad = split * tiles_per_split * tile

    # channels-last, bf16 once; pad N by repeating the first point (max-pool exact).
    x_nlc = jnp.transpose(x_ncl, (0, 2, 1)).astype(bf16)                  # (B, N, 3)
    if n_pad != N:
        pad = jnp.broadcast_to(x_nlc[:, :1, :], (B, n_pad - N, 3))
        x_nlc = jnp.concatenate([x_nlc, pad], axis=1)

    def const_spec(a):
        # Whole array, constant across the grid -> single-buffered (no VMEM waste).
        return pl.BlockSpec(a.shape, lambda s, b, n: (0,) * a.ndim,
                            pipeline_mode=pl.Buffered(buffer_count=1))

    x_spec = pl.BlockSpec((1, tile, 3),
                          lambda s, b, n: (b, s * tiles_per_split + n, 0))
    pool_spec = pl.BlockSpec((1, 1, 1, 1024), lambda s, b, n: (s, b, 0, 0))

    cparams = pltpu.CompilerParams(
        dimension_semantics=("parallel", "parallel", "arbitrary"),
        vmem_limit_bytes=32 * 1024 * 1024)        # safe on v7x (64 MiB physical VMEM)

    grid = (split, B, tiles_per_split)

    # ---- pass 1: STN conv stack + online max pool -----------------------------
    stn_w = [sw1.astype(bf16), sb1, sw2.astype(bf16), sb2, sw3.astype(bf16), sb3]
    stn_pool = pl.pallas_call(
        _stn_pool_kernel,
        out_shape=jax.ShapeDtypeStruct((split, B, 1, 1024), f32),
        grid=grid,
        in_specs=[x_spec] + [const_spec(a) for a in stn_w],
        out_specs=pool_spec,
        compiler_params=cparams,
    )(x_nlc, *stn_w)
    g = jnp.max(stn_pool, axis=0)[:, 0, :]                                # (B, 1024)

    # ---- STN FC stack, batched over B in plain XLA (M=1 matmuls starve the MXU) ----
    g = jax.nn.relu(g @ sfc1w + sfc1b)
    g = jax.nn.relu(g @ sfc2w + sfc2b)
    t9 = g @ sfc3w + sfc3b                                                # (B, 9), pre-identity
    trans = t9.reshape(B, 3, 3) + jnp.eye(3, dtype=f32)                   # (B, 3, 3)

    # Fold the transform into the first feature-layer weight:
    #   relu((x @ trans) @ fw1 + fb1) == relu(x @ (trans @ fw1) + fb1)
    w1_eff = jnp.einsum('bij,jk->bik', trans, fw1).astype(bf16)           # (B, 3, 64)

    # ---- pass 2: feature MLP (W1_eff per batch) + online max pool -------------
    feat_w = [fb1, fw2.astype(bf16), fb2, fw3.astype(bf16), fb3]
    w1e_spec = pl.BlockSpec((1, 3, 64), lambda s, b, n: (b, 0, 0))
    gfeat = pl.pallas_call(
        _feat_pool_kernel,
        out_shape=jax.ShapeDtypeStruct((split, B, 1, 1024), f32),
        grid=grid,
        in_specs=[x_spec, w1e_spec] + [const_spec(a) for a in feat_w],
        out_specs=pool_spec,
        compiler_params=cparams,
    )(x_nlc, w1_eff, *feat_w)
    gfeat = jnp.max(gfeat, axis=0)[:, 0, :]                               # (B, 1024)

    return gfeat, trans


# -----------------------------------------------------------------------------
# Deterministic parameter construction (BN folded into conv/linear weights)
# -----------------------------------------------------------------------------
def _dense(key, cin, cout, scale=0.1):
    kw, kb = jax.random.split(key)
    w = scale * jax.random.normal(kw, (cin, cout), jnp.float32)
    b = scale * jax.random.normal(kb, (cout,), jnp.float32)
    return w, b


def _bn(key, c):
    k1, k2, k3, k4 = jax.random.split(key, 4)
    gamma = 1.0 + 0.1 * jax.random.normal(k1, (c,), jnp.float32)
    beta = 0.1 * jax.random.normal(k2, (c,), jnp.float32)
    mean = 0.1 * jax.random.normal(k3, (c,), jnp.float32)
    var = 1.0 + 0.1 * jnp.abs(jax.random.normal(k4, (c,), jnp.float32))
    return gamma, beta, mean, var


def _fold(wb, bn, eps=1e-5):
    w, b = wb
    gamma, beta, mean, var = bn
    scale = gamma / jnp.sqrt(var + eps)
    return w * scale[None, :], ((b - mean) * scale + beta)[None, :]       # bias as (1, C)


def make_params(key):
    ks = jax.random.split(key, 16)
    # STN3d
    s1 = _fold(_dense(ks[0], 3, 64), _bn(ks[1], 64))
    s2 = _fold(_dense(ks[2], 64, 128), _bn(ks[3], 128))
    s3 = _fold(_dense(ks[4], 128, 1024), _bn(ks[5], 1024))
    sf1 = _fold(_dense(ks[6], 1024, 512), _bn(ks[7], 512))
    sf2 = _fold(_dense(ks[8], 512, 256), _bn(ks[9], 256))
    sf3w, sf3b = _dense(ks[10], 256, 9)
    sf3 = (sf3w, sf3b[None, :])
    # PointNetfeat conv stack
    f1 = _fold(_dense(ks[11], 3, 64), _bn(ks[12], 64))
    f2 = _fold(_dense(ks[13], 64, 128), _bn(ks[14], 128))
    f3 = _fold(_dense(ks[15], 128, 1024), _bn(jax.random.fold_in(key, 99), 1024))
    return (s1, s2, s3, sf1, sf2, sf3, f1, f2, f3)


# -----------------------------------------------------------------------------
# Pure-JAX reference (same folded-BN / folded-transform / bf16-matmul policy)
# -----------------------------------------------------------------------------
def reference_forward(x_ncl, params):
    f32, bf16 = jnp.float32, jnp.bfloat16
    (sw1, sb1), (sw2, sb2), (sw3, sb3), (sfc1w, sfc1b), (sfc2w, sfc2b), (sfc3w, sfc3b), \
        (fw1, fb1), (fw2, fb2), (fw3, fb3) = params
    x = jnp.transpose(x_ncl, (0, 2, 1)).astype(f32)                       # (B, N, 3)

    def mm(a, w):  # bf16 operands, f32 accumulation (matches kernel matmul dtype policy)
        return jnp.dot(a.astype(bf16), w.astype(bf16), preferred_element_type=f32)

    # STN3d
    h = jax.nn.relu(mm(x, sw1) + sb1)
    h = jax.nn.relu(mm(h, sw2) + sb2)
    h = jax.nn.relu(mm(h, sw3) + sb3)
    g = jnp.max(h, axis=1)                                                # (B, 1024)
    g = jax.nn.relu(g @ sfc1w + sfc1b)
    g = jax.nn.relu(g @ sfc2w + sfc2b)
    t9 = g @ sfc3w + sfc3b                                                # (B, 9)
    trans = t9.reshape(-1, 3, 3) + jnp.eye(3, dtype=f32)

    # transform folded into the first feature-layer weight (same policy as the kernel)
    w1_eff = jnp.einsum('bij,jk->bik', trans, fw1)                        # (B, 3, 64)
    h1 = jax.nn.relu(jnp.einsum('bnc,bck->bnk', x.astype(bf16), w1_eff.astype(bf16),
                                preferred_element_type=f32) + fb1)
    h2 = jax.nn.relu(mm(h1, fw2) + fb2)
    h3 = mm(h2, fw3) + fb3
    return jnp.max(h3, axis=1), trans


# -----------------------------------------------------------------------------
if __name__ == "__main__":
    key = jax.random.PRNGKey(0)
    kx1, kx2, kp = jax.random.split(key, 3)
    params = make_params(kp)
    fwd = jax.jit(pointnetfeat_forward, static_argnames=("tile_n",))

    # Case 1: B=2, N=200 -> single tile per batch (padding by first-point repeat), no split.
    B, N = 2, 200
    x = jax.random.normal(kx1, (B, 3, N), jnp.float32)
    gfeat, trans = fwd(x, params)
    jax.block_until_ready((gfeat, trans))
    ref_feat, ref_trans = reference_forward(x, params)
    assert gfeat.shape == (B, 1024) and trans.shape == (B, 3, 3)
    assert jnp.allclose(trans, ref_trans, atol=1e-3, rtol=1e-3), \
        float(jnp.max(jnp.abs(trans - ref_trans)))
    assert jnp.allclose(gfeat, ref_feat, atol=1e-2, rtol=1e-2), \
        float(jnp.max(jnp.abs(gfeat - ref_feat)))

    # Case 2: B=1 -> 2-way core split + multi-tile online max (small tile to exercise it).
    B2, N2 = 1, 500
    x2 = jax.random.normal(kx2, (B2, 3, N2), jnp.float32)
    gfeat2, trans2 = fwd(x2, params, tile_n=64)
    jax.block_until_ready((gfeat2, trans2))
    ref_feat2, ref_trans2 = reference_forward(x2, params)
    assert gfeat2.shape == (B2, 1024) and trans2.shape == (B2, 3, 3)
    assert jnp.allclose(trans2, ref_trans2, atol=1e-3, rtol=1e-3), \
        float(jnp.max(jnp.abs(trans2 - ref_trans2)))
    assert jnp.allclose(gfeat2, ref_feat2, atol=1e-2, rtol=1e-2), \
        float(jnp.max(jnp.abs(gfeat2 - ref_feat2)))

    print("KERNEL_OK")
</pallas_src>

<mosaic_0001>
module attributes {stable_mosaic.version = 11 : i64} {
  func.func @_feat_pool_kernel(%arg0: i32, %arg1: i32, %arg2: i32, %arg3: memref<1x208x3xbf16, #tpu.memory_space<vmem>>, %arg4: memref<1x3x64xbf16, #tpu.memory_space<vmem>>, %arg5: memref<1x64xf32, #tpu.memory_space<vmem>>, %arg6: memref<64x128xbf16, #tpu.memory_space<vmem>>, %arg7: memref<1x128xf32, #tpu.memory_space<vmem>>, %arg8: memref<128x1024xbf16, #tpu.memory_space<vmem>>, %arg9: memref<1x1024xf32, #tpu.memory_space<vmem>>, %arg10: memref<1x1x1x1024xf32, #tpu.memory_space<vmem>>) attributes {dimension_semantics = [#tpu.dimension_semantics<parallel>, #tpu.dimension_semantics<parallel>, #tpu.dimension_semantics<arbitrary>], iteration_bounds = array<i64: 1, 2, 1>, scalar_prefetch = 0 : i64, scratch_operands = 0 : i64, tpu.core_type = #tpu.core_type<tc>, window_params = [{transform_indices = @transform_0, window_bounds = array<i64: 1, 208, 3>}, {transform_indices = @transform_1, window_bounds = array<i64: 1, 3, 64>}, {pipeline_mode = #tpu.pipeline_mode<synchronous>, transform_indices = @transform_2, window_bounds = array<i64: 1, 64>}, {pipeline_mode = #tpu.pipeline_mode<synchronous>, transform_indices = @transform_3, window_bounds = array<i64: 64, 128>}, {pipeline_mode = #tpu.pipeline_mode<synchronous>, transform_indices = @transform_4, window_bounds = array<i64: 1, 128>}, {pipeline_mode = #tpu.pipeline_mode<synchronous>, transform_indices = @transform_5, window_bounds = array<i64: 128, 1024>}, {pipeline_mode = #tpu.pipeline_mode<synchronous>, transform_indices = @transform_6, window_bounds = array<i64: 1, 1024>}, {transform_indices = @transform_7, window_bounds = array<i64: 1, 1, 1, 1024>}]} {
    %c0 = arith.constant 0 : index
    %c0_0 = arith.constant 0 : index
    %c0_1 = arith.constant 0 : index
    %0 = vector.load %arg3[%c0, %c0_0, %c0_1] : memref<1x208x3xbf16, #tpu.memory_space<vmem>>, vector<1x208x3xbf16>
    %1 = vector.shape_cast %0 : vector<1x208x3xbf16> to vector<208x3xbf16>
    %c0_2 = arith.constant 0 : index
    %c0_3 = arith.constant 0 : index
    %c0_4 = arith.constant 0 : index
    %2 = vector.load %arg4[%c0_2, %c0_3, %c0_4] : memref<1x3x64xbf16, #tpu.memory_space<vmem>>, vector<1x3x64xbf16>
    %3 = vector.shape_cast %2 : vector<1x3x64xbf16> to vector<3x64xbf16>
    %cst = arith.constant dense<0.000000e+00> : vector<208x64xf32>
    %4 = tpu.matmul %1, %3, %cst {dimension_numbers = #tpu.dot_dimension_numbers<[1], [0], [0], [1], [0, 0, 1, 1], [], []>} : vector<208x3xbf16>, vector<3x64xbf16>, vector<208x64xf32> -> vector<208x64xf32>
    %c0_5 = arith.constant 0 : index
    %c0_6 = arith.constant 0 : index
    %5 = vector.load %arg5[%c0_5, %c0_6] : memref<1x64xf32, #tpu.memory_space<vmem>>, vector<1x64xf32>
    %6 = vector.broadcast %5 : vector<1x64xf32> to vector<208x64xf32>
    %7 = arith.addf %4, %6 : vector<208x64xf32>
    %cst_7 = arith.constant 0.000000e+00 : f32
    %8 = vector.broadcast %cst_7 : f32 to vector<208x64xf32>
    %9 = arith.maximumf %7, %8 : vector<208x64xf32>
    %10 = arith.truncf %9 : vector<208x64xf32> to vector<208x64xbf16>
    %c0_8 = arith.constant 0 : index
    %c0_9 = arith.constant 0 : index
    %11 = vector.load %arg6[%c0_8, %c0_9] : memref<64x128xbf16, #tpu.memory_space<vmem>>, vector<64x128xbf16>
    %cst_10 = arith.constant dense<0.000000e+00> : vector<208x128xf32>
    %12 = tpu.matmul %10, %11, %cst_10 {dimension_numbers = #tpu.dot_dimension_numbers<[1], [0], [0], [1], [0, 0, 1, 1], [], []>} : vector<208x64xbf16>, vector<64x128xbf16>, vector<208x128xf32> -> vector<208x128xf32>
    %c0_11 = arith.constant 0 : index
    %c0_12 = arith.constant 0 : index
    %13 = vector.load %arg7[%c0_11, %c0_12] : memref<1x128xf32, #tpu.memory_space<vmem>>, vector<1x128xf32>
    %14 = vector.broadcast %13 : vector<1x128xf32> to vector<208x128xf32>
    %15 = arith.addf %12, %14 : vector<208x128xf32>
    %cst_13 = arith.constant 0.000000e+00 : f32
    %16 = vector.broadcast %cst_13 : f32 to vector<208x128xf32>
    %17 = arith.maximumf %15, %16 : vector<208x128xf32>
    %18 = arith.truncf %17 : vector<208x128xf32> to vector<208x128xbf16>
    %c0_14 = arith.constant 0 : index
    %c0_15 = arith.constant 0 : index
    %19 = vector.load %arg8[%c0_14, %c0_15] : memref<128x1024xbf16, #tpu.memory_space<vmem>>, vector<128x1024xbf16>
    %cst_16 = arith.constant dense<0.000000e+00> : vector<208x1024xf32>
    %20 = tpu.matmul %18, %19, %cst_16 {dimension_numbers = #tpu.dot_dimension_numbers<[1], [0], [0], [1], [0, 0, 1, 1], [], []>} : vector<208x128xbf16>, vector<128x1024xbf16>, vector<208x1024xf32> -> vector<208x1024xf32>
    %c0_17 = arith.constant 0 : index
    %c0_18 = arith.constant 0 : index
    %21 = vector.load %arg9[%c0_17, %c0_18] : memref<1x1024xf32, #tpu.memory_space<vmem>>, vector<1x1024xf32>
    %22 = vector.broadcast %21 : vector<1x1024xf32> to vector<208x1024xf32>
    %23 = arith.addf %20, %22 : vector<208x1024xf32>
    %cst_19 = arith.constant dense<0xFF800000> : vector<1024xf32>
    %24 = vector.multi_reduction <maximumf>, %23, %cst_19 [0] : vector<208x1024xf32> to vector<1024xf32>
    %25 = vector.shape_cast %24 : vector<1024xf32> to vector<1x1024xf32>
    %c0_i32 = arith.constant 0 : i32
    %26 = arith.cmpi eq, %arg2, %c0_i32 : i32
    %27 = arith.extui %26 : i1 to i32
    %c0_i32_20 = arith.constant 0 : i32
    %28 = arith.cmpi ne, %27, %c0_i32_20 : i32
    scf.if %28 {
      %c0_23 = arith.constant 0 : index
      %c0_24 = arith.constant 0 : index
      %c0_25 = arith.constant 0 : index
      %c0_26 = arith.constant 0 : index
      %32 = vector.load %arg10[%c0_23, %c0_24, %c0_25, %c0_26] : memref<1x1x1x1024xf32, #tpu.memory_space<vmem>>, vector<1x1x1x1024xf32>
      %33 = vector.shape_cast %32 : vector<1x1x1x1024xf32> to vector<1x1024xf32>
      %34 = vector.shape_cast %25 : vector<1x1024xf32> to vector<1x1x1x1024xf32>
      tpu.vector_store %arg10[%c0_23, %c0_24, %c0_25, %c0_26], %34 {strides = array<i32>} : memref<1x1x1x1024xf32, #tpu.memory_space<vmem>>, vector<1x1x1x1024xf32>,
    } else {
    }
    %c0_i32_21 = arith.constant 0 : i32
    %29 = arith.cmpi ne, %arg2, %c0_i32_21 : i32
    %30 = arith.extui %29 : i1 to i32
    %c0_i32_22 = arith.constant 0 : i32
    %31 = arith.cmpi ne, %30, %c0_i32_22 : i32
    scf.if %31 {
      %c0_23 = arith.constant 0 : index
      %c0_24 = arith.constant 0 : index
      %c0_25 = arith.constant 0 : index
      %c0_26 = arith.constant 0 : index
      %32 = vector.load %arg10[%c0_23, %c0_24, %c0_25, %c0_26] : memref<1x1x1x1024xf32, #tpu.memory_space<vmem>>, vector<1x1x1x1024xf32>
      %33 = vector.shape_cast %32 : vector<1x1x1x1024xf32> to vector<1x1024xf32>
      %34 = arith.maximumf %33, %25 : vector<1x1024xf32>
      %c0_27 = arith.constant 0 : index
      %c0_28 = arith.constant 0 : index
      %c0_29 = arith.constant 0 : index
      %c0_30 = arith.constant 0 : index
      %35 = vector.load %arg10[%c0_27, %c0_28, %c0_29, %c0_30] : memref<1x1x1x1024xf32, #tpu.memory_space<vmem>>, vector<1x1x1x1024xf32>
      %36 = vector.shape_cast %35 : vector<1x1x1x1024xf32> to vector<1x1024xf32>
      %37 = vector.shape_cast %34 : vector<1x1024xf32> to vector<1x1x1x1024xf32>
      tpu.vector_store %arg10[%c0_27, %c0_28, %c0_29, %c0_30], %37 {strides = array<i32>} : memref<1x1x1x1024xf32, #tpu.memory_space<vmem>>, vector<1x1x1x1024xf32>,
    } else {
    }
    return
  }
  func.func @transform_0(%arg0: i32, %arg1: i32, %arg2: i32) -> (i32, i32, i32) {
    %c1_i32 = arith.constant 1 : i32
    %0 = arith.muli %arg0, %c1_i32 : i32
    %1 = arith.addi %0, %arg2 : i32
    %c0_i32 = arith.constant 0 : i32
    %c0_i32_0 = arith.constant 0 : i32
    return %arg1, %1, %c0_i32 : i32, i32, i32
  }
  func.func @transform_1(%arg0: i32, %arg1: i32, %arg2: i32) -> (i32, i32, i32) {
    %c0_i32 = arith.constant 0 : i32
    %c0_i32_0 = arith.constant 0 : i32
    %c0_i32_1 = arith.constant 0 : i32
    return %arg1, %c0_i32, %c0_i32_0 : i32, i32, i32
  }
  func.func @transform_2(%arg0: i32, %arg1: i32, %arg2: i32) -> (i32, i32) {
    %c0_i32 = arith.constant 0 : i32
    %c0_i32_0 = arith.constant 0 : i32
    %c0_i32_1 = arith.constant 0 : i32
    return %c0_i32, %c0_i32_0 : i32, i32
  }
  func.func @transform_3(%arg0: i32, %arg1: i32, %arg2: i32) -> (i32, i32) {
    %c0_i32 = arith.constant 0 : i32
    %c0_i32_0 = arith.constant 0 : i32
    %c0_i32_1 = arith.constant 0 : i32
    return %c0_i32, %c0_i32_0 : i32, i32
  }
  func.func @transform_4(%arg0: i32, %arg1: i32, %arg2: i32) -> (i32, i32) {
    %c0_i32 = arith.constant 0 : i32
    %c0_i32_0 = arith.constant 0 : i32
    %c0_i32_1 = arith.constant 0 : i32
    return %c0_i32, %c0_i32_0 : i32, i32
  }
  func.func @transform_5(%arg0: i32, %arg1: i32, %arg2: i32) -> (i32, i32) {
    %c0_i32 = arith.constant 0 : i32
    %c0_i32_0 = arith.constant 0 : i32
    %c0_i32_1 = arith.constant 0 : i32
    return %c0_i32, %c0_i32_0 : i32, i32
  }
  func.func @transform_6(%arg0: i32, %arg1: i32, %arg2: i32) -> (i32, i32) {
    %c0_i32 = arith.constant 0 : i32
    %c0_i32_0 = arith.constant 0 : i32
    %c0_i32_1 = arith.constant 0 : i32
    return %c0_i32, %c0_i32_0 : i32, i32
  }
  func.func @transform_7(%arg0: i32, %arg1: i32, %arg2: i32) -> (i32, i32, i32, i32) {
    %c0_i32 = arith.constant 0 : i32
    %c0_i32_0 = arith.constant 0 : i32
    %c0_i32_1 = arith.constant 0 : i32
    return %arg0, %arg1, %c0_i32, %c0_i32_0 : i32, i32, i32, i32
  }
}

module attributes {stable_mosaic.version = 11 : i64} {
  func.func @_stn_pool_kernel(%arg0: i32, %arg1: i32, %arg2: i32, %arg3: memref<1x208x3xbf16, #tpu.memory_space<vmem>>, %arg4: memref<3x64xbf16, #tpu.memory_space<vmem>>, %arg5: memref<1x64xf32, #tpu.memory_space<vmem>>, %arg6: memref<64x128xbf16, #tpu.memory_space<vmem>>, %arg7: memref<1x128xf32, #tpu.memory_space<vmem>>, %arg8: memref<128x1024xbf16, #tpu.memory_space<vmem>>, %arg9: memref<1x1024xf32, #tpu.memory_space<vmem>>, %arg10: memref<1x1x1x1024xf32, #tpu.memory_space<vmem>>) attributes {dimension_semantics = [#tpu.dimension_semantics<parallel>, #tpu.dimension_semantics<parallel>, #tpu.dimension_semantics<arbitrary>], iteration_bounds = array<i64: 1, 2, 1>, scalar_prefetch = 0 : i64, scratch_operands = 0 : i64, tpu.core_type = #tpu.core_type<tc>, window_params = [{transform_indices = @transform_0, window_bounds = array<i64: 1, 208, 3>}, {pipeline_mode = #tpu.pipeline_mode<synchronous>, transform_indices = @transform_1, window_bounds = array<i64: 3, 64>}, {pipeline_mode = #tpu.pipeline_mode<synchronous>, transform_indices = @transform_2, window_bounds = array<i64: 1, 64>}, {pipeline_mode = #tpu.pipeline_mode<synchronous>, transform_indices = @transform_3, window_bounds = array<i64: 64, 128>}, {pipeline_mode = #tpu.pipeline_mode<synchronous>, transform_indices = @transform_4, window_bounds = array<i64: 1, 128>}, {pipeline_mode = #tpu.pipeline_mode<synchronous>, transform_indices = @transform_5, window_bounds = array<i64: 128, 1024>}, {pipeline_mode = #tpu.pipeline_mode<synchronous>, transform_indices = @transform_6, window_bounds = array<i64: 1, 1024>}, {transform_indices = @transform_7, window_bounds = array<i64: 1, 1, 1, 1024>}]} {
    %c0 = arith.constant 0 : index
    %c0_0 = arith.constant 0 : index
    %c0_1 = arith.constant 0 : index
    %0 = vector.load %arg3[%c0, %c0_0, %c0_1] : memref<1x208x3xbf16, #tpu.memory_space<vmem>>, vector<1x208x3xbf16>
    %1 = vector.shape_cast %0 : vector<1x208x3xbf16> to vector<208x3xbf16>
    %c0_2 = arith.constant 0 : index
    %c0_3 = arith.constant 0 : index
    %2 = vector.load %arg4[%c0_2, %c0_3] : memref<3x64xbf16, #tpu.memory_space<vmem>>, vector<3x64xbf16>
    %cst = arith.constant dense<0.000000e+00> : vector<208x64xf32>
    %3 = tpu.matmul %1, %2, %cst {dimension_numbers = #tpu.dot_dimension_numbers<[1], [0], [0], [1], [0, 0, 1, 1], [], []>} : vector<208x3xbf16>, vector<3x64xbf16>, vector<208x64xf32> -> vector<208x64xf32>
    %c0_4 = arith.constant 0 : index
    %c0_5 = arith.constant 0 : index
    %4 = vector.load %arg5[%c0_4, %c0_5] : memref<1x64xf32, #tpu.memory_space<vmem>>, vector<1x64xf32>
    %5 = vector.broadcast %4 : vector<1x64xf32> to vector<208x64xf32>
    %6 = arith.addf %3, %5 : vector<208x64xf32>
    %cst_6 = arith.constant 0.000000e+00 : f32
    %7 = vector.broadcast %cst_6 : f32 to vector<208x64xf32>
    %8 = arith.maximumf %6, %7 : vector<208x64xf32>
    %9 = arith.truncf %8 : vector<208x64xf32> to vector<208x64xbf16>
    %c0_7 = arith.constant 0 : index
    %c0_8 = arith.constant 0 : index
    %10 = vector.load %arg6[%c0_7, %c0_8] : memref<64x128xbf16, #tpu.memory_space<vmem>>, vector<64x128xbf16>
    %cst_9 = arith.constant dense<0.000000e+00> : vector<208x128xf32>
    %11 = tpu.matmul %9, %10, %cst_9 {dimension_numbers = #tpu.dot_dimension_numbers<[1], [0], [0], [1], [0, 0, 1, 1], [], []>} : vector<208x64xbf16>, vector<64x128xbf16>, vector<208x128xf32> -> vector<208x128xf32>
    %c0_10 = arith.constant 0 : index
    %c0_11 = arith.constant 0 : index
    %12 = vector.load %arg7[%c0_10, %c0_11] : memref<1x128xf32, #tpu.memory_space<vmem>>, vector<1x128xf32>
    %13 = vector.broadcast %12 : vector<1x128xf32> to vector<208x128xf32>
    %14 = arith.addf %11, %13 : vector<208x128xf32>
    %cst_12 = arith.constant 0.000000e+00 : f32
    %15 = vector.broadcast %cst_12 : f32 to vector<208x128xf32>
    %16 = arith.maximumf %14, %15 : vector<208x128xf32>
    %17 = arith.truncf %16 : vector<208x128xf32> to vector<208x128xbf16>
    %c0_13 = arith.constant 0 : index
    %c0_14 = arith.constant 0 : index
    %18 = vector.load %arg8[%c0_13, %c0_14] : memref<128x1024xbf16, #tpu.memory_space<vmem>>, vector<128x1024xbf16>
    %cst_15 = arith.constant dense<0.000000e+00> : vector<208x1024xf32>
    %19 = tpu.matmul %17, %18, %cst_15 {dimension_numbers = #tpu.dot_dimension_numbers<[1], [0], [0], [1], [0, 0, 1, 1], [], []>} : vector<208x128xbf16>, vector<128x1024xbf16>, vector<208x1024xf32> -> vector<208x1024xf32>
    %c0_16 = arith.constant 0 : index
    %c0_17 = arith.constant 0 : index
    %20 = vector.load %arg9[%c0_16, %c0_17] : memref<1x1024xf32, #tpu.memory_space<vmem>>, vector<1x1024xf32>
    %21 = vector.broadcast %20 : vector<1x1024xf32> to vector<208x1024xf32>
    %22 = arith.addf %19, %21 : vector<208x1024xf32>
    %cst_18 = arith.constant 0.000000e+00 : f32
    %23 = vector.broadcast %cst_18 : f32 to vector<208x1024xf32>
    %24 = arith.maximumf %22, %23 : vector<208x1024xf32>
    %cst_19 = arith.constant dense<0xFF800000> : vector<1024xf32>
    %25 = vector.multi_reduction <maximumf>, %24, %cst_19 [0] : vector<208x1024xf32> to vector<1024xf32>
    %26 = vector.shape_cast %25 : vector<1024xf32> to vector<1x1024xf32>
    %c0_i32 = arith.constant 0 : i32
    %27 = arith.cmpi eq, %arg2, %c0_i32 : i32
    %28 = arith.extui %27 : i1 to i32
    %c0_i32_20 = arith.constant 0 : i32
    %29 = arith.cmpi ne, %28, %c0_i32_20 : i32
    scf.if %29 {
      %c0_23 = arith.constant 0 : index
      %c0_24 = arith.constant 0 : index
      %c0_25 = arith.constant 0 : index
      %c0_26 = arith.constant 0 : index
      %33 = vector.load %arg10[%c0_23, %c0_24, %c0_25, %c0_26] : memref<1x1x1x1024xf32, #tpu.memory_space<vmem>>, vector<1x1x1x1024xf32>
      %34 = vector.shape_cast %33 : vector<1x1x1x1024xf32> to vector<1x1024xf32>
      %35 = vector.shape_cast %26 : vector<1x1024xf32> to vector<1x1x1x1024xf32>
      tpu.vector_store %arg10[%c0_23, %c0_24, %c0_25, %c0_26], %35 {strides = array<i32>} : memref<1x1x1x1024xf32, #tpu.memory_space<vmem>>, vector<1x1x1x1024xf32>,
    } else {
    }
    %c0_i32_21 = arith.constant 0 : i32
    %30 = arith.cmpi ne, %arg2, %c0_i32_21 : i32
    %31 = arith.extui %30 : i1 to i32
    %c0_i32_22 = arith.constant 0 : i32
    %32 = arith.cmpi ne, %31, %c0_i32_22 : i32
    scf.if %32 {
      %c0_23 = arith.constant 0 : index
      %c0_24 = arith.constant 0 : index
      %c0_25 = arith.constant 0 : index
      %c0_26 = arith.constant 0 : index
      %33 = vector.load %arg10[%c0_23, %c0_24, %c0_25, %c0_26] : memref<1x1x1x1024xf32, #tpu.memory_space<vmem>>, vector<1x1x1x1024xf32>
      %34 = vector.shape_cast %33 : vector<1x1x1x1024xf32> to vector<1x1024xf32>
      %35 = arith.maximumf %34, %26 : vector<1x1024xf32>
      %c0_27 = arith.constant 0 : index
      %c0_28 = arith.constant 0 : index
      %c0_29 = arith.constant 0 : index
      %c0_30 = arith.constant 0 : index
      %36 = vector.load %arg10[%c0_27, %c0_28, %c0_29, %c0_30] : memref<1x1x1x1024xf32, #tpu.memory_space<vmem>>, vector<1x1x1x1024xf32>
      %37 = vector.shape_cast %36 : vector<1x1x1x1024xf32> to vector<1x1024xf32>
      %38 = vector.shape_cast %35 : vector<1x1024xf32> to vector<1x1x1x1024xf32>
      tpu.vector_store %arg10[%c0_27, %c0_28, %c0_29, %c0_30], %38 {strides = array<i32>} : memref<1x1x1x1024xf32, #tpu.memory_space<vmem>>, vector<1x1x1x1024xf32>,
    } else {
    }
    return
  }
  func.func @transform_0(%arg0: i32, %arg1: i32, %arg2: i32) -> (i32, i32, i32) {
    %c1_i32 = arith.constant 1 : i32
    %0 = arith.muli %arg0, %c1_i32 : i32
    %1 = arith.addi %0, %arg2 : i32
    %c0_i32 = arith.constant 0 : i32
    %c0_i32_0 = arith.constant 0 : i32
    return %arg1, %1, %c0_i32 : i32, i32, i32
  }
  func.func @transform_1(%arg0: i32, %arg1: i32, %arg2: i32) -> (i32, i32) {
    %c0_i32 = arith.constant 0 : i32
    %c0_i32_0 = arith.constant 0 : i32
    %c0_i32_1 = arith.constant 0 : i32
    return %c0_i32, %c0_i32_0 : i32, i32
  }
  func.func @transform_2(%arg0: i32, %arg1: i32, %arg2: i32) -> (i32, i32) {
    %c0_i32 = arith.constant 0 : i32
    %c0_i32_0 = arith.constant 0 : i32
    %c0_i32_1 = arith.constant 0 : i32
    return %c0_i32, %c0_i32_0 : i32, i32
  }
  func.func @transform_3(%arg0: i32, %arg1: i32, %arg2: i32) -> (i32, i32) {
    %c0_i32 = arith.constant 0 : i32
    %c0_i32_0 = arith.constant 0 : i32
    %c0_i32_1 = arith.constant 0 : i32
    return %c0_i32, %c0_i32_0 : i32, i32
  }
  func.func @transform_4(%arg0: i32, %arg1: i32, %arg2: i32) -> (i32, i32) {
    %c0_i32 = arith.constant 0 : i32
    %c0_i32_0 = arith.constant 0 : i32
    %c0_i32_1 = arith.constant 0 : i32
    return %c0_i32, %c0_i32_0 : i32, i32
  }
  func.func @transform_5(%arg0: i32, %arg1: i32, %arg2: i32) -> (i32, i32) {
    %c0_i32 = arith.constant 0 : i32
    %c0_i32_0 = arith.constant 0 : i32
    %c0_i32_1 = arith.constant 0 : i32
    return %c0_i32, %c0_i32_0 : i32, i32
  }
  func.func @transform_6(%arg0: i32, %arg1: i32, %arg2: i32) -> (i32, i32) {
    %c0_i32 = arith.constant 0 : i32
    %c0_i32_0 = arith.constant 0 : i32
    %c0_i32_1 = arith.constant 0 : i32
    return %c0_i32, %c0_i32_0 : i32, i32
  }
  func.func @transform_7(%arg0: i32, %arg1: i32, %arg2: i32) -> (i32, i32, i32, i32) {
    %c0_i32 = arith.constant 0 : i32
    %c0_i32_0 = arith.constant 0 : i32
    %c0_i32_1 = arith.constant 0 : i32
    return %arg0, %arg1, %c0_i32, %c0_i32_0 : i32, i32, i32, i32
  }
}

</mosaic_0001>

<llo_original>
// kernel: pointnetfeat_forward.3
$region0: #{pointnetfeat_forward.3}
  #allocation0 [shape = 'u32[]', space=smem, size = 0x4, offset = 0x4, fixed_abs, tag = 'smem constant byte address 0x4 - core index']
  #allocation1 [shape = 'u32[72,128]{1,0:T(1,128)}', space=vmem, size = 0x9000, scoped, tag = 'internal scratch']
  %s0 = inlined_call_operand.vmem [shape: bf16[2,208,3], index: 0, kind: input, shape index: {}]
  %s1 = inlined_call_operand.vmem [shape: bf16[2,3,64], index: 1, kind: input, shape index: {}]
  %s2 = inlined_call_operand.vmem [shape: f32[1,64], index: 2, kind: input, shape index: {}]
  %s3 = inlined_call_operand.vmem [shape: bf16[64,128], index: 3, kind: input, shape index: {}]
  %s4 = inlined_call_operand.vmem [shape: f32[1,128], index: 4, kind: input, shape index: {}]
  %s5 = inlined_call_operand.vmem [shape: bf16[128,1024], index: 5, kind: input, shape index: {}]
  %s6 = inlined_call_operand.vmem [shape: f32[1,1024], index: 6, kind: input, shape index: {}]
  %s7 = inlined_call_operand.vmem [shape: f32[1,2,1,1024], index: 7, kind: output, shape index: {}]
  %s8 = sld [smem:[#allocation0]]
  $region69: #{pointnetfeat_forward.3} parent=0
    _
  %s10 = ssub.s32 1, %s8
  %s11 = scalar_select 0, %s10, %s8
  loop: start=0, step=1, limit=4
  $region2: #{pointnetfeat_forward.3} parent=0 // loop_pre_header
    _
  $region3: #{pointnetfeat_forward.3} parent=0 // loop_header
    %s13 = sphi 0, %s17
    %p14 = scmp.ge.s32.totalorder %s13, 4
    %s20 = sphi 0, %s39
    %s21 = sphi 0, %s35
    %s22 = sphi 0, %s31
    %s23 = sphi 0, %s20
    %s24 = sphi 0, %s21
    %s25 = sphi 0, %s22
    %s26 = sphi 0, %s23
    %s27 = sphi 0, %s24
    %s28 = sphi 0, %s25
    %s46 = sphi 0, %s48
    %s49 = sphi 0, %s46
    %s50 = sphi 0, %s49
    %s66 = sphi 0, %s50
    %s72 = sphi 0, %s74
    %s75 = sphi 0, %s72
    %s76 = sphi 0, %s75
    %s92 = sphi 0, %s76
    %s96 = sphi 0, %s96
    %s98 = sphi 0, %s96
    %s99 = sphi 0, %s98
    %s113 = sphi 0, %s99
    %s117 = sphi 0, %s117
    %s119 = sphi 0, %s117
    %s120 = sphi 0, %s119
    %s134 = sphi 0, %s120
    %s138 = sphi 0, %s138
    %s140 = sphi 0, %s138
    %s141 = sphi 0, %s140
    %s155 = sphi 0, %s141
    %s159 = sphi 0, %s159
    %s161 = sphi 0, %s159
    %s162 = sphi 0, %s161
    %s176 = sphi 0, %s162
    %s180 = sphi 0, %s180
    %s182 = sphi 0, %s180
    %s183 = sphi 0, %s182
    %s197 = sphi 0, %s183
    %s205 = sphi 0, %s207
    %s208 = sphi 0, %s205
    %s209 = sphi 0, %s208
    %s225 = sphi 0, %s209
  $region4: #{pointnetfeat_forward.3} parent=0 // loop_header_branch
    %16 = sbr.rel (%p14) target = $region8
  $region5: #{pointnetfeat_forward.3} parent=0 // loop_body
    %s18 = ssub.s32 %s13, 1
    %s19 = ssub.s32 %s13, 2
    %s29 = sadd.s32 1, %s22
    %p30 = scmp.ge.s32.totalorder %s29, 1
    %s31 = scalar_select %p30, 0, %s29
    %s32 = sadd.s32 1, %s21
    %s33 = scalar_select %p30, %s32, %s21
    %p34 = scmp.ge.s32.totalorder %s33, 2
    %s35 = scalar_select %p34, 0, %s33
    %s36 = sadd.s32 1, %s20
    %s37 = scalar_select %p34, %s36, %s20
    %p38 = scmp.ge.s32.totalorder %s37, 1
    %s39 = scalar_select %p38, 0, %s37
    %s40 = sadd.s32 %s20, %s22
    %s41 = sadd.s32 %s39, %s31
    %s42 = ssub.s32 %s21, %s35
    %s43 = ssub.s32 %s40, %s41
    %s44 = sor.u32 %s42, %s43
    %p45 = scmp.eq.s32.totalorder %s44, 0
    %s47 = sadd.s32 %s46, 1
    %s48 = scalar_select %p45, %s46, %s47
    %p51 = pneg %p45
    %p52 = scmp.eq.s32.totalorder %s13, 1
    %p53 = por %p51, %p52
    %p54 = scmp.ne.s32.totalorder %s46, %s49
    %p55 = scmp.eq.s32.totalorder %s13, 0
    %p56 = por %p54, %p55
    %p57 = scmp.ne.s32.totalorder %s46, %s49
    %p58 = scmp.eq.s32.totalorder %s18, 1
    %p59 = por %p57, %p58
    %p60 = scmp.ne.s32.totalorder %s49, %s50
    %p61 = scmp.eq.s32.totalorder %s18, 0
    %p62 = por %p60, %p61
    %p63 = scmp.ne.s32.totalorder %s49, %s50
    %p64 = scmp.eq.s32.totalorder %s19, 1
    %p65 = por %p63, %p64
    %p67 = scmp.ne.s32.totalorder %s50, %s66
    %p68 = scmp.eq.s32.totalorder %s19, 0
    %p69 = por %p67, %p68
    %s70 = ssub.s32 %s21, %s35
    %p71 = scmp.eq.s32.totalorder %s70, 0
    %s73 = sadd.s32 %s72, 1
    %s74 = scalar_select %p71, %s72, %s73
    %p77 = pneg %p71
    %p78 = scmp.eq.s32.totalorder %s13, 1
    %p79 = por %p77, %p78
    %p80 = scmp.ne.s32.totalorder %s72, %s75
    %p81 = scmp.eq.s32.totalorder %s13, 0
    %p82 = por %p80, %p81
    %p83 = scmp.ne.s32.totalorder %s72, %s75
    %p84 = scmp.eq.s32.totalorder %s18, 1
    %p85 = por %p83, %p84
    %p86 = scmp.ne.s32.totalorder %s75, %s76
    %p87 = scmp.eq.s32.totalorder %s18, 0
    %p88 = por %p86, %p87
    %p89 = scmp.ne.s32.totalorder %s75, %s76
    %p90 = scmp.eq.s32.totalorder %s19, 1
    %p91 = por %p89, %p90
    %p93 = scmp.ne.s32.totalorder %s76, %s92
    %p94 = scmp.eq.s32.totalorder %s19, 0
    %p95 = por %p93, %p94
    %s97 = sadd.s32 %s96, 1
    %p100 = scmp.eq.s32.totalorder %s13, 1
    %p101 = scmp.ne.s32.totalorder %s96, %s98
    %p102 = scmp.eq.s32.totalorder %s13, 0
    %p103 = por %p101, %p102
    %p104 = scmp.ne.s32.totalorder %s96, %s98
    %p105 = scmp.eq.s32.totalorder %s18, 1
    %p106 = por %p104, %p105
    %p107 = scmp.ne.s32.totalorder %s98, %s99
    %p108 = scmp.eq.s32.totalorder %s18, 0
    %p109 = por %p107, %p108
    %p110 = scmp.ne.s32.totalorder %s98, %s99
    %p111 = scmp.eq.s32.totalorder %s19, 1
    %p112 = por %p110, %p111
    %p114 = scmp.ne.s32.totalorder %s99, %s113
    %p115 = scmp.eq.s32.totalorder %s19, 0
    %p116 = por %p114, %p115
    %s118 = sadd.s32 %s117, 1
    %p121 = scmp.eq.s32.totalorder %s13, 1
    %p122 = scmp.ne.s32.totalorder %s117, %s119
    %p123 = scmp.eq.s32.totalorder %s13, 0
    %p124 = por %p122, %p123
    %p125 = scmp.ne.s32.totalorder %s117, %s119
    %p126 = scmp.eq.s32.totalorder %s18, 1
    %p127 = por %p125, %p126
    %p128 = scmp.ne.s32.totalorder %s119, %s120
    %p129 = scmp.eq.s32.totalorder %s18, 0
    %p130 = por %p128, %p129
    %p131 = scmp.ne.s32.totalorder %s119, %s120
    %p132 = scmp.eq.s32.totalorder %s19, 1
    %p133 = por %p131, %p132
    %p135 = scmp.ne.s32.totalorder %s120, %s134
    %p136 = scmp.eq.s32.totalorder %s19, 0
    %p137 = por %p135, %p136
    %s139 = sadd.s32 %s138, 1
    %p142 = scmp.eq.s32.totalorder %s13, 1
    %p143 = scmp.ne.s32.totalorder %s138, %s140
    %p144 = scmp.eq.s32.totalorder %s13, 0
    %p145 = por %p143, %p144
    %p146 = scmp.ne.s32.totalorder %s138, %s140
    %p147 = scmp.eq.s32.totalorder %s18, 1
    %p148 = por %p146, %p147
    %p149 = scmp.ne.s32.totalorder %s140, %s141
    %p150 = scmp.eq.s32.totalorder %s18, 0
    %p151 = por %p149, %p150
    %p152 = scmp.ne.s32.totalorder %s140, %s141
    %p153 = scmp.eq.s32.totalorder %s19, 1
    %p154 = por %p152, %p153
    %p156 = scmp.ne.s32.totalorder %s141, %s155
    %p157 = scmp.eq.s32.totalorder %s19, 0
    %p158 = por %p156, %p157
    %s160 = sadd.s32 %s159, 1
    %p163 = scmp.eq.s32.totalorder %s13, 1
    %p164 = scmp.ne.s32.totalorder %s159, %s161
    %p165 = scmp.eq.s32.totalorder %s13, 0
    %p166 = por %p164, %p165
    %p167 = scmp.ne.s32.totalorder %s159, %s161
    %p168 = scmp.eq.s32.totalorder %s18, 1
    %p169 = por %p167, %p168
    %p170 = scmp.ne.s32.totalorder %s161, %s162
    %p171 = scmp.eq.s32.totalorder %s18, 0
    %p172 = por %p170, %p171
    %p173 = scmp.ne.s32.totalorder %s161, %s162
    %p174 = scmp.eq.s32.totalorder %s19, 1
    %p175 = por %p173, %p174
    %p177 = scmp.ne.s32.totalorder %s162, %s176
    %p178 = scmp.eq.s32.totalorder %s19, 0
    %p179 = por %p177, %p178
    %s181 = sadd.s32 %s180, 1
    %p184 = scmp.eq.s32.totalorder %s13, 1
    %p185 = scmp.ne.s32.totalorder %s180, %s182
    %p186 = scmp.eq.s32.totalorder %s13, 0
    %p187 = por %p185, %p186
    %p188 = scmp.ne.s32.totalorder %s180, %s182
    %p189 = scmp.eq.s32.totalorder %s18, 1
    %p190 = por %p188, %p189
    %p191 = scmp.ne.s32.totalorder %s182, %s183
    %p192 = scmp.eq.s32.totalorder %s18, 0
    %p193 = por %p191, %p192
    %p194 = scmp.ne.s32.totalorder %s182, %s183
    %p195 = scmp.eq.s32.totalorder %s19, 1
    %p196 = por %p194, %p195
    %p198 = scmp.ne.s32.totalorder %s183, %s197
    %p199 = scmp.eq.s32.totalorder %s19, 0
    %p200 = por %p198, %p199
    %s201 = ssub.s32 %s20, %s39
    %s202 = ssub.s32 %s21, %s35
    %s203 = sor.u32 %s201, %s202
    %p204 = scmp.eq.s32.totalorder %s203, 0
    %s206 = sadd.s32 %s205, 1
    %s207 = scalar_select %p204, %s205, %s206
    %p210 = pneg %p204
    %p211 = scmp.eq.s32.totalorder %s13, 1
    %p212 = por %p210, %p211
    %p213 = scmp.ne.s32.totalorder %s205, %s208
    %p214 = scmp.eq.s32.totalorder %s13, 0
    %p215 = por %p213, %p214
    %p216 = scmp.ne.s32.totalorder %s205, %s208
    %p217 = scmp.eq.s32.totalorder %s18, 1
    %p218 = por %p216, %p217
    %p219 = scmp.ne.s32.totalorder %s208, %s209
    %p220 = scmp.eq.s32.totalorder %s18, 0
    %p221 = por %p219, %p220
    %p222 = scmp.ne.s32.totalorder %s208, %s209
    %p223 = scmp.eq.s32.totalorder %s19, 1
    %p224 = por %p222, %p223
    %p226 = scmp.ne.s32.totalorder %s209, %s225
    %p227 = scmp.eq.s32.totalorder %s19, 0
    %p228 = por %p226, %p227
    %p229 = scmp.le.s32.totalorder 1, %s13
    %p230 = scmp.lt.s32.totalorder %s13, 3
    %p231 = pnand %p229, %p230
    %p232 = pneg %p231
    // Predicated region
    $region9: #{pointnetfeat_forward.3} parent=5 // pred_check
      _
    $region10: #{pointnetfeat_forward.3} parent=5 // pred_check_branch
      %234 = sbr.rel (%p231) target = $region12
    $region11: #{pointnetfeat_forward.3} parent=5 // pred_region
      %s235 = ssub.s32 %s13, 1
      // Predicated region
      $region13: #{pointnetfeat_forward.3} parent=11 // pred_check
        %p236 = pneg %p109
      $region14: #{pointnetfeat_forward.3} parent=11 // pred_check_branch
        %238 = sbr.rel (%p236) target = $region16
      $region15: #{pointnetfeat_forward.3} parent=11 // pred_region
        _
      $region16: #{pointnetfeat_forward.3} parent=11 // pred_fallthru
        _
      // Predicated region
      $region17: #{pointnetfeat_forward.3} parent=11 // pred_check
        %p239 = pneg %p130
      $region18: #{pointnetfeat_forward.3} parent=11 // pred_check_branch
        %241 = sbr.rel (%p239) target = $region20
      $region19: #{pointnetfeat_forward.3} parent=11 // pred_region
        _
      $region20: #{pointnetfeat_forward.3} parent=11 // pred_fallthru
        _
      // Predicated region
      $region21: #{pointnetfeat_forward.3} parent=11 // pred_check
        %p242 = pneg %p151
      $region22: #{pointnetfeat_forward.3} parent=11 // pred_check_branch
        %244 = sbr.rel (%p242) target = $region24
      $region23: #{pointnetfeat_forward.3} parent=11 // pred_region
        _
      $region24: #{pointnetfeat_forward.3} parent=11 // pred_fallthru
        _
      // Predicated region
      $region25: #{pointnetfeat_forward.3} parent=11 // pred_check
        %p245 = pneg %p172
      $region26: #{pointnetfeat_forward.3} parent=11 // pred_check_branch
        %247 = sbr.rel (%p245) target = $region28
      $region27: #{pointnetfeat_forward.3} parent=11 // pred_region
        _
      $region28: #{pointnetfeat_forward.3} parent=11 // pred_fallthru
        _
      // Predicated region
      $region29: #{pointnetfeat_forward.3} parent=11 // pred_check
        %p248 = pneg %p193
      $region30: #{pointnetfeat_forward.3} parent=11 // pred_check_branch
        %250 = sbr.rel (%p248) target = $region32
      $region31: #{pointnetfeat_forward.3} parent=11 // pred_region
        _
      $region32: #{pointnetfeat_forward.3} parent=11 // pred_fallthru
        _
    $region12: #{pointnetfeat_forward.3} parent=5 // pred_fallthru
      _
    %p251 = scmp.lt.s32.totalorder %s13, 2
    // Predicated region
    $region33: #{pointnetfeat_forward.3} parent=5 // pred_check
      %p252 = pneg %p251
    $region34: #{pointnetfeat_forward.3} parent=5 // pred_check_branch
      %254 = sbr.rel (%p252) target = $region36
    $region35: #{pointnetfeat_forward.3} parent=5 // pred_region
      // Predicated region
      $region37: #{pointnetfeat_forward.3} parent=35 // pred_check
        %p255 = pneg %p56
      $region38: #{pointnetfeat_forward.3} parent=35 // pred_check_branch
        %257 = sbr.rel (%p255) target = $region40
      $region39: #{pointnetfeat_forward.3} parent=35 // pred_region
        %s258 = sadd.s32 %s20, %s22
        %s259 = smul.u32 26, %s258
        %p260 = scmp.lt.s32.totalorder %s21, 1
        %s261 = scalar_select %p260, %s21, 1
        %p262 = scmp.lt.s32.totalorder %s259, 25
        %s263 = scalar_select %p262, %s259, 25
        %s264 = smul.addr %s261, 26
        %s265 = sadd.s32 %s263, %s264
        %s266 = smul.addr %s265, 4
        %s267 = scalar_lea.vmem %s0, %s266
        %s268 = sadd.s32 %s20, %s22
        %s269 = smul.u32 26, %s268
      $region40: #{pointnetfeat_forward.3} parent=35 // pred_fallthru
        _
      // Predicated region
      $region41: #{pointnetfeat_forward.3} parent=35 // pred_check
        %p270 = pneg %p82
      $region42: #{pointnetfeat_forward.3} parent=35 // pred_check_branch
        %272 = sbr.rel (%p270) target = $region44
      $region43: #{pointnetfeat_forward.3} parent=35 // pred_region
        %p273 = scmp.lt.s32.totalorder %s21, 1
        %s274 = scalar_select %p273, %s21, 1
        %s275 = smul.addr %s274, 2
        %s276 = scalar_lea.vmem %s1, %s275
      $region44: #{pointnetfeat_forward.3} parent=35 // pred_fallthru
        _
    $region36: #{pointnetfeat_forward.3} parent=5 // pred_fallthru
      _
    %p277 = scmp.le.s32.totalorder 1, %s13
    %p278 = scmp.lt.s32.totalorder %s13, 3
    %p279 = pnand %p277, %p278
    %p280 = pneg %p279
    // Predicated region
    $region45: #{pointnetfeat_forward.3} parent=5 // pred_check
      _
    $region46: #{pointnetfeat_forward.3} parent=5 // pred_check_branch
      %282 = sbr.rel (%p279) target = $region48
    $region47: #{pointnetfeat_forward.3} parent=5 // pred_region
      %s283 = ssub.s32 %s13, 1
      %s284 = sadd.s32 %s23, %s25
      %s285 = smul.u32 26, %s284
      %p286 = scmp.lt.s32.totalorder %s24, 1
      %s287 = scalar_select %p286, %s24, 1
      %p288 = scmp.lt.s32.totalorder %s285, 25
      %s289 = scalar_select %p288, %s285, 25
      %s290 = smul.addr %s287, 26
      %s291 = sadd.s32 %s289, %s290
      %s292 = smul.addr %s291, 4
      %s293 = scalar_lea.vmem %s0, %s292
      %p294 = pneg %p62
      %p295 = pneg %p59
      %p296 = scmp.lt.s32.totalorder %s24, 1
      %s297 = scalar_select %p296, %s24, 1
      %s298 = smul.addr %s297, 2
      %s299 = scalar_lea.vmem %s1, %s298
      %p300 = pneg %p88
      %p301 = pneg %p85
      %p302 = pneg %p109
      %p303 = pneg %p106
      %p304 = pneg %p130
      %p305 = pneg %p127
      %p306 = pneg %p151
      %p307 = pneg %p148
      %p308 = pneg %p172
      %p309 = pneg %p169
      %p310 = pneg %p193
      %p311 = pneg %p190
      %p312 = pneg %p221
      %p313 = pneg %p218
      %p314 = scmp.lt.s32.totalorder %s23, 0
      %s315 = scalar_select %p314, %s23, 0
      %p316 = scmp.lt.s32.totalorder %s24, 1
      %s317 = scalar_select %p316, %s24, 1
      %s318 = smul.addr %s317, 8
      %s319 = smul.addr %s315, 16
      %s320 = sadd.s32 %s318, %s319
      %s321 = scalar_lea.vmem %s7, %s320
      %s322 = sadd.s32 %s23, %s25
      %s323 = smul.u32 26, %s322
      %p324 = scmp.lt.s32.totalorder %s24, 1
      %s325 = scalar_select %p324, %s24, 1
      %p326 = scmp.lt.s32.totalorder %s323, 25
      %s327 = scalar_select %p326, %s323, 25
      %s328 = smul.addr %s325, 26
      %s329 = sadd.s32 %s327, %s328
      %s330 = smul.addr %s329, 4
      %s331 = scalar_lea.vmem %s0, %s330
      %s332 = sadd.s32 %s23, %s25
      %s333 = smul.u32 26, %s332
      %p334 = scmp.lt.s32.totalorder %s24, 1
      %s335 = scalar_select %p334, %s24, 1
      %s336 = smul.addr %s335, 2
      %s337 = scalar_lea.vmem %s1, %s336
      %p338 = scmp.lt.s32.totalorder %s23, 0
      %s339 = scalar_select %p338, %s23, 0
      %p340 = scmp.lt.s32.totalorder %s24, 1
      %s341 = scalar_select %p340, %s24, 1
      %s342 = smul.addr %s341, 8
      %s343 = smul.addr %s339, 16
      %s344 = sadd.s32 %s342, %s343
      %s345 = scalar_lea.vmem %s7, %s344
      %v347 = vld [vmem:[%s331] sm:$0xf]
      %v348 = vld [vmem:[%s331 + $0x4] sm:$0xf]
      %v349 = vld [vmem:[%s331 + $0x8] sm:$0xf]
      %v350 = vld [vmem:[%s331 + $0xc] sm:$0xf]
      %v351 = vld [vmem:[%s331 + $0x10] sm:$0xf]
      %v352 = vld [vmem:[%s331 + $0x14] sm:$0xf]
      %v353 = vld [vmem:[%s331 + $0x18] sm:$0xf]
      %v354 = vld [vmem:[%s331 + $0x1c] sm:$0xf]
      %v355 = vld [vmem:[%s331 + $0x20] sm:$0xf]
      %v356 = vld [vmem:[%s331 + $0x24] sm:$0xf]
      %v357 = vld [vmem:[%s331 + $0x28] sm:$0xf]
      %v358 = vld [vmem:[%s331 + $0x2c] sm:$0xf]
      %v359 = vld [vmem:[%s331 + $0x30] sm:$0xf]
      %v360 = vld [vmem:[%s331 + $0x34] sm:$0xf]
      %v361 = vld [vmem:[%s331 + $0x38] sm:$0xf]
      %v362 = vld [vmem:[%s331 + $0x3c] sm:$0xf]
      %v363 = vld [vmem:[%s331 + $0x40] sm:$0xf]
      %v364 = vld [vmem:[%s331 + $0x44] sm:$0xf]
      %v365 = vld [vmem:[%s331 + $0x48] sm:$0xf]
      %v366 = vld [vmem:[%s331 + $0x4c] sm:$0xf]
      %v367 = vld [vmem:[%s331 + $0x50] sm:$0xf]
      %v368 = vld [vmem:[%s331 + $0x54] sm:$0xf]
      %v369 = vld [vmem:[%s331 + $0x58] sm:$0xf]
      %v370 = vld [vmem:[%s331 + $0x5c] sm:$0xf]
      %v371 = vld [vmem:[%s331 + $0x60] sm:$0xf]
      %v372 = vld [vmem:[%s331 + $0x64] sm:$0xf]
      %v373 = vld [vmem:[%s337] sm:$0x3]
      %v374 = vld [vmem:[%s2] sm:$0x1]
      %v376 = vperm.slane %v374, 0
      %v404 = vunpack.c.l.b16 %v347
      %v405 = vunpack.c.l.b16 %v348
      %v406 = vunpack.c.l.b16 %v349
      %v407 = vunpack.c.l.b16 %v350
      %v408 = vunpack.c.l.b16 %v351
      %v409 = vunpack.c.l.b16 %v352
      %v410 = vunpack.c.l.b16 %v353
      %v411 = vunpack.c.l.b16 %v354
      %v412 = vunpack.c.l.b16 %v355
      %v413 = vunpack.c.l.b16 %v356
      %v414 = vunpack.c.l.b16 %v357
      %v415 = vunpack.c.l.b16 %v358
      %v416 = vunpack.c.l.b16 %v359
      %v417 = vunpack.c.l.b16 %v360
      %v418 = vunpack.c.l.b16 %v361
      %v419 = vunpack.c.l.b16 %v362
      %v420 = vunpack.c.l.b16 %v363
      %v421 = vunpack.c.l.b16 %v364
      %v422 = vunpack.c.l.b16 %v365
      %v423 = vunpack.c.l.b16 %v366
      %v424 = vunpack.c.l.b16 %v367
      %v425 = vunpack.c.l.b16 %v368
      %v426 = vunpack.c.l.b16 %v369
      %v427 = vunpack.c.l.b16 %v370
      %v428 = vunpack.c.l.b16 %v371
      %v429 = vunpack.c.l.b16 %v372
      %v430 = vpack.c.b16 %v405, %v404
      %v431 = vpack.c.b16 %v407, %v406
      %v432 = vpack.c.b16 %v409, %v408
      %v433 = vpack.c.b16 %v411, %v410
      %v434 = vpack.c.b16 %v413, %v412
      %v435 = vpack.c.b16 %v415, %v414
      %v436 = vpack.c.b16 %v417, %v416
      %v437 = vpack.c.b16 %v419, %v418
      %v438 = vpack.c.b16 %v421, %v420
      %v439 = vpack.c.b16 %v423, %v422
      %v440 = vpack.c.b16 %v425, %v424
      %v441 = vpack.c.b16 %v427, %v426
      %v442 = vpack.c.b16 %v429, %v428
      %vm443 = vcmask 23552
      %v445 = vsel %vm443, %v430, 0
      %v448 = vsel %vm443, %v431, 0
      %v451 = vsel %vm443, %v432, 0
      %v454 = vsel %vm443, %v433, 0
      %v457 = vsel %vm443, %v434, 0
      %v460 = vsel %vm443, %v435, 0
      %v463 = vsel %vm443, %v436, 0
      %v466 = vsel %vm443, %v437, 0
      %v469 = vsel %vm443, %v438, 0
      %v472 = vsel %vm443, %v439, 0
      %v475 = vsel %vm443, %v440, 0
      %v478 = vsel %vm443, %v441, 0
      %v481 = vsel %vm443, %v442, 0
      %vm483 = vcmask 1040384
      %vm484 = vcmask 1041408
      %v485 = vsel %vm483, 4294967295, 65535
      %v486 = vsel %vm484, %v485, 0
      %v488 = vand.u32 %v373, %v486
      %490 = vmatpush.bf16.msra.mxu0 0
      %491 = vmatpush.bf16.msra.mxu0 0
      %492 = vmatpush.bf16.msra.mxu0 0
      %493 = vmatpush.bf16.msra.mxu0 0
      %494 = vmatpush.bf16.msra.mxu0 0
      %495 = vmatpush.bf16.msra.mxu0 0
      %496 = vmatpush.bf16.msra.mxu0 0
      %497 = vmatpush.bf16.msra.mxu0 %v488
      %498 = vmatmul.bf16.gmra.mxu0 %v445
      %v499 = vpop.f32.mrf.mxu0
      %v500 = vadd.f32 %v376, %v499
      %v501 = vpop.f32.mrf.mxu0
      %v502 = vadd.f32 %v376, %v501
      %503 = vmatmul.bf16.gmra.mxu0 %v448
      %v504 = vpop.f32.mrf.mxu0
      %v505 = vadd.f32 %v376, %v504
      %v506 = vpop.f32.mrf.mxu0
      %v507 = vadd.f32 %v376, %v506
      %508 = vmatmul.bf16.gmra.mxu0 %v451
      %v509 = vpop.f32.mrf.mxu0
      %v510 = vadd.f32 %v376, %v509
      %v511 = vpop.f32.mrf.mxu0
      %v512 = vadd.f32 %v376, %v511
      %513 = vmatmul.bf16.gmra.mxu0 %v454
      %v514 = vpop.f32.mrf.mxu0
      %v515 = vadd.f32 %v376, %v514
      %v516 = vpop.f32.mrf.mxu0
      %v517 = vadd.f32 %v376, %v516
      %518 = vmatmul.bf16.gmra.mxu0 %v457
      %v519 = vpop.f32.mrf.mxu0
      %v520 = vadd.f32 %v376, %v519
      %v521 = vpop.f32.mrf.mxu0
      %v522 = vadd.f32 %v376, %v521
      %523 = vmatmul.bf16.gmra.mxu0 %v460
      %v524 = vpop.f32.mrf.mxu0
      %v525 = vadd.f32 %v376, %v524
      %v526 = vpop.f32.mrf.mxu0
      %v527 = vadd.f32 %v376, %v526
      %528 = vmatmul.bf16.gmra.mxu0 %v463
      %v529 = vpop.f32.mrf.mxu0
      %v530 = vadd.f32 %v376, %v529
      %v531 = vpop.f32.mrf.mxu0
      %v532 = vadd.f32 %v376, %v531
      %533 = vmatmul.bf16.gmra.mxu0 %v466
      %v534 = vpop.f32.mrf.mxu0
      %v535 = vadd.f32 %v376, %v534
      %v536 = vpop.f32.mrf.mxu0
      %v537 = vadd.f32 %v376, %v536
      %538 = vmatmul.bf16.gmra.mxu0 %v469
      %v539 = vpop.f32.mrf.mxu0
      %v540 = vadd.f32 %v376, %v539
      %v541 = vpop.f32.mrf.mxu0
      %v542 = vadd.f32 %v376, %v541
      %543 = vmatmul.bf16.gmra.mxu0 %v472
      %v544 = vpop.f32.mrf.mxu0
      %v545 = vadd.f32 %v376, %v544
      %v546 = vpop.f32.mrf.mxu0
      %v547 = vadd.f32 %v376, %v546
      %548 = vmatmul.bf16.gmra.mxu0 %v475
      %v549 = vpop.f32.mrf.mxu0
      %v550 = vadd.f32 %v376, %v549
      %v551 = vpop.f32.mrf.mxu0
      %v552 = vadd.f32 %v376, %v551
      %553 = vmatmul.bf16.gmra.mxu0 %v478
      %v554 = vpop.f32.mrf.mxu0
      %v555 = vadd.f32 %v376, %v554
      %v556 = vpop.f32.mrf.mxu0
      %v557 = vadd.f32 %v376, %v556
      %558 = vmatmul.bf16.gmra.mxu0 %v481
      %v559 = vpop.f32.mrf.mxu0
      %v560 = vadd.f32 %v376, %v559
      %v561 = vpop.f32.mrf.mxu0
      %v562 = vadd.f32 %v376, %v561
      %563 = vdwg.mxu0
      %v564 = vmax.f32 %v500, 0.0
      %v565 = vmax.f32 %v502, 0.0
      %v566 = vmax.f32 %v505, 0.0
      %v567 = vmax.f32 %v507, 0.0
      %v568 = vmax.f32 %v510, 0.0
      %v569 = vmax.f32 %v512, 0.0
      %v570 = vmax.f32 %v515, 0.0
      %v571 = vmax.f32 %v517, 0.0
      %v572 = vmax.f32 %v520, 0.0
      %v573 = vmax.f32 %v522, 0.0
      %v574 = vmax.f32 %v525, 0.0
      %v575 = vmax.f32 %v527, 0.0
      %v576 = vmax.f32 %v530, 0.0
      %v577 = vmax.f32 %v532, 0.0
      %v578 = vmax.f32 %v535, 0.0
      %v579 = vmax.f32 %v537, 0.0
      %v580 = vmax.f32 %v540, 0.0
      %v581 = vmax.f32 %v542, 0.0
      %v582 = vmax.f32 %v545, 0.0
      %v583 = vmax.f32 %v547, 0.0
      %v584 = vmax.f32 %v550, 0.0
      %v585 = vmax.f32 %v552, 0.0
      %v586 = vmax.f32 %v555, 0.0
      %v587 = vmax.f32 %v557, 0.0
      %v588 = vmax.f32 %v560, 0.0
      %v589 = vmax.f32 %v562, 0.0
      %v590 = vpack.c.bf16 %v565, %v564
      %v591 = vpack.c.bf16 %v567, %v566
      %v592 = vpack.c.bf16 %v569, %v568
      %v593 = vpack.c.bf16 %v571, %v570
      %v594 = vpack.c.bf16 %v573, %v572
      %v595 = vpack.c.bf16 %v575, %v574
      %v596 = vpack.c.bf16 %v577, %v576
      %v597 = vpack.c.bf16 %v579, %v578
      %v598 = vpack.c.bf16 %v581, %v580
      %v599 = vpack.c.bf16 %v583, %v582
      %v600 = vpack.c.bf16 %v585, %v584
      %v601 = vpack.c.bf16 %v587, %v586
      %v602 = vpack.c.bf16 %v589, %v588
      %v603 = vld [vmem:[%s3] sm:$0xf]
      %v604 = vld [vmem:[%s3 + $0x4] sm:$0xf]
      %v605 = vld [vmem:[%s3 + $0x8] sm:$0xf]
      %v606 = vld [vmem:[%s3 + $0xc] sm:$0xf]
      %v607 = vld [vmem:[%s3 + $0x10] sm:$0xf]
      %v608 = vld [vmem:[%s3 + $0x14] sm:$0xf]
      %v609 = vld [vmem:[%s3 + $0x18] sm:$0xf]
      %v610 = vld [vmem:[%s3 + $0x1c] sm:$0xf]
      %v611 = vld [vmem:[%s4] sm:$0x1]
      %v613 = vperm.slane %v611, 0
      %v623 = vunpack.c.l.b16 %v603
      %v624 = vunpack.c.l.b16 %v604
      %v625 = vunpack.c.l.b16 %v605
      %v626 = vunpack.c.l.b16 %v606
      %v627 = vunpack.c.l.b16 %v607
      %v628 = vunpack.c.l.b16 %v608
      %v629 = vunpack.c.l.b16 %v609
      %v630 = vunpack.c.l.b16 %v610
      %v631 = vpack.c.b16 %v624, %v623
      %v632 = vpack.c.b16 %v626, %v625
      %v633 = vpack.c.b16 %v628, %v627
      %v634 = vpack.c.b16 %v630, %v629
      %vm639 = vcmask 523264
      %v641 = vsel %vm639, %v590, 0
      %v644 = vsel %vm639, %v591, 0
      %v647 = vsel %vm639, %v592, 0
      %v650 = vsel %vm639, %v593, 0
      %v653 = vsel %vm639, %v594, 0
      %v656 = vsel %vm639, %v595, 0
      %v659 = vsel %vm639, %v596, 0
      %v662 = vsel %vm639, %v597, 0
      %v665 = vsel %vm639, %v598, 0
      %v668 = vsel %vm639, %v599, 0
      %v671 = vsel %vm639, %v600, 0
      %v674 = vsel %vm639, %v601, 0
      %v677 = vsel %vm639, %v602, 0
      %679 = vmatpush.bf16.msra.mxu0 0
      %680 = vmatpush.bf16.msra.mxu0 0
      %681 = vmatpush.bf16.msra.mxu0 0
      %682 = vmatpush.bf16.msra.mxu0 0
      %683 = vmatpush.bf16.msra.mxu0 %v634
      %684 = vmatpush.bf16.msra.mxu0 %v633
      %685 = vmatpush.bf16.msra.mxu0 %v632
      %686 = vmatpush.bf16.msra.mxu0 %v631
      %687 = vmatmul.bf16.gmra.mxu0 %v641
      %v688 = vpop.f32.mrf.mxu0
      %v689 = vadd.f32 %v613, %v688
      %v690 = vpop.f32.mrf.mxu0
      %v691 = vadd.f32 %v613, %v690
      %692 = vmatmul.bf16.gmra.mxu0 %v644
      %v693 = vpop.f32.mrf.mxu0
      %v694 = vadd.f32 %v613, %v693
      %v695 = vpop.f32.mrf.mxu0
      %v696 = vadd.f32 %v613, %v695
      %697 = vmatmul.bf16.gmra.mxu0 %v647
      %v698 = vpop.f32.mrf.mxu0
      %v699 = vadd.f32 %v613, %v698
      %v700 = vpop.f32.mrf.mxu0
      %v701 = vadd.f32 %v613, %v700
      %702 = vmatmul.bf16.gmra.mxu0 %v650
      %v703 = vpop.f32.mrf.mxu0
      %v704 = vadd.f32 %v613, %v703
      %v705 = vpop.f32.mrf.mxu0
      %v706 = vadd.f32 %v613, %v705
      %707 = vmatmul.bf16.gmra.mxu0 %v653
      %v708 = vpop.f32.mrf.mxu0
      %v709 = vadd.f32 %v613, %v708
      %v710 = vpop.f32.mrf.mxu0
      %v711 = vadd.f32 %v613, %v710
      %712 = vmatmul.bf16.gmra.mxu0 %v656
      %v713 = vpop.f32.mrf.mxu0
      %v714 = vadd.f32 %v613, %v713
      %v715 = vpop.f32.mrf.mxu0
      %v716 = vadd.f32 %v613, %v715
      %717 = vmatmul.bf16.gmra.mxu0 %v659
      %v718 = vpop.f32.mrf.mxu0
      %v719 = vadd.f32 %v613, %v718
      %v720 = vpop.f32.mrf.mxu0
      %v721 = vadd.f32 %v613, %v720
      %722 = vmatmul.bf16.gmra.mxu0 %v662
      %v723 = vpop.f32.mrf.mxu0
      %v724 = vadd.f32 %v613, %v723
      %v725 = vpop.f32.mrf.mxu0
      %v726 = vadd.f32 %v613, %v725
      %727 = vmatmul.bf16.gmra.mxu0 %v665
      %v728 = vpop.f32.mrf.mxu0
      %v729 = vadd.f32 %v613, %v728
      %v730 = vpop.f32.mrf.mxu0
      %v731 = vadd.f32 %v613, %v730
      %732 = vmatmul.bf16.gmra.mxu0 %v668
      %v733 = vpop.f32.mrf.mxu0
      %v734 = vadd.f32 %v613, %v733
      %v735 = vpop.f32.mrf.mxu0
      %v736 = vadd.f32 %v613, %v735
      %737 = vmatmul.bf16.gmra.mxu0 %v671
      %v738 = vpop.f32.mrf.mxu0
      %v739 = vadd.f32 %v613, %v738
      %v740 = vpop.f32.mrf.mxu0
      %v741 = vadd.f32 %v613, %v740
      %742 = vmatmul.bf16.gmra.mxu0 %v674
      %v743 = vpop.f32.mrf.mxu0
      %v744 = vadd.f32 %v613, %v743
      %v745 = vpop.f32.mrf.mxu0
      %v746 = vadd.f32 %v613, %v745
      %747 = vmatmul.bf16.gmra.mxu0 %v677
      %v748 = vpop.f32.mrf.mxu0
      %v749 = vadd.f32 %v613, %v748
      %v750 = vpop.f32.mrf.mxu0
      %v751 = vadd.f32 %v613, %v750
      %752 = vdwg.mxu0
      %v753 = vmax.f32 %v689, 0.0
      %v754 = vmax.f32 %v691, 0.0
      %v755 = vmax.f32 %v694, 0.0
      %v756 = vmax.f32 %v696, 0.0
      %v757 = vmax.f32 %v699, 0.0
      %v758 = vmax.f32 %v701, 0.0
      %v759 = vmax.f32 %v704, 0.0
      %v760 = vmax.f32 %v706, 0.0
      %v761 = vmax.f32 %v709, 0.0
      %v762 = vmax.f32 %v711, 0.0
      %v763 = vmax.f32 %v714, 0.0
      %v764 = vmax.f32 %v716, 0.0
      %v765 = vmax.f32 %v719, 0.0
      %v766 = vmax.f32 %v721, 0.0
      %v767 = vmax.f32 %v724, 0.0
      %v768 = vmax.f32 %v726, 0.0
      %v769 = vmax.f32 %v729, 0.0
      %v770 = vmax.f32 %v731, 0.0
      %v771 = vmax.f32 %v734, 0.0
      %v772 = vmax.f32 %v736, 0.0
      %v773 = vmax.f32 %v739, 0.0
      %v774 = vmax.f32 %v741, 0.0
      %v775 = vmax.f32 %v744, 0.0
      %v776 = vmax.f32 %v746, 0.0
      %v777 = vmax.f32 %v749, 0.0
      %v778 = vmax.f32 %v751, 0.0
      %v779 = vpack.c.bf16 %v754, %v753
      %v780 = vpack.c.bf16 %v756, %v755
      %v781 = vpack.c.bf16 %v758, %v757
      %v782 = vpack.c.bf16 %v760, %v759
      %v783 = vpack.c.bf16 %v762, %v761
      %v784 = vpack.c.bf16 %v764, %v763
      %v785 = vpack.c.bf16 %v766, %v765
      %v786 = vpack.c.bf16 %v768, %v767
      %v787 = vpack.c.bf16 %v770, %v769
      %v788 = vpack.c.bf16 %v772, %v771
      %v789 = vpack.c.bf16 %v774, %v773
      %v790 = vpack.c.bf16 %v776, %v775
      %v791 = vpack.c.bf16 %v778, %v777
      %v792 = vld [vmem:[%s5] sm:$0xff]
      %v793 = vld [vmem:[%s5 + $0x8] sm:$0xff]
      %v794 = vld [vmem:[%s5 + $0x10] sm:$0xff]
      %v795 = vld [vmem:[%s5 + $0x18] sm:$0xff]
      %v796 = vld [vmem:[%s5 + $0x20] sm:$0xff]
      %v797 = vld [vmem:[%s5 + $0x28] sm:$0xff]
      %v798 = vld [vmem:[%s5 + $0x30] sm:$0xff]
      %v799 = vld [vmem:[%s5 + $0x38] sm:$0xff]
      %v800 = vld [vmem:[%s5 + $0x40] sm:$0xff]
      %v801 = vld [vmem:[%s5 + $0x48] sm:$0xff]
      %v802 = vld [vmem:[%s5 + $0x50] sm:$0xff]
      %v803 = vld [vmem:[%s5 + $0x58] sm:$0xff]
      %v804 = vld [vmem:[%s5 + $0x60] sm:$0xff]
      %v805 = vld [vmem:[%s5 + $0x68] sm:$0xff]
      %v806 = vld [vmem:[%s5 + $0x70] sm:$0xff]
      %v807 = vld [vmem:[%s5 + $0x78] sm:$0xff]
      %v808 = vld [vmem:[%s5 + $0x80] sm:$0xff]
      %v809 = vld [vmem:[%s5 + $0x88] sm:$0xff]
      %v810 = vld [vmem:[%s5 + $0x90] sm:$0xff]
      %v811 = vld [vmem:[%s5 + $0x98] sm:$0xff]
      %v812 = vld [vmem:[%s5 + $0xa0] sm:$0xff]
      %v813 = vld [vmem:[%s5 + $0xa8] sm:$0xff]
      %v814 = vld [vmem:[%s5 + $0xb0] sm:$0xff]
      %v815 = vld [vmem:[%s5 + $0xb8] sm:$0xff]
      %v816 = vld [vmem:[%s5 + $0xc0] sm:$0xff]
      %v817 = vld [vmem:[%s5 + $0xc8] sm:$0xff]
      %v818 = vld [vmem:[%s5 + $0xd0] sm:$0xff]
      %v819 = vld [vmem:[%s5 + $0xd8] sm:$0xff]
      %v820 = vld [vmem:[%s5 + $0xe0] sm:$0xff]
      %v821 = vld [vmem:[%s5 + $0xe8] sm:$0xff]
      %v822 = vld [vmem:[%s5 + $0xf0] sm:$0xff]
      %v823 = vld [vmem:[%s5 + $0xf8] sm:$0xff]
      %v824 = vld [vmem:[%s5 + $0x100] sm:$0xff]
      %v825 = vld [vmem:[%s5 + $0x108] sm:$0xff]
      %v826 = vld [vmem:[%s5 + $0x110] sm:$0xff]
      %v827 = vld [vmem:[%s5 + $0x118] sm:$0xff]
      %v828 = vld [vmem:[%s5 + $0x120] sm:$0xff]
      %v829 = vld [vmem:[%s5 + $0x128] sm:$0xff]
      %v830 = vld [vmem:[%s5 + $0x130] sm:$0xff]
      %v831 = vld [vmem:[%s5 + $0x138] sm:$0xff]
      %v832 = vld [vmem:[%s5 + $0x140] sm:$0xff]
      %v833 = vld [vmem:[%s5 + $0x148] sm:$0xff]
      %v834 = vld [vmem:[%s5 + $0x150] sm:$0xff]
      %v835 = vld [vmem:[%s5 + $0x158] sm:$0xff]
      %v836 = vld [vmem:[%s5 + $0x160] sm:$0xff]
      %v837 = vld [vmem:[%s5 + $0x168] sm:$0xff]
      %v838 = vld [vmem:[%s5 + $0x170] sm:$0xff]
      %v839 = vld [vmem:[%s5 + $0x178] sm:$0xff]
      %v840 = vld [vmem:[%s5 + $0x180] sm:$0xff]
      %v841 = vld [vmem:[%s5 + $0x188] sm:$0xff]
      %v842 = vld [vmem:[%s5 + $0x190] sm:$0xff]
      %v843 = vld [vmem:[%s5 + $0x198] sm:$0xff]
      %v844 = vld [vmem:[%s5 + $0x1a0] sm:$0xff]
      %v845 = vld [vmem:[%s5 + $0x1a8] sm:$0xff]
      %v846 = vld [vmem:[%s5 + $0x1b0] sm:$0xff]
      %v847 = vld [vmem:[%s5 + $0x1b8] sm:$0xff]
      %v848 = vld [vmem:[%s5 + $0x1c0] sm:$0xff]
      %v849 = vld [vmem:[%s5 + $0x1c8] sm:$0xff]
      %v850 = vld [vmem:[%s5 + $0x1d0] sm:$0xff]
      %v851 = vld [vmem:[%s5 + $0x1d8] sm:$0xff]
      %v852 = vld [vmem:[%s5 + $0x1e0] sm:$0xff]
      %v853 = vld [vmem:[%s5 + $0x1e8] sm:$0xff]
      %v854 = vld [vmem:[%s5 + $0x1f0] sm:$0xff]
      %v855 = vld [vmem:[%s5 + $0x1f8] sm:$0xff]
      %v856 = vld [vmem:[%s6] sm:$0xff]
      %v858 = vperm.slane %v856, 0
      %v859 = vperm.slane %v856, 1
      %v860 = vperm.slane %v856, 2
      %v861 = vperm.slane %v856, 3
      %v862 = vperm.slane %v856, 4
      %v863 = vperm.slane %v856, 5
      %v864 = vperm.slane %v856, 6
      %v865 = vperm.slane %v856, 7
      %v938 = vunpack.c.l.b16 %v792
      %v939 = vunpack.c.h.b16 %v792
      %v940 = vunpack.c.l.b16 %v793
      %v941 = vunpack.c.h.b16 %v793
      %v942 = vunpack.c.l.b16 %v794
      %v943 = vunpack.c.h.b16 %v794
      %v944 = vunpack.c.l.b16 %v795
      %v945 = vunpack.c.h.b16 %v795
      %v946 = vunpack.c.l.b16 %v796
      %v947 = vunpack.c.h.b16 %v796
      %v948 = vunpack.c.l.b16 %v797
      %v949 = vunpack.c.h.b16 %v797
      %v950 = vunpack.c.l.b16 %v798
      %v951 = vunpack.c.h.b16 %v798
      %v952 = vunpack.c.l.b16 %v799
      %v953 = vunpack.c.h.b16 %v799
      %v954 = vunpack.c.l.b16 %v800
      %v955 = vunpack.c.h.b16 %v800
      %v956 = vunpack.c.l.b16 %v801
      %v957 = vunpack.c.h.b16 %v801
      %v958 = vunpack.c.l.b16 %v802
      %v959 = vunpack.c.h.b16 %v802
      %v960 = vunpack.c.l.b16 %v803
      %v961 = vunpack.c.h.b16 %v803
      %v962 = vunpack.c.l.b16 %v804
      %v963 = vunpack.c.h.b16 %v804
      %v964 = vunpack.c.l.b16 %v805
      %v965 = vunpack.c.h.b16 %v805
      %v966 = vunpack.c.l.b16 %v806
      %v967 = vunpack.c.h.b16 %v806
      %v968 = vunpack.c.l.b16 %v807
      %v969 = vunpack.c.h.b16 %v807
      %v970 = vunpack.c.l.b16 %v808
      %v971 = vunpack.c.h.b16 %v808
      %v972 = vunpack.c.l.b16 %v809
      %v973 = vunpack.c.h.b16 %v809
      %v974 = vunpack.c.l.b16 %v810
      %v975 = vunpack.c.h.b16 %v810
      %v976 = vunpack.c.l.b16 %v811
      %v977 = vunpack.c.h.b16 %v811
      %v978 = vunpack.c.l.b16 %v812
      %v979 = vunpack.c.h.b16 %v812
      %v980 = vunpack.c.l.b16 %v813
      %v981 = vunpack.c.h.b16 %v813
      %v982 = vunpack.c.l.b16 %v814
      %v983 = vunpack.c.h.b16 %v814
      %v984 = vunpack.c.l.b16 %v815
      %v985 = vunpack.c.h.b16 %v815
      %v986 = vunpack.c.l.b16 %v816
      %v987 = vunpack.c.h.b16 %v816
      %v988 = vunpack.c.l.b16 %v817
      %v989 = vunpack.c.h.b16 %v817
      %v990 = vunpack.c.l.b16 %v818
      %v991 = vunpack.c.h.b16 %v818
      %v992 = vunpack.c.l.b16 %v819
      %v993 = vunpack.c.h.b16 %v819
      %v994 = vunpack.c.l.b16 %v820
      %v995 = vunpack.c.h.b16 %v820
      %v996 = vunpack.c.l.b16 %v821
      %v997 = vunpack.c.h.b16 %v821
      %v998 = vunpack.c.l.b16 %v822
      %v999 = vunpack.c.h.b16 %v822
      %v1000 = vunpack.c.l.b16 %v823
      %v1001 = vunpack.c.h.b16 %v823
      %v1002 = vunpack.c.l.b16 %v824
      %v1003 = vunpack.c.h.b16 %v824
      %v1004 = vunpack.c.l.b16 %v825
      %v1005 = vunpack.c.h.b16 %v825
      %v1006 = vunpack.c.l.b16 %v826
      %v1007 = vunpack.c.h.b16 %v826
      %v1008 = vunpack.c.l.b16 %v827
      %v1009 = vunpack.c.h.b16 %v827
      %v1010 = vunpack.c.l.b16 %v828
      %v1011 = vunpack.c.h.b16 %v828
      %v1012 = vunpack.c.l.b16 %v829
      %v1013 = vunpack.c.h.b16 %v829
      %v1014 = vunpack.c.l.b16 %v830
      %v1015 = vunpack.c.h.b16 %v830
      %v1016 = vunpack.c.l.b16 %v831
      %v1017 = vunpack.c.h.b16 %v831
      %v1018 = vunpack.c.l.b16 %v832
      %v1019 = vunpack.c.h.b16 %v832
      %v1020 = vunpack.c.l.b16 %v833
      %v1021 = vunpack.c.h.b16 %v833
      %v1022 = vunpack.c.l.b16 %v834
      %v1023 = vunpack.c.h.b16 %v834
      %v1024 = vunpack.c.l.b16 %v835
      %v1025 = vunpack.c.h.b16 %v835
      %v1026 = vunpack.c.l.b16 %v836
      %v1027 = vunpack.c.h.b16 %v836
      %v1028 = vunpack.c.l.b16 %v837
      %v1029 = vunpack.c.h.b16 %v837
      %v1030 = vunpack.c.l.b16 %v838
      %v1031 = vunpack.c.h.b16 %v838
      %v1032 = vunpack.c.l.b16 %v839
      %v1033 = vunpack.c.h.b16 %v839
      %v1034 = vunpack.c.l.b16 %v840
      %v1035 = vunpack.c.h.b16 %v840
      %v1036 = vunpack.c.l.b16 %v841
      %v1037 = vunpack.c.h.b16 %v841
      %v1038 = vunpack.c.l.b16 %v842
      %v1039 = vunpack.c.h.b16 %v842
      %v1040 = vunpack.c.l.b16 %v843
      %v1041 = vunpack.c.h.b16 %v843
      %v1042 = vunpack.c.l.b16 %v844
      %v1043 = vunpack.c.h.b16 %v844
      %v1044 = vunpack.c.l.b16 %v845
      %v1045 = vunpack.c.h.b16 %v845
      %v1046 = vunpack.c.l.b16 %v846
      %v1047 = vunpack.c.h.b16 %v846
      %v1048 = vunpack.c.l.b16 %v847
      %v1049 = vunpack.c.h.b16 %v847
      %v1050 = vunpack.c.l.b16 %v848
      %v1051 = vunpack.c.h.b16 %v848
      %v1052 = vunpack.c.l.b16 %v849
      %v1053 = vunpack.c.h.b16 %v849
      %v1054 = vunpack.c.l.b16 %v850
      %v1055 = vunpack.c.h.b16 %v850
      %v1056 = vunpack.c.l.b16 %v851
      %v1057 = vunpack.c.h.b16 %v851
      %v1058 = vunpack.c.l.b16 %v852
      %v1059 = vunpack.c.h.b16 %v852
      %v1060 = vunpack.c.l.b16 %v853
      %v1061 = vunpack.c.h.b16 %v853
      %v1062 = vunpack.c.l.b16 %v854
      %v1063 = vunpack.c.h.b16 %v854
      %v1064 = vunpack.c.l.b16 %v855
      %v1065 = vunpack.c.h.b16 %v855
      %v1066 = vpack.c.b16 %v946, %v938
      %v1067 = vpack.c.b16 %v947, %v939
      %v1068 = vpack.c.b16 %v948, %v940
      %v1069 = vpack.c.b16 %v949, %v941
      %v1070 = vpack.c.b16 %v950, %v942
      %v1071 = vpack.c.b16 %v951, %v943
      %v1072 = vpack.c.b16 %v952, %v944
      %v1073 = vpack.c.b16 %v953, %v945
      %v1074 = vpack.c.b16 %v962, %v954
      %v1075 = vpack.c.b16 %v963, %v955
      %v1076 = vpack.c.b16 %v964, %v956
      %v1077 = vpack.c.b16 %v965, %v957
      %v1078 = vpack.c.b16 %v966, %v958
      %v1079 = vpack.c.b16 %v967, %v959
      %v1080 = vpack.c.b16 %v968, %v960
      %v1081 = vpack.c.b16 %v969, %v961
      %v1082 = vpack.c.b16 %v978, %v970
      %v1083 = vpack.c.b16 %v979, %v971
      %v1084 = vpack.c.b16 %v980, %v972
      %v1085 = vpack.c.b16 %v981, %v973
      %v1086 = vpack.c.b16 %v982, %v974
      %v1087 = vpack.c.b16 %v983, %v975
      %v1088 = vpack.c.b16 %v984, %v976
      %v1089 = vpack.c.b16 %v985, %v977
      %v1090 = vpack.c.b16 %v994, %v986
      %v1091 = vpack.c.b16 %v995, %v987
      %v1092 = vpack.c.b16 %v996, %v988
      %v1093 = vpack.c.b16 %v997, %v989
      %v1094 = vpack.c.b16 %v998, %v990
      %v1095 = vpack.c.b16 %v999, %v991
      %v1096 = vpack.c.b16 %v1000, %v992
      %v1097 = vpack.c.b16 %v1001, %v993
      %v1098 = vpack.c.b16 %v1010, %v1002
      %v1099 = vpack.c.b16 %v1011, %v1003
      %v1100 = vpack.c.b16 %v1012, %v1004
      %v1101 = vpack.c.b16 %v1013, %v1005
      %v1102 = vpack.c.b16 %v1014, %v1006
      %v1103 = vpack.c.b16 %v1015, %v1007
      %v1104 = vpack.c.b16 %v1016, %v1008
      %v1105 = vpack.c.b16 %v1017, %v1009
      %v1106 = vpack.c.b16 %v1026, %v1018
      %v1107 = vpack.c.b16 %v1027, %v1019
      %v1108 = vpack.c.b16 %v1028, %v1020
      %v1109 = vpack.c.b16 %v1029, %v1021
      %v1110 = vpack.c.b16 %v1030, %v1022
      %v1111 = vpack.c.b16 %v1031, %v1023
      %v1112 = vpack.c.b16 %v1032, %v1024
      %v1113 = vpack.c.b16 %v1033, %v1025
      %v1114 = vpack.c.b16 %v1042, %v1034
      %v1115 = vpack.c.b16 %v1043, %v1035
      %v1116 = vpack.c.b16 %v1044, %v1036
      %v1117 = vpack.c.b16 %v1045, %v1037
      %v1118 = vpack.c.b16 %v1046, %v1038
      %v1119 = vpack.c.b16 %v1047, %v1039
      %v1120 = vpack.c.b16 %v1048, %v1040
      %v1121 = vpack.c.b16 %v1049, %v1041
      %v1122 = vpack.c.b16 %v1058, %v1050
      %v1123 = vpack.c.b16 %v1059, %v1051
      %v1124 = vpack.c.b16 %v1060, %v1052
      %v1125 = vpack.c.b16 %v1061, %v1053
      %v1126 = vpack.c.b16 %v1062, %v1054
      %v1127 = vpack.c.b16 %v1063, %v1055
      %v1128 = vpack.c.b16 %v1064, %v1056
      %v1129 = vpack.c.b16 %v1065, %v1057
      %1194 = vmatpush.bf16.msra.mxu0 %v1122
      %1195 = vmatpush.bf16.msra.mxu0 %v1114
      %1196 = vmatpush.bf16.msra.mxu0 %v1106
      %1197 = vmatpush.bf16.msra.mxu0 %v1098
      %1198 = vmatpush.bf16.msra.mxu0 %v1090
      %1199 = vmatpush.bf16.msra.mxu0 %v1082
      %1200 = vmatpush.bf16.msra.mxu0 %v1074
      %1201 = vmatpush.bf16.msra.mxu0 %v1066
      %1202 = vmatmul.bf16.gmra.mxu0 %v779
      %v1203 = vpop.f32.mrf.mxu0
      %v1204 = vadd.f32 %v858, %v1203
      %v1205 = vpop.f32.mrf.mxu0
      %v1206 = vadd.f32 %v858, %v1205
      %1207 = vmatmul.bf16.gmra.mxu0 %v780
      %v1208 = vpop.f32.mrf.mxu0
      %v1209 = vadd.f32 %v858, %v1208
      %v1210 = vpop.f32.mrf.mxu0
      %v1211 = vadd.f32 %v858, %v1210
      %1212 = vmatmul.bf16.gmra.mxu0 %v781
      %v1213 = vpop.f32.mrf.mxu0
      %v1214 = vadd.f32 %v858, %v1213
      %v1215 = vpop.f32.mrf.mxu0
      %v1216 = vadd.f32 %v858, %v1215
      %1217 = vmatmul.bf16.gmra.mxu0 %v782
      %v1218 = vpop.f32.mrf.mxu0
      %v1219 = vadd.f32 %v858, %v1218
      %v1220 = vpop.f32.mrf.mxu0
      %v1221 = vadd.f32 %v858, %v1220
      %1222 = vmatmul.bf16.gmra.mxu0 %v783
      %v1223 = vpop.f32.mrf.mxu0
      %v1224 = vadd.f32 %v858, %v1223
      %v1225 = vpop.f32.mrf.mxu0
      %v1226 = vadd.f32 %v858, %v1225
      %1227 = vmatmul.bf16.gmra.mxu0 %v784
      %v1228 = vpop.f32.mrf.mxu0
      %v1229 = vadd.f32 %v858, %v1228
      %v1230 = vpop.f32.mrf.mxu0
      %v1231 = vadd.f32 %v858, %v1230
      %1232 = vmatmul.bf16.gmra.mxu0 %v785
      %v1233 = vpop.f32.mrf.mxu0
      %v1234 = vadd.f32 %v858, %v1233
      %v1235 = vpop.f32.mrf.mxu0
      %v1236 = vadd.f32 %v858, %v1235
      %1237 = vmatmul.bf16.gmra.mxu0 %v786
      %v1238 = vpop.f32.mrf.mxu0
      %v1239 = vadd.f32 %v858, %v1238
      %v1240 = vpop.f32.mrf.mxu0
      %v1241 = vadd.f32 %v858, %v1240
      %1242 = vmatmul.bf16.gmra.mxu0 %v787
      %v1243 = vpop.f32.mrf.mxu0
      %v1244 = vadd.f32 %v858, %v1243
      %v1245 = vpop.f32.mrf.mxu0
      %v1246 = vadd.f32 %v858, %v1245
      %1247 = vmatmul.bf16.gmra.mxu0 %v788
      %v1248 = vpop.f32.mrf.mxu0
      %v1249 = vadd.f32 %v858, %v1248
      %v1250 = vpop.f32.mrf.mxu0
      %v1251 = vadd.f32 %v858, %v1250
      %1252 = vmatmul.bf16.gmra.mxu0 %v789
      %v1253 = vpop.f32.mrf.mxu0
      %v1254 = vadd.f32 %v858, %v1253
      %v1255 = vpop.f32.mrf.mxu0
      %v1256 = vadd.f32 %v858, %v1255
      %1257 = vmatmul.bf16.gmra.mxu0 %v790
      %v1258 = vpop.f32.mrf.mxu0
      %v1259 = vadd.f32 %v858, %v1258
      %v1260 = vpop.f32.mrf.mxu0
      %v1261 = vadd.f32 %v858, %v1260
      %1262 = vmatmul.bf16.gmra.mxu0 %v791
      %v1263 = vpop.f32.mrf.mxu0
      %v1264 = vadd.f32 %v858, %v1263
      %v1265 = vpop.f32.mrf.mxu0
      %v1266 = vadd.f32 %v858, %v1265
      %1267 = vdwg.mxu0
      %1268 = vmatpush.bf16.msra.mxu0 %v1123
      %1269 = vmatpush.bf16.msra.mxu0 %v1115
      %1270 = vmatpush.bf16.msra.mxu0 %v1107
      %1271 = vmatpush.bf16.msra.mxu0 %v1099
      %1272 = vmatpush.bf16.msra.mxu0 %v1091
      %1273 = vmatpush.bf16.msra.mxu0 %v1083
      %1274 = vmatpush.bf16.msra.mxu0 %v1075
      %1275 = vmatpush.bf16.msra.mxu0 %v1067
      %1276 = vmatmul.bf16.gmra.mxu0 %v779
      %v1277 = vpop.f32.mrf.mxu0
      %v1278 = vadd.f32 %v859, %v1277
      %v1279 = vpop.f32.mrf.mxu0
      %v1280 = vadd.f32 %v859, %v1279
      %1281 = vmatmul.bf16.gmra.mxu0 %v780
      %v1282 = vpop.f32.mrf.mxu0
      %v1283 = vadd.f32 %v859, %v1282
      %v1284 = vpop.f32.mrf.mxu0
      %v1285 = vadd.f32 %v859, %v1284
      %1286 = vmatmul.bf16.gmra.mxu0 %v781
      %v1287 = vpop.f32.mrf.mxu0
      %v1288 = vadd.f32 %v859, %v1287
      %v1289 = vpop.f32.mrf.mxu0
      %v1290 = vadd.f32 %v859, %v1289
      %1291 = vmatmul.bf16.gmra.mxu0 %v782
      %v1292 = vpop.f32.mrf.mxu0
      %v1293 = vadd.f32 %v859, %v1292
      %v1294 = vpop.f32.mrf.mxu0
      %v1295 = vadd.f32 %v859, %v1294
      %1296 = vmatmul.bf16.gmra.mxu0 %v783
      %v1297 = vpop.f32.mrf.mxu0
      %v1298 = vadd.f32 %v859, %v1297
      %v1299 = vpop.f32.mrf.mxu0
      %v1300 = vadd.f32 %v859, %v1299
      %1301 = vmatmul.bf16.gmra.mxu0 %v784
      %v1302 = vpop.f32.mrf.mxu0
      %v1303 = vadd.f32 %v859, %v1302
      %v1304 = vpop.f32.mrf.mxu0
      %v1305 = vadd.f32 %v859, %v1304
      %1306 = vmatmul.bf16.gmra.mxu0 %v785
      %v1307 = vpop.f32.mrf.mxu0
      %v1308 = vadd.f32 %v859, %v1307
      %v1309 = vpop.f32.mrf.mxu0
      %v1310 = vadd.f32 %v859, %v1309
      %1311 = vmatmul.bf16.gmra.mxu0 %v786
      %v1312 = vpop.f32.mrf.mxu0
      %v1313 = vadd.f32 %v859, %v1312
      %v1314 = vpop.f32.mrf.mxu0
      %v1315 = vadd.f32 %v859, %v1314
      %1316 = vmatmul.bf16.gmra.mxu0 %v787
      %v1317 = vpop.f32.mrf.mxu0
      %v1318 = vadd.f32 %v859, %v1317
      %v1319 = vpop.f32.mrf.mxu0
      %v1320 = vadd.f32 %v859, %v1319
      %1321 = vmatmul.bf16.gmra.mxu0 %v788
      %v1322 = vpop.f32.mrf.mxu0
      %v1323 = vadd.f32 %v859, %v1322
      %v1324 = vpop.f32.mrf.mxu0
      %v1325 = vadd.f32 %v859, %v1324
      %1326 = vmatmul.bf16.gmra.mxu0 %v789
      %v1327 = vpop.f32.mrf.mxu0
      %v1328 = vadd.f32 %v859, %v1327
      %v1329 = vpop.f32.mrf.mxu0
      %v1330 = vadd.f32 %v859, %v1329
      %1331 = vmatmul.bf16.gmra.mxu0 %v790
      %v1332 = vpop.f32.mrf.mxu0
      %v1333 = vadd.f32 %v859, %v1332
      %v1334 = vpop.f32.mrf.mxu0
      %v1335 = vadd.f32 %v859, %v1334
      %1336 = vmatmul.bf16.gmra.mxu0 %v791
      %v1337 = vpop.f32.mrf.mxu0
      %v1338 = vadd.f32 %v859, %v1337
      %v1339 = vpop.f32.mrf.mxu0
      %v1340 = vadd.f32 %v859, %v1339
      %1341 = vdwg.mxu0
      %1342 = vmatpush.bf16.msra.mxu0 %v1124
      %1343 = vmatpush.bf16.msra.mxu0 %v1116
      %1344 = vmatpush.bf16.msra.mxu0 %v1108
      %1345 = vmatpush.bf16.msra.mxu0 %v1100
      %1346 = vmatpush.bf16.msra.mxu0 %v1092
      %1347 = vmatpush.bf16.msra.mxu0 %v1084
      %1348 = vmatpush.bf16.msra.mxu0 %v1076
      %1349 = vmatpush.bf16.msra.mxu0 %v1068
      %1350 = vmatmul.bf16.gmra.mxu0 %v779
      %v1351 = vpop.f32.mrf.mxu0
      %v1352 = vadd.f32 %v860, %v1351
      %v1353 = vpop.f32.mrf.mxu0
      %v1354 = vadd.f32 %v860, %v1353
      %1355 = vmatmul.bf16.gmra.mxu0 %v780
      %v1356 = vpop.f32.mrf.mxu0
      %v1357 = vadd.f32 %v860, %v1356
      %v1358 = vpop.f32.mrf.mxu0
      %v1359 = vadd.f32 %v860, %v1358
      %1360 = vmatmul.bf16.gmra.mxu0 %v781
      %v1361 = vpop.f32.mrf.mxu0
      %v1362 = vadd.f32 %v860, %v1361
      %v1363 = vpop.f32.mrf.mxu0
      %v1364 = vadd.f32 %v860, %v1363
      %1365 = vmatmul.bf16.gmra.mxu0 %v782
      %v1366 = vpop.f32.mrf.mxu0
      %v1367 = vadd.f32 %v860, %v1366
      %v1368 = vpop.f32.mrf.mxu0
      %v1369 = vadd.f32 %v860, %v1368
      %1370 = vmatmul.bf16.gmra.mxu0 %v783
      %v1371 = vpop.f32.mrf.mxu0
      %v1372 = vadd.f32 %v860, %v1371
      %v1373 = vpop.f32.mrf.mxu0
      %v1374 = vadd.f32 %v860, %v1373
      %1375 = vmatmul.bf16.gmra.mxu0 %v784
      %v1376 = vpop.f32.mrf.mxu0
      %v1377 = vadd.f32 %v860, %v1376
      %v1378 = vpop.f32.mrf.mxu0
      %v1379 = vadd.f32 %v860, %v1378
      %1380 = vmatmul.bf16.gmra.mxu0 %v785
      %v1381 = vpop.f32.mrf.mxu0
      %v1382 = vadd.f32 %v860, %v1381
      %v1383 = vpop.f32.mrf.mxu0
      %v1384 = vadd.f32 %v860, %v1383
      %1385 = vmatmul.bf16.gmra.mxu0 %v786
      %v1386 = vpop.f32.mrf.mxu0
      %v1387 = vadd.f32 %v860, %v1386
      %v1388 = vpop.f32.mrf.mxu0
      %v1389 = vadd.f32 %v860, %v1388
      %1390 = vmatmul.bf16.gmra.mxu0 %v787
      %v1391 = vpop.f32.mrf.mxu0
      %v1392 = vadd.f32 %v860, %v1391
      %v1393 = vpop.f32.mrf.mxu0
      %v1394 = vadd.f32 %v860, %v1393
      %1395 = vmatmul.bf16.gmra.mxu0 %v788
      %v1396 = vpop.f32.mrf.mxu0
      %v1397 = vadd.f32 %v860, %v1396
      %v1398 = vpop.f32.mrf.mxu0
      %v1399 = vadd.f32 %v860, %v1398
      %1400 = vmatmul.bf16.gmra.mxu0 %v789
      %v1401 = vpop.f32.mrf.mxu0
      %v1402 = vadd.f32 %v860, %v1401
      %v1403 = vpop.f32.mrf.mxu0
      %v1404 = vadd.f32 %v860, %v1403
      %1405 = vmatmul.bf16.gmra.mxu0 %v790
      %v1406 = vpop.f32.mrf.mxu0
      %v1407 = vadd.f32 %v860, %v1406
      %v1408 = vpop.f32.mrf.mxu0
      %v1409 = vadd.f32 %v860, %v1408
      %1410 = vmatmul.bf16.gmra.mxu0 %v791
      %v1411 = vpop.f32.mrf.mxu0
      %v1412 = vadd.f32 %v860, %v1411
      %v1413 = vpop.f32.mrf.mxu0
      %v1414 = vadd.f32 %v860, %v1413
      %1415 = vdwg.mxu0
      %1416 = vmatpush.bf16.msra.mxu0 %v1125
      %1417 = vmatpush.bf16.msra.mxu0 %v1117
      %1418 = vmatpush.bf16.msra.mxu0 %v1109
      %1419 = vmatpush.bf16.msra.mxu0 %v1101
      %1420 = vmatpush.bf16.msra.mxu0 %v1093
      %1421 = vmatpush.bf16.msra.mxu0 %v1085
      %1422 = vmatpush.bf16.msra.mxu0 %v1077
      %1423 = vmatpush.bf16.msra.mxu0 %v1069
      %1424 = vmatmul.bf16.gmra.mxu0 %v779
      %v1425 = vpop.f32.mrf.mxu0
      %v1426 = vadd.f32 %v861, %v1425
      %v1427 = vpop.f32.mrf.mxu0
      %v1428 = vadd.f32 %v861, %v1427
      %1429 = vmatmul.bf16.gmra.mxu0 %v780
      %v1430 = vpop.f32.mrf.mxu0
      %v1431 = vadd.f32 %v861, %v1430
      %v1432 = vpop.f32.mrf.mxu0
      %v1433 = vadd.f32 %v861, %v1432
      %1434 = vmatmul.bf16.gmra.mxu0 %v781
      %v1435 = vpop.f32.mrf.mxu0
      %v1436 = vadd.f32 %v861, %v1435
      %v1437 = vpop.f32.mrf.mxu0
      %v1438 = vadd.f32 %v861, %v1437
      %1439 = vmatmul.bf16.gmra.mxu0 %v782
      %v1440 = vpop.f32.mrf.mxu0
      %v1441 = vadd.f32 %v861, %v1440
      %v1442 = vpop.f32.mrf.mxu0
      %v1443 = vadd.f32 %v861, %v1442
      %1444 = vmatmul.bf16.gmra.mxu0 %v783
      %v1445 = vpop.f32.mrf.mxu0
      %v1446 = vadd.f32 %v861, %v1445
      %v1447 = vpop.f32.mrf.mxu0
      %v1448 = vadd.f32 %v861, %v1447
      %1449 = vmatmul.bf16.gmra.mxu0 %v784
      %v1450 = vpop.f32.mrf.mxu0
      %v1451 = vadd.f32 %v861, %v1450
      %v1452 = vpop.f32.mrf.mxu0
      %v1453 = vadd.f32 %v861, %v1452
      %1454 = vmatmul.bf16.gmra.mxu0 %v785
      %v1455 = vpop.f32.mrf.mxu0
      %v1456 = vadd.f32 %v861, %v1455
      %v1457 = vpop.f32.mrf.mxu0
      %v1458 = vadd.f32 %v861, %v1457
      %1459 = vmatmul.bf16.gmra.mxu0 %v786
      %v1460 = vpop.f32.mrf.mxu0
      %v1461 = vadd.f32 %v861, %v1460
      %v1462 = vpop.f32.mrf.mxu0
      %v1463 = vadd.f32 %v861, %v1462
      %1464 = vmatmul.bf16.gmra.mxu0 %v787
      %v1465 = vpop.f32.mrf.mxu0
      %v1466 = vadd.f32 %v861, %v1465
      %v1467 = vpop.f32.mrf.mxu0
      %v1468 = vadd.f32 %v861, %v1467
      %1469 = vmatmul.bf16.gmra.mxu0 %v788
      %v1470 = vpop.f32.mrf.mxu0
      %v1471 = vadd.f32 %v861, %v1470
      %v1472 = vpop.f32.mrf.mxu0
      %v1473 = vadd.f32 %v861, %v1472
      %1474 = vmatmul.bf16.gmra.mxu0 %v789
      %v1475 = vpop.f32.mrf.mxu0
      %v1476 = vadd.f32 %v861, %v1475
      %v1477 = vpop.f32.mrf.mxu0
      %v1478 = vadd.f32 %v861, %v1477
      %1479 = vmatmul.bf16.gmra.mxu0 %v790
      %v1480 = vpop.f32.mrf.mxu0
      %v1481 = vadd.f32 %v861, %v1480
      %v1482 = vpop.f32.mrf.mxu0
      %v1483 = vadd.f32 %v861, %v1482
      %1484 = vmatmul.bf16.gmra.mxu0 %v791
      %v1485 = vpop.f32.mrf.mxu0
      %v1486 = vadd.f32 %v861, %v1485
      %v1487 = vpop.f32.mrf.mxu0
      %v1488 = vadd.f32 %v861, %v1487
      %1489 = vdwg.mxu0
      %1490 = vmatpush.bf16.msra.mxu0 %v1126
      %1491 = vmatpush.bf16.msra.mxu0 %v1118
      %1492 = vmatpush.bf16.msra.mxu0 %v1110
      %1493 = vmatpush.bf16.msra.mxu0 %v1102
      %1494 = vmatpush.bf16.msra.mxu0 %v1094
      %1495 = vmatpush.bf16.msra.mxu0 %v1086
      %1496 = vmatpush.bf16.msra.mxu0 %v1078
      %1497 = vmatpush.bf16.msra.mxu0 %v1070
      %1498 = vmatmul.bf16.gmra.mxu0 %v779
      %v1499 = vpop.f32.mrf.mxu0
      %v1500 = vadd.f32 %v862, %v1499
      %v1501 = vpop.f32.mrf.mxu0
      %v1502 = vadd.f32 %v862, %v1501
      %1503 = vmatmul.bf16.gmra.mxu0 %v780
      %v1504 = vpop.f32.mrf.mxu0
      %v1505 = vadd.f32 %v862, %v1504
      %v1506 = vpop.f32.mrf.mxu0
      %v1507 = vadd.f32 %v862, %v1506
      %1508 = vmatmul.bf16.gmra.mxu0 %v781
      %v1509 = vpop.f32.mrf.mxu0
      %v1510 = vadd.f32 %v862, %v1509
      %v1511 = vpop.f32.mrf.mxu0
      %v1512 = vadd.f32 %v862, %v1511
      %1513 = vmatmul.bf16.gmra.mxu0 %v782
      %v1514 = vpop.f32.mrf.mxu0
      %v1515 = vadd.f32 %v862, %v1514
      %v1516 = vpop.f32.mrf.mxu0
      %v1517 = vadd.f32 %v862, %v1516
      %1518 = vmatmul.bf16.gmra.mxu0 %v783
      %v1519 = vpop.f32.mrf.mxu0
      %v1520 = vadd.f32 %v862, %v1519
      %v1521 = vpop.f32.mrf.mxu0
      %v1522 = vadd.f32 %v862, %v1521
      %1523 = vmatmul.bf16.gmra.mxu0 %v784
      %v1524 = vpop.f32.mrf.mxu0
      %v1525 = vadd.f32 %v862, %v1524
      %v1526 = vpop.f32.mrf.mxu0
      %v1527 = vadd.f32 %v862, %v1526
      %1528 = vmatmul.bf16.gmra.mxu0 %v785
      %v1529 = vpop.f32.mrf.mxu0
      %v1530 = vadd.f32 %v862, %v1529
      %v1531 = vpop.f32.mrf.mxu0
      %v1532 = vadd.f32 %v862, %v1531
      %1533 = vmatmul.bf16.gmra.mxu0 %v786
      %v1534 = vpop.f32.mrf.mxu0
      %v1535 = vadd.f32 %v862, %v1534
      %v1536 = vpop.f32.mrf.mxu0
      %v1537 = vadd.f32 %v862, %v1536
      %1538 = vmatmul.bf16.gmra.mxu0 %v787
      %v1539 = vpop.f32.mrf.mxu0
      %v1540 = vadd.f32 %v862, %v1539
      %v1541 = vpop.f32.mrf.mxu0
      %v1542 = vadd.f32 %v862, %v1541
      %1543 = vmatmul.bf16.gmra.mxu0 %v788
      %v1544 = vpop.f32.mrf.mxu0
      %v1545 = vadd.f32 %v862, %v1544
      %v1546 = vpop.f32.mrf.mxu0
      %v1547 = vadd.f32 %v862, %v1546
      %1548 = vmatmul.bf16.gmra.mxu0 %v789
      %v1549 = vpop.f32.mrf.mxu0
      %v1550 = vadd.f32 %v862, %v1549
      %v1551 = vpop.f32.mrf.mxu0
      %v1552 = vadd.f32 %v862, %v1551
      %1553 = vmatmul.bf16.gmra.mxu0 %v790
      %v1554 = vpop.f32.mrf.mxu0
      %v1555 = vadd.f32 %v862, %v1554
      %v1556 = vpop.f32.mrf.mxu0
      %v1557 = vadd.f32 %v862, %v1556
      %1558 = vmatmul.bf16.gmra.mxu0 %v791
      %v1559 = vpop.f32.mrf.mxu0
      %v1560 = vadd.f32 %v862, %v1559
      %v1561 = vpop.f32.mrf.mxu0
      %v1562 = vadd.f32 %v862, %v1561
      %1563 = vdwg.mxu0
      %1564 = vmatpush.bf16.msra.mxu0 %v1127
      %1565 = vmatpush.bf16.msra.mxu0 %v1119
      %1566 = vmatpush.bf16.msra.mxu0 %v1111
      %1567 = vmatpush.bf16.msra.mxu0 %v1103
      %1568 = vmatpush.bf16.msra.mxu0 %v1095
      %1569 = vmatpush.bf16.msra.mxu0 %v1087
      %1570 = vmatpush.bf16.msra.mxu0 %v1079
      %1571 = vmatpush.bf16.msra.mxu0 %v1071
      %1572 = vmatmul.bf16.gmra.mxu0 %v779
      %v1573 = vpop.f32.mrf.mxu0
      %v1574 = vadd.f32 %v863, %v1573
      %v1575 = vpop.f32.mrf.mxu0
      %v1576 = vadd.f32 %v863, %v1575
      %1577 = vmatmul.bf16.gmra.mxu0 %v780
      %v1578 = vpop.f32.mrf.mxu0
      %v1579 = vadd.f32 %v863, %v1578
      %v1580 = vpop.f32.mrf.mxu0
      %v1581 = vadd.f32 %v863, %v1580
      %1582 = vmatmul.bf16.gmra.mxu0 %v781
      %v1583 = vpop.f32.mrf.mxu0
      %v1584 = vadd.f32 %v863, %v1583
      %v1585 = vpop.f32.mrf.mxu0
      %v1586 = vadd.f32 %v863, %v1585
      %1587 = vmatmul.bf16.gmra.mxu0 %v782
      %v1588 = vpop.f32.mrf.mxu0
      %v1589 = vadd.f32 %v863, %v1588
      %v1590 = vpop.f32.mrf.mxu0
      %v1591 = vadd.f32 %v863, %v1590
      %1592 = vmatmul.bf16.gmra.mxu0 %v783
      %v1593 = vpop.f32.mrf.mxu0
      %v1594 = vadd.f32 %v863, %v1593
      %v1595 = vpop.f32.mrf.mxu0
      %v1596 = vadd.f32 %v863, %v1595
      %1597 = vmatmul.bf16.gmra.mxu0 %v784
      %v1598 = vpop.f32.mrf.mxu0
      %v1599 = vadd.f32 %v863, %v1598
      %v1600 = vpop.f32.mrf.mxu0
      %v1601 = vadd.f32 %v863, %v1600
      %1602 = vmatmul.bf16.gmra.mxu0 %v785
      %v1603 = vpop.f32.mrf.mxu0
      %v1604 = vadd.f32 %v863, %v1603
      %v1605 = vpop.f32.mrf.mxu0
      %v1606 = vadd.f32 %v863, %v1605
      %1607 = vmatmul.bf16.gmra.mxu0 %v786
      %v1608 = vpop.f32.mrf.mxu0
      %v1609 = vadd.f32 %v863, %v1608
      %v1610 = vpop.f32.mrf.mxu0
      %v1611 = vadd.f32 %v863, %v1610
      %1612 = vmatmul.bf16.gmra.mxu0 %v787
      %v1613 = vpop.f32.mrf.mxu0
      %v1614 = vadd.f32 %v863, %v1613
      %v1615 = vpop.f32.mrf.mxu0
      %v1616 = vadd.f32 %v863, %v1615
      %1617 = vmatmul.bf16.gmra.mxu0 %v788
      %v1618 = vpop.f32.mrf.mxu0
      %v1619 = vadd.f32 %v863, %v1618
      %v1620 = vpop.f32.mrf.mxu0
      %v1621 = vadd.f32 %v863, %v1620
      %1622 = vmatmul.bf16.gmra.mxu0 %v789
      %v1623 = vpop.f32.mrf.mxu0
      %v1624 = vadd.f32 %v863, %v1623
      %v1625 = vpop.f32.mrf.mxu0
      %v1626 = vadd.f32 %v863, %v1625
      %1627 = vmatmul.bf16.gmra.mxu0 %v790
      %v1628 = vpop.f32.mrf.mxu0
      %v1629 = vadd.f32 %v863, %v1628
      %v1630 = vpop.f32.mrf.mxu0
      %v1631 = vadd.f32 %v863, %v1630
      %1632 = vmatmul.bf16.gmra.mxu0 %v791
      %v1633 = vpop.f32.mrf.mxu0
      %v1634 = vadd.f32 %v863, %v1633
      %v1635 = vpop.f32.mrf.mxu0
      %v1636 = vadd.f32 %v863, %v1635
      %1637 = vdwg.mxu0
      %1638 = vmatpush.bf16.msra.mxu0 %v1128
      %1639 = vmatpush.bf16.msra.mxu0 %v1120
      %1640 = vmatpush.bf16.msra.mxu0 %v1112
      %1641 = vmatpush.bf16.msra.mxu0 %v1104
      %1642 = vmatpush.bf16.msra.mxu0 %v1096
      %1643 = vmatpush.bf16.msra.mxu0 %v1088
      %1644 = vmatpush.bf16.msra.mxu0 %v1080
      %1645 = vmatpush.bf16.msra.mxu0 %v1072
      %1646 = vmatmul.bf16.gmra.mxu0 %v779
      %v1647 = vpop.f32.mrf.mxu0
      %v1648 = vadd.f32 %v864, %v1647
      %v1649 = vpop.f32.mrf.mxu0
      %v1650 = vadd.f32 %v864, %v1649
      %1651 = vmatmul.bf16.gmra.mxu0 %v780
      %v1652 = vpop.f32.mrf.mxu0
      %v1653 = vadd.f32 %v864, %v1652
      %v1654 = vpop.f32.mrf.mxu0
      %v1655 = vadd.f32 %v864, %v1654
      %1656 = vmatmul.bf16.gmra.mxu0 %v781
      %v1657 = vpop.f32.mrf.mxu0
      %v1658 = vadd.f32 %v864, %v1657
      %v1659 = vpop.f32.mrf.mxu0
      %v1660 = vadd.f32 %v864, %v1659
      %1661 = vmatmul.bf16.gmra.mxu0 %v782
      %v1662 = vpop.f32.mrf.mxu0
      %v1663 = vadd.f32 %v864, %v1662
      %v1664 = vpop.f32.mrf.mxu0
      %v1665 = vadd.f32 %v864, %v1664
      %1666 = vmatmul.bf16.gmra.mxu0 %v783
      %v1667 = vpop.f32.mrf.mxu0
      %v1668 = vadd.f32 %v864, %v1667
      %v1669 = vpop.f32.mrf.mxu0
      %v1670 = vadd.f32 %v864, %v1669
      %1671 = vmatmul.bf16.gmra.mxu0 %v784
      %v1672 = vpop.f32.mrf.mxu0
      %v1673 = vadd.f32 %v864, %v1672
      %v1674 = vpop.f32.mrf.mxu0
      %v1675 = vadd.f32 %v864, %v1674
      %1676 = vmatmul.bf16.gmra.mxu0 %v785
      %v1677 = vpop.f32.mrf.mxu0
      %v1678 = vadd.f32 %v864, %v1677
      %v1679 = vpop.f32.mrf.mxu0
      %v1680 = vadd.f32 %v864, %v1679
      %1681 = vmatmul.bf16.gmra.mxu0 %v786
      %v1682 = vpop.f32.mrf.mxu0
      %v1683 = vadd.f32 %v864, %v1682
      %v1684 = vpop.f32.mrf.mxu0
      %v1685 = vadd.f32 %v864, %v1684
      %1686 = vmatmul.bf16.gmra.mxu0 %v787
      %v1687 = vpop.f32.mrf.mxu0
      %v1688 = vadd.f32 %v864, %v1687
      %v1689 = vpop.f32.mrf.mxu0
      %v1690 = vadd.f32 %v864, %v1689
      %1691 = vmatmul.bf16.gmra.mxu0 %v788
      %v1692 = vpop.f32.mrf.mxu0
      %v1693 = vadd.f32 %v864, %v1692
      %v1694 = vpop.f32.mrf.mxu0
      %v1695 = vadd.f32 %v864, %v1694
      %1696 = vmatmul.bf16.gmra.mxu0 %v789
      %v1697 = vpop.f32.mrf.mxu0
      %v1698 = vadd.f32 %v864, %v1697
      %v1699 = vpop.f32.mrf.mxu0
      %v1700 = vadd.f32 %v864, %v1699
      %1701 = vmatmul.bf16.gmra.mxu0 %v790
      %v1702 = vpop.f32.mrf.mxu0
      %v1703 = vadd.f32 %v864, %v1702
      %v1704 = vpop.f32.mrf.mxu0
      %v1705 = vadd.f32 %v864, %v1704
      %1706 = vmatmul.bf16.gmra.mxu0 %v791
      %v1707 = vpop.f32.mrf.mxu0
      %v1708 = vadd.f32 %v864, %v1707
      %v1709 = vpop.f32.mrf.mxu0
      %v1710 = vadd.f32 %v864, %v1709
      %1711 = vdwg.mxu0
      %1712 = vmatpush.bf16.msra.mxu0 %v1129
      %1713 = vmatpush.bf16.msra.mxu0 %v1121
      %1714 = vmatpush.bf16.msra.mxu0 %v1113
      %1715 = vmatpush.bf16.msra.mxu0 %v1105
      %1716 = vmatpush.bf16.msra.mxu0 %v1097
      %1717 = vmatpush.bf16.msra.mxu0 %v1089
      %1718 = vmatpush.bf16.msra.mxu0 %v1081
      %1719 = vmatpush.bf16.msra.mxu0 %v1073
      %1720 = vmatmul.bf16.gmra.mxu0 %v779
      %v1721 = vpop.f32.mrf.mxu0
      %v1722 = vadd.f32 %v865, %v1721
      %v1723 = vpop.f32.mrf.mxu0
      %v1724 = vadd.f32 %v865, %v1723
      %1725 = vmatmul.bf16.gmra.mxu0 %v780
      %v1726 = vpop.f32.mrf.mxu0
      %v1727 = vadd.f32 %v865, %v1726
      %v1728 = vpop.f32.mrf.mxu0
      %v1729 = vadd.f32 %v865, %v1728
      %1730 = vmatmul.bf16.gmra.mxu0 %v781
      %v1731 = vpop.f32.mrf.mxu0
      %v1732 = vadd.f32 %v865, %v1731
      %v1733 = vpop.f32.mrf.mxu0
      %v1734 = vadd.f32 %v865, %v1733
      %1735 = vmatmul.bf16.gmra.mxu0 %v782
      %v1736 = vpop.f32.mrf.mxu0
      %v1737 = vadd.f32 %v865, %v1736
      %v1738 = vpop.f32.mrf.mxu0
      %v1739 = vadd.f32 %v865, %v1738
      %1740 = vmatmul.bf16.gmra.mxu0 %v783
      %v1741 = vpop.f32.mrf.mxu0
      %v1742 = vadd.f32 %v865, %v1741
      %v1743 = vpop.f32.mrf.mxu0
      %v1744 = vadd.f32 %v865, %v1743
      %1745 = vmatmul.bf16.gmra.mxu0 %v784
      %v1746 = vpop.f32.mrf.mxu0
      %v1747 = vadd.f32 %v865, %v1746
      %v1748 = vpop.f32.mrf.mxu0
      %v1749 = vadd.f32 %v865, %v1748
      %1750 = vmatmul.bf16.gmra.mxu0 %v785
      %v1751 = vpop.f32.mrf.mxu0
      %v1752 = vadd.f32 %v865, %v1751
      %v1753 = vpop.f32.mrf.mxu0
      %v1754 = vadd.f32 %v865, %v1753
      %1755 = vmatmul.bf16.gmra.mxu0 %v786
      %v1756 = vpop.f32.mrf.mxu0
      %v1757 = vadd.f32 %v865, %v1756
      %v1758 = vpop.f32.mrf.mxu0
      %v1759 = vadd.f32 %v865, %v1758
      %1760 = vmatmul.bf16.gmra.mxu0 %v787
      %v1761 = vpop.f32.mrf.mxu0
      %v1762 = vadd.f32 %v865, %v1761
      %v1763 = vpop.f32.mrf.mxu0
      %v1764 = vadd.f32 %v865, %v1763
      %1765 = vmatmul.bf16.gmra.mxu0 %v788
      %v1766 = vpop.f32.mrf.mxu0
      %v1767 = vadd.f32 %v865, %v1766
      %v1768 = vpop.f32.mrf.mxu0
      %v1769 = vadd.f32 %v865, %v1768
      %1770 = vmatmul.bf16.gmra.mxu0 %v789
      %v1771 = vpop.f32.mrf.mxu0
      %v1772 = vadd.f32 %v865, %v1771
      %v1773 = vpop.f32.mrf.mxu0
      %v1774 = vadd.f32 %v865, %v1773
      %1775 = vmatmul.bf16.gmra.mxu0 %v790
      %v1776 = vpop.f32.mrf.mxu0
      %v1777 = vadd.f32 %v865, %v1776
      %v1778 = vpop.f32.mrf.mxu0
      %v1779 = vadd.f32 %v865, %v1778
      %1780 = vmatmul.bf16.gmra.mxu0 %v791
      %v1781 = vpop.f32.mrf.mxu0
      %v1782 = vadd.f32 %v865, %v1781
      %v1783 = vpop.f32.mrf.mxu0
      %v1784 = vadd.f32 %v865, %v1783
      %1785 = vdwg.mxu0
      %v1786 = vmax.f32 %v1204, %v1206
      %v1787 = vmax.f32 %v1786, %v1209
      %v1788 = vmax.f32 %v1787, %v1211
      %v1789 = vmax.f32 %v1788, %v1214
      %v1790 = vmax.f32 %v1789, %v1216
      %v1791 = vmax.f32 %v1790, %v1219
      %v1792 = vmax.f32 %v1791, %v1221
      %v1793 = vmax.f32 %v1792, %v1224
      %v1794 = vmax.f32 %v1793, %v1226
      %v1795 = vmax.f32 %v1794, %v1229
      %v1796 = vmax.f32 %v1795, %v1231
      %v1797 = vmax.f32 %v1796, %v1234
      %v1798 = vmax.f32 %v1797, %v1236
      %v1799 = vmax.f32 %v1798, %v1239
      %v1800 = vmax.f32 %v1799, %v1241
      %v1801 = vmax.f32 %v1800, %v1244
      %v1802 = vmax.f32 %v1801, %v1246
      %v1803 = vmax.f32 %v1802, %v1249
      %v1804 = vmax.f32 %v1803, %v1251
      %v1805 = vmax.f32 %v1804, %v1254
      %v1806 = vmax.f32 %v1805, %v1256
      %v1807 = vmax.f32 %v1806, %v1259
      %v1808 = vmax.f32 %v1807, %v1261
      %v1809 = vmax.f32 %v1808, %v1264
      %v1810 = vmax.f32 %v1809, %v1266
      %v1811 = vrot.slane %v1810, 4
      %v1812 = vmax.f32 %v1810, %v1811
      %v1813 = vrot.slane %v1812, 2
      %v1814 = vmax.f32 %v1812, %v1813
      %v1815 = vrot.slane %v1814, 1
      %v1816 = vmax.f32 %v1814, %v1815
      %v1817 = vmax.f32 %v1278, %v1280
      %v1818 = vmax.f32 %v1817, %v1283
      %v1819 = vmax.f32 %v1818, %v1285
      %v1820 = vmax.f32 %v1819, %v1288
      %v1821 = vmax.f32 %v1820, %v1290
      %v1822 = vmax.f32 %v1821, %v1293
      %v1823 = vmax.f32 %v1822, %v1295
      %v1824 = vmax.f32 %v1823, %v1298
      %v1825 = vmax.f32 %v1824, %v1300
      %v1826 = vmax.f32 %v1825, %v1303
      %v1827 = vmax.f32 %v1826, %v1305
      %v1828 = vmax.f32 %v1827, %v1308
      %v1829 = vmax.f32 %v1828, %v1310
      %v1830 = vmax.f32 %v1829, %v1313
      %v1831 = vmax.f32 %v1830, %v1315
      %v1832 = vmax.f32 %v1831, %v1318
      %v1833 = vmax.f32 %v1832, %v1320
      %v1834 = vmax.f32 %v1833, %v1323
      %v1835 = vmax.f32 %v1834, %v1325
      %v1836 = vmax.f32 %v1835, %v1328
      %v1837 = vmax.f32 %v1836, %v1330
      %v1838 = vmax.f32 %v1837, %v1333
      %v1839 = vmax.f32 %v1838, %v1335
      %v1840 = vmax.f32 %v1839, %v1338
      %v1841 = vmax.f32 %v1840, %v1340
      %v1842 = vrot.slane %v1841, 4
      %v1843 = vmax.f32 %v1841, %v1842
      %v1844 = vrot.slane %v1843, 2
      %v1845 = vmax.f32 %v1843, %v1844
      %v1846 = vrot.slane %v1845, 1
      %v1847 = vmax.f32 %v1845, %v1846
      %v1848 = vmax.f32 %v1352, %v1354
      %v1849 = vmax.f32 %v1848, %v1357
      %v1850 = vmax.f32 %v1849, %v1359
      %v1851 = vmax.f32 %v1850, %v1362
      %v1852 = vmax.f32 %v1851, %v1364
      %v1853 = vmax.f32 %v1852, %v1367
      %v1854 = vmax.f32 %v1853, %v1369
      %v1855 = vmax.f32 %v1854, %v1372
      %v1856 = vmax.f32 %v1855, %v1374
      %v1857 = vmax.f32 %v1856, %v1377
      %v1858 = vmax.f32 %v1857, %v1379
      %v1859 = vmax.f32 %v1858, %v1382
      %v1860 = vmax.f32 %v1859, %v1384
      %v1861 = vmax.f32 %v1860, %v1387
      %v1862 = vmax.f32 %v1861, %v1389
      %v1863 = vmax.f32 %v1862, %v1392
      %v1864 = vmax.f32 %v1863, %v1394
      %v1865 = vmax.f32 %v1864, %v1397
      %v1866 = vmax.f32 %v1865, %v1399
      %v1867 = vmax.f32 %v1866, %v1402
      %v1868 = vmax.f32 %v1867, %v1404
      %v1869 = vmax.f32 %v1868, %v1407
      %v1870 = vmax.f32 %v1869, %v1409
      %v1871 = vmax.f32 %v1870, %v1412
      %v1872 = vmax.f32 %v1871, %v1414
      %v1873 = vrot.slane %v1872, 4
      %v1874 = vmax.f32 %v1872, %v1873
      %v1875 = vrot.slane %v1874, 2
      %v1876 = vmax.f32 %v1874, %v1875
      %v1877 = vrot.slane %v1876, 1
      %v1878 = vmax.f32 %v1876, %v1877
      %v1879 = vmax.f32 %v1426, %v1428
      %v1880 = vmax.f32 %v1879, %v1431
      %v1881 = vmax.f32 %v1880, %v1433
      %v1882 = vmax.f32 %v1881, %v1436
      %v1883 = vmax.f32 %v1882, %v1438
      %v1884 = vmax.f32 %v1883, %v1441
      %v1885 = vmax.f32 %v1884, %v1443
      %v1886 = vmax.f32 %v1885, %v1446
      %v1887 = vmax.f32 %v1886, %v1448
      %v1888 = vmax.f32 %v1887, %v1451
      %v1889 = vmax.f32 %v1888, %v1453
      %v1890 = vmax.f32 %v1889, %v1456
      %v1891 = vmax.f32 %v1890, %v1458
      %v1892 = vmax.f32 %v1891, %v1461
      %v1893 = vmax.f32 %v1892, %v1463
      %v1894 = vmax.f32 %v1893, %v1466
      %v1895 = vmax.f32 %v1894, %v1468
      %v1896 = vmax.f32 %v1895, %v1471
      %v1897 = vmax.f32 %v1896, %v1473
      %v1898 = vmax.f32 %v1897, %v1476
      %v1899 = vmax.f32 %v1898, %v1478
      %v1900 = vmax.f32 %v1899, %v1481
      %v1901 = vmax.f32 %v1900, %v1483
      %v1902 = vmax.f32 %v1901, %v1486
      %v1903 = vmax.f32 %v1902, %v1488
      %v1904 = vrot.slane %v1903, 4
      %v1905 = vmax.f32 %v1903, %v1904
      %v1906 = vrot.slane %v1905, 2
      %v1907 = vmax.f32 %v1905, %v1906
      %v1908 = vrot.slane %v1907, 1
      %v1909 = vmax.f32 %v1907, %v1908
      %v1910 = vmax.f32 %v1500, %v1502
      %v1911 = vmax.f32 %v1910, %v1505
      %v1912 = vmax.f32 %v1911, %v1507
      %v1913 = vmax.f32 %v1912, %v1510
      %v1914 = vmax.f32 %v1913, %v1512
      %v1915 = vmax.f32 %v1914, %v1515
      %v1916 = vmax.f32 %v1915, %v1517
      %v1917 = vmax.f32 %v1916, %v1520
      %v1918 = vmax.f32 %v1917, %v1522
      %v1919 = vmax.f32 %v1918, %v1525
      %v1920 = vmax.f32 %v1919, %v1527
      %v1921 = vmax.f32 %v1920, %v1530
      %v1922 = vmax.f32 %v1921, %v1532
      %v1923 = vmax.f32 %v1922, %v1535
      %v1924 = vmax.f32 %v1923, %v1537
      %v1925 = vmax.f32 %v1924, %v1540
      %v1926 = vmax.f32 %v1925, %v1542
      %v1927 = vmax.f32 %v1926, %v1545
      %v1928 = vmax.f32 %v1927, %v1547
      %v1929 = vmax.f32 %v1928, %v1550
      %v1930 = vmax.f32 %v1929, %v1552
      %v1931 = vmax.f32 %v1930, %v1555
      %v1932 = vmax.f32 %v1931, %v1557
      %v1933 = vmax.f32 %v1932, %v1560
      %v1934 = vmax.f32 %v1933, %v1562
      %v1935 = vrot.slane %v1934, 4
      %v1936 = vmax.f32 %v1934, %v1935
      %v1937 = vrot.slane %v1936, 2
      %v1938 = vmax.f32 %v1936, %v1937
      %v1939 = vrot.slane %v1938, 1
      %v1940 = vmax.f32 %v1938, %v1939
      %v1941 = vmax.f32 %v1574, %v1576
      %v1942 = vmax.f32 %v1941, %v1579
      %v1943 = vmax.f32 %v1942, %v1581
      %v1944 = vmax.f32 %v1943, %v1584
      %v1945 = vmax.f32 %v1944, %v1586
      %v1946 = vmax.f32 %v1945, %v1589
      %v1947 = vmax.f32 %v1946, %v1591
      %v1948 = vmax.f32 %v1947, %v1594
      %v1949 = vmax.f32 %v1948, %v1596
      %v1950 = vmax.f32 %v1949, %v1599
      %v1951 = vmax.f32 %v1950, %v1601
      %v1952 = vmax.f32 %v1951, %v1604
      %v1953 = vmax.f32 %v1952, %v1606
      %v1954 = vmax.f32 %v1953, %v1609
      %v1955 = vmax.f32 %v1954, %v1611
      %v1956 = vmax.f32 %v1955, %v1614
      %v1957 = vmax.f32 %v1956, %v1616
      %v1958 = vmax.f32 %v1957, %v1619
      %v1959 = vmax.f32 %v1958, %v1621
      %v1960 = vmax.f32 %v1959, %v1624
      %v1961 = vmax.f32 %v1960, %v1626
      %v1962 = vmax.f32 %v1961, %v1629
      %v1963 = vmax.f32 %v1962, %v1631
      %v1964 = vmax.f32 %v1963, %v1634
      %v1965 = vmax.f32 %v1964, %v1636
      %v1966 = vrot.slane %v1965, 4
      %v1967 = vmax.f32 %v1965, %v1966
      %v1968 = vrot.slane %v1967, 2
      %v1969 = vmax.f32 %v1967, %v1968
      %v1970 = vrot.slane %v1969, 1
      %v1971 = vmax.f32 %v1969, %v1970
      %v1972 = vmax.f32 %v1648, %v1650
      %v1973 = vmax.f32 %v1972, %v1653
      %v1974 = vmax.f32 %v1973, %v1655
      %v1975 = vmax.f32 %v1974, %v1658
      %v1976 = vmax.f32 %v1975, %v1660
      %v1977 = vmax.f32 %v1976, %v1663
      %v1978 = vmax.f32 %v1977, %v1665
      %v1979 = vmax.f32 %v1978, %v1668
      %v1980 = vmax.f32 %v1979, %v1670
      %v1981 = vmax.f32 %v1980, %v1673
      %v1982 = vmax.f32 %v1981, %v1675
      %v1983 = vmax.f32 %v1982, %v1678
      %v1984 = vmax.f32 %v1983, %v1680
      %v1985 = vmax.f32 %v1984, %v1683
      %v1986 = vmax.f32 %v1985, %v1685
      %v1987 = vmax.f32 %v1986, %v1688
      %v1988 = vmax.f32 %v1987, %v1690
      %v1989 = vmax.f32 %v1988, %v1693
      %v1990 = vmax.f32 %v1989, %v1695
      %v1991 = vmax.f32 %v1990, %v1698
      %v1992 = vmax.f32 %v1991, %v1700
      %v1993 = vmax.f32 %v1992, %v1703
      %v1994 = vmax.f32 %v1993, %v1705
      %v1995 = vmax.f32 %v1994, %v1708
      %v1996 = vmax.f32 %v1995, %v1710
      %v1997 = vrot.slane %v1996, 4
      %v1998 = vmax.f32 %v1996, %v1997
      %v1999 = vrot.slane %v1998, 2
      %v2000 = vmax.f32 %v1998, %v1999
      %v2001 = vrot.slane %v2000, 1
      %v2002 = vmax.f32 %v2000, %v2001
      %v2003 = vmax.f32 %v1722, %v1724
      %v2004 = vmax.f32 %v2003, %v1727
      %v2005 = vmax.f32 %v2004, %v1729
      %v2006 = vmax.f32 %v2005, %v1732
      %v2007 = vmax.f32 %v2006, %v1734
      %v2008 = vmax.f32 %v2007, %v1737
      %v2009 = vmax.f32 %v2008, %v1739
      %v2010 = vmax.f32 %v2009, %v1742
      %v2011 = vmax.f32 %v2010, %v1744
      %v2012 = vmax.f32 %v2011, %v1747
      %v2013 = vmax.f32 %v2012, %v1749
      %v2014 = vmax.f32 %v2013, %v1752
      %v2015 = vmax.f32 %v2014, %v1754
      %v2016 = vmax.f32 %v2015, %v1757
      %v2017 = vmax.f32 %v2016, %v1759
      %v2018 = vmax.f32 %v2017, %v1762
      %v2019 = vmax.f32 %v2018, %v1764
      %v2020 = vmax.f32 %v2019, %v1767
      %v2021 = vmax.f32 %v2020, %v1769
      %v2022 = vmax.f32 %v2021, %v1772
      %v2023 = vmax.f32 %v2022, %v1774
      %v2024 = vmax.f32 %v2023, %v1777
      %v2025 = vmax.f32 %v2024, %v1779
      %v2026 = vmax.f32 %v2025, %v1782
      %v2027 = vmax.f32 %v2026, %v1784
      %v2028 = vrot.slane %v2027, 4
      %v2029 = vmax.f32 %v2027, %v2028
      %v2030 = vrot.slane %v2029, 2
      %v2031 = vmax.f32 %v2029, %v2030
      %v2032 = vrot.slane %v2031, 1
      %v2033 = vmax.f32 %v2031, %v2032
      %p2034 = scmp.eq.s32.totalorder %s25, 0
      // Predicated region
      $region49: #{pointnetfeat_forward.3} parent=47 // pred_check
        %p2035 = pneg %p2034
      $region50: #{pointnetfeat_forward.3} parent=47 // pred_check_branch
        %2037 = sbr.rel (%p2035) target = $region52
      $region51: #{pointnetfeat_forward.3} parent=47 // pred_region
        %v2046 = vrot.slane %v1847, 7
        %v2047 = vrot.slane %v1878, 6
        %v2048 = vrot.slane %v1909, 5
        %v2049 = vrot.slane %v1940, 4
        %v2050 = vrot.slane %v1971, 3
        %v2051 = vrot.slane %v2002, 2
        %v2052 = vrot.slane %v2033, 1
        %v2053 = vsel %vm483, %v1816, %v2046
        %vm2054 = vcmask 1042434
        %v2055 = vsel %vm2054, %v2047, %v2048
        %v2056 = vsel %vm484, %v2053, %v2055
        %vm2057 = vcmask 1044484
        %v2058 = vsel %vm2057, %v2049, %v2050
        %vm2059 = vcmask 1046534
        %v2060 = vsel %vm2059, %v2051, %v2052
        %vm2061 = vcmask 1045508
        %v2062 = vsel %vm2061, %v2058, %v2060
        %vm2063 = vcmask 1043456
        %v2064 = vsel %vm2063, %v2056, %v2062
        %2066 = vst [vmem:[%s345] sm:$0xff] %v2064
      $region52: #{pointnetfeat_forward.3} parent=47 // pred_fallthru
        _
      %p2067 = scmp.ne.s32.totalorder %s25, 0
      // Predicated region
      $region53: #{pointnetfeat_forward.3} parent=47 // pred_check
        %p2068 = pneg %p2067
      $region54: #{pointnetfeat_forward.3} parent=47 // pred_check_branch
        %2070 = sbr.rel (%p2068) target = $region56
      $region55: #{pointnetfeat_forward.3} parent=47 // pred_region
        %v2071 = vld [vmem:[%s345] sm:$0xff]
        %v2080 = vrot.slane %v1847, 7
        %v2081 = vrot.slane %v1878, 6
        %v2082 = vrot.slane %v1909, 5
        %v2083 = vrot.slane %v1940, 4
        %v2084 = vrot.slane %v1971, 3
        %v2085 = vrot.slane %v2002, 2
        %v2086 = vrot.slane %v2033, 1
        %v2087 = vsel %vm483, %v1816, %v2080
        %vm2088 = vcmask 1042434
        %v2089 = vsel %vm2088, %v2081, %v2082
        %v2090 = vsel %vm484, %v2087, %v2089
        %vm2091 = vcmask 1044484
        %v2092 = vsel %vm2091, %v2083, %v2084
        %vm2093 = vcmask 1046534
        %v2094 = vsel %vm2093, %v2085, %v2086
        %vm2095 = vcmask 1045508
        %v2096 = vsel %vm2095, %v2092, %v2094
        %vm2097 = vcmask 1043456
        %v2098 = vsel %vm2097, %v2090, %v2096
        %v2100 = vmax.f32 %v2071, %v2098
        %2101 = vst [vmem:[%s345] sm:$0xff] %v2100
      $region56: #{pointnetfeat_forward.3} parent=47 // pred_fallthru
        _
      %p2102 = scmp.lt.s32.totalorder %s23, 0
      %s2103 = scalar_select %p2102, %s23, 0
      %p2104 = scmp.lt.s32.totalorder %s24, 1
      %s2105 = scalar_select %p2104, %s24, 1
      %s2106 = smul.addr %s2105, 8
      %s2107 = smul.addr %s2103, 16
      %s2108 = sadd.s32 %s2106, %s2107
      %s2109 = scalar_lea.vmem %s7, %s2108
      // Predicated region
      $region57: #{pointnetfeat_forward.3} parent=47 // pred_check
        %p2110 = pneg %p218
      $region58: #{pointnetfeat_forward.3} parent=47 // pred_check_branch
        %2112 = sbr.rel (%p2110) target = $region60
      $region59: #{pointnetfeat_forward.3} parent=47 // pred_region
        _
      $region60: #{pointnetfeat_forward.3} parent=47 // pred_fallthru
        _
    $region48: #{pointnetfeat_forward.3} parent=5 // pred_fallthru
      _
    %p2113 = scmp.le.s32.totalorder 2, %s13
    // Predicated region
    $region61: #{pointnetfeat_forward.3} parent=5 // pred_check
      %p2114 = pneg %p2113
    $region62: #{pointnetfeat_forward.3} parent=5 // pred_check_branch
      %2116 = sbr.rel (%p2114) target = $region64
    $region63: #{pointnetfeat_forward.3} parent=5 // pred_region
      %s2117 = ssub.s32 %s13, 2
      // Predicated region
      $region65: #{pointnetfeat_forward.3} parent=63 // pred_check
        %p2118 = pneg %p224
      $region66: #{pointnetfeat_forward.3} parent=63 // pred_check_branch
        %2120 = sbr.rel (%p2118) target = $region68
      $region67: #{pointnetfeat_forward.3} parent=63 // pred_region
        %p2121 = scmp.lt.s32.totalorder %s26, 0
        %s2122 = scalar_select %p2121, %s26, 0
        %p2123 = scmp.lt.s32.totalorder %s27, 1
        %s2124 = scalar_select %p2123, %s27, 1
        %s2125 = smul.addr %s2124, 8
        %s2126 = smul.addr %s2122, 16
        %s2127 = sadd.s32 %s2125, %s2126
        %s2128 = scalar_lea.vmem %s7, %s2127
      $region68: #{pointnetfeat_forward.3} parent=63 // pred_fallthru
        _
    $region64: #{pointnetfeat_forward.3} parent=5 // pred_fallthru
      _
  $region6: #{pointnetfeat_forward.3} parent=0 // loop_footer
    %s17 = sadd.s32 1, %s13
  $region7: #{pointnetfeat_forward.3} parent=0 // loop_footer_branch
    %12 = sbr.rel target = $region3
  $region8: #{pointnetfeat_forward.3} parent=0 // loop_exit
    _

// kernel: pointnetfeat_forward.2
$region0: #{pointnetfeat_forward.2}
  #allocation0 [shape = 'u32[]', space=smem, size = 0x4, offset = 0x4, fixed_abs, tag = 'smem constant byte address 0x4 - core index']
  #allocation1 [shape = 'u32[72,128]{1,0:T(1,128)}', space=vmem, size = 0x9000, scoped, tag = 'internal scratch']
  %s0 = inlined_call_operand.vmem [shape: bf16[2,208,3], index: 0, kind: input, shape index: {}]
  %s1 = inlined_call_operand.vmem [shape: bf16[3,64], index: 1, kind: input, shape index: {}]
  %s2 = inlined_call_operand.hbm [shape: f32[1,64], index: 2, kind: input, shape index: {}]
  %s3 = inlined_call_operand.vmem [shape: bf16[64,128], index: 3, kind: input, shape index: {}]
  %s4 = inlined_call_operand.hbm [shape: f32[1,128], index: 4, kind: input, shape index: {}]
  %s5 = inlined_call_operand.vmem [shape: bf16[128,1024], index: 5, kind: input, shape index: {}]
  %s6 = inlined_call_operand.hbm [shape: f32[1,1024], index: 6, kind: input, shape index: {}]
  %s7 = inlined_call_operand.vmem [shape: f32[1,2,1,1024], index: 7, kind: output, shape index: {}]
  %s8 = sld [smem:[#allocation0]]
  $region81: #{pointnetfeat_forward.2} parent=0
    _
  %s10 = ssub.s32 1, %s8
  %s11 = scalar_select 0, %s10, %s8
  $region1: #{pointnetfeat_forward.2} parent=0
    #allocation2 [shape = 'u8[512]{0}', space=vmem, size = 0x400, scoped, tag = 'input window, operand 2, single buffered']
    #allocation3 [shape = 's32[2]{0}', space=sflag, size = 0x8, scoped, tag = 'scoped memory for pointnetfeat_forward.2']
    #allocation4 [shape = 'u8[512]{0}', space=vmem, size = 0x400, scoped, tag = 'input window, operand 4, single buffered']
    #allocation5 [shape = 's32[1]{0}', space=sflag, size = 0x4, scoped, tag = 'scoped memory for pointnetfeat_forward.2']
    #allocation6 [shape = 'u8[4096]{0}', space=vmem, size = 0x1000, scoped, tag = 'input window, operand 6, single buffered']
    %12 = vsyncpa [#allocation3], 0
    %13 = vsyncpa [#allocation5], 0
    loop: start=0, step=1, limit=4
    $region2: #{pointnetfeat_forward.2} parent=1 // loop_pre_header
      _
    $region3: #{pointnetfeat_forward.2} parent=1 // loop_header
      %s15 = sphi 0, %s19
      %p16 = scmp.ge.s32.totalorder %s15, 4
      %s22 = sphi 0, %s41
      %s23 = sphi 0, %s37
      %s24 = sphi 0, %s33
      %s25 = sphi 0, %s22
      %s26 = sphi 0, %s23
      %s27 = sphi 0, %s24
      %s28 = sphi 0, %s25
      %s29 = sphi 0, %s26
      %s30 = sphi 0, %s27
      %s48 = sphi 0, %s50
      %s51 = sphi 0, %s48
      %s52 = sphi 0, %s51
      %s68 = sphi 0, %s52
      %s72 = sphi 0, %s72
      %s74 = sphi 0, %s72
      %s75 = sphi 0, %s74
      %s89 = sphi 0, %s75
      %s93 = sphi 0, %s93
      %s95 = sphi 0, %s93
      %s96 = sphi 0, %s95
      %s110 = sphi 0, %s96
      %s114 = sphi 0, %s114
      %s116 = sphi 0, %s114
      %s117 = sphi 0, %s116
      %s131 = sphi 0, %s117
      %s135 = sphi 0, %s135
      %s137 = sphi 0, %s135
      %s138 = sphi 0, %s137
      %s152 = sphi 0, %s138
      %s156 = sphi 0, %s156
      %s158 = sphi 0, %s156
      %s159 = sphi 0, %s158
      %s173 = sphi 0, %s159
      %s177 = sphi 0, %s177
      %s179 = sphi 0, %s177
      %s180 = sphi 0, %s179
      %s194 = sphi 0, %s180
      %s202 = sphi 0, %s204
      %s205 = sphi 0, %s202
      %s206 = sphi 0, %s205
      %s222 = sphi 0, %s206
    $region4: #{pointnetfeat_forward.2} parent=1 // loop_header_branch
      %18 = sbr.rel (%p16) target = $region8
    $region5: #{pointnetfeat_forward.2} parent=1 // loop_body
      %s20 = ssub.s32 %s15, 1
      %s21 = ssub.s32 %s15, 2
      %s31 = sadd.s32 1, %s24
      %p32 = scmp.ge.s32.totalorder %s31, 1
      %s33 = scalar_select %p32, 0, %s31
      %s34 = sadd.s32 1, %s23
      %s35 = scalar_select %p32, %s34, %s23
      %p36 = scmp.ge.s32.totalorder %s35, 2
      %s37 = scalar_select %p36, 0, %s35
      %s38 = sadd.s32 1, %s22
      %s39 = scalar_select %p36, %s38, %s22
      %p40 = scmp.ge.s32.totalorder %s39, 1
      %s41 = scalar_select %p40, 0, %s39
      %s42 = sadd.s32 %s22, %s24
      %s43 = sadd.s32 %s41, %s33
      %s44 = ssub.s32 %s23, %s37
      %s45 = ssub.s32 %s42, %s43
      %s46 = sor.u32 %s44, %s45
      %p47 = scmp.eq.s32.totalorder %s46, 0
      %s49 = sadd.s32 %s48, 1
      %s50 = scalar_select %p47, %s48, %s49
      %p53 = pneg %p47
      %p54 = scmp.eq.s32.totalorder %s15, 1
      %p55 = por %p53, %p54
      %p56 = scmp.ne.s32.totalorder %s48, %s51
      %p57 = scmp.eq.s32.totalorder %s15, 0
      %p58 = por %p56, %p57
      %p59 = scmp.ne.s32.totalorder %s48, %s51
      %p60 = scmp.eq.s32.totalorder %s20, 1
      %p61 = por %p59, %p60
      %p62 = scmp.ne.s32.totalorder %s51, %s52
      %p63 = scmp.eq.s32.totalorder %s20, 0
      %p64 = por %p62, %p63
      %p65 = scmp.ne.s32.totalorder %s51, %s52
      %p66 = scmp.eq.s32.totalorder %s21, 1
      %p67 = por %p65, %p66
      %p69 = scmp.ne.s32.totalorder %s52, %s68
      %p70 = scmp.eq.s32.totalorder %s21, 0
      %p71 = por %p69, %p70
      %s73 = sadd.s32 %s72, 1
      %p76 = scmp.eq.s32.totalorder %s15, 1
      %p77 = scmp.ne.s32.totalorder %s72, %s74
      %p78 = scmp.eq.s32.totalorder %s15, 0
      %p79 = por %p77, %p78
      %p80 = scmp.ne.s32.totalorder %s72, %s74
      %p81 = scmp.eq.s32.totalorder %s20, 1
      %p82 = por %p80, %p81
      %p83 = scmp.ne.s32.totalorder %s74, %s75
      %p84 = scmp.eq.s32.totalorder %s20, 0
      %p85 = por %p83, %p84
      %p86 = scmp.ne.s32.totalorder %s74, %s75
      %p87 = scmp.eq.s32.totalorder %s21, 1
      %p88 = por %p86, %p87
      %p90 = scmp.ne.s32.totalorder %s75, %s89
      %p91 = scmp.eq.s32.totalorder %s21, 0
      %p92 = por %p90, %p91
      %s94 = sadd.s32 %s93, 1
      %p97 = scmp.eq.s32.totalorder %s15, 1
      %p98 = scmp.ne.s32.totalorder %s93, %s95
      %p99 = scmp.eq.s32.totalorder %s15, 0
      %p100 = por %p98, %p99
      %p101 = scmp.ne.s32.totalorder %s93, %s95
      %p102 = scmp.eq.s32.totalorder %s20, 1
      %p103 = por %p101, %p102
      %p104 = scmp.ne.s32.totalorder %s95, %s96
      %p105 = scmp.eq.s32.totalorder %s20, 0
      %p106 = por %p104, %p105
      %p107 = scmp.ne.s32.totalorder %s95, %s96
      %p108 = scmp.eq.s32.totalorder %s21, 1
      %p109 = por %p107, %p108
      %p111 = scmp.ne.s32.totalorder %s96, %s110
      %p112 = scmp.eq.s32.totalorder %s21, 0
      %p113 = por %p111, %p112
      %s115 = sadd.s32 %s114, 1
      %p118 = scmp.eq.s32.totalorder %s15, 1
      %p119 = scmp.ne.s32.totalorder %s114, %s116
      %p120 = scmp.eq.s32.totalorder %s15, 0
      %p121 = por %p119, %p120
      %p122 = scmp.ne.s32.totalorder %s114, %s116
      %p123 = scmp.eq.s32.totalorder %s20, 1
      %p124 = por %p122, %p123
      %p125 = scmp.ne.s32.totalorder %s116, %s117
      %p126 = scmp.eq.s32.totalorder %s20, 0
      %p127 = por %p125, %p126
      %p128 = scmp.ne.s32.totalorder %s116, %s117
      %p129 = scmp.eq.s32.totalorder %s21, 1
      %p130 = por %p128, %p129
      %p132 = scmp.ne.s32.totalorder %s117, %s131
      %p133 = scmp.eq.s32.totalorder %s21, 0
      %p134 = por %p132, %p133
      %s136 = sadd.s32 %s135, 1
      %p139 = scmp.eq.s32.totalorder %s15, 1
      %p140 = scmp.ne.s32.totalorder %s135, %s137
      %p141 = scmp.eq.s32.totalorder %s15, 0
      %p142 = por %p140, %p141
      %p143 = scmp.ne.s32.totalorder %s135, %s137
      %p144 = scmp.eq.s32.totalorder %s20, 1
      %p145 = por %p143, %p144
      %p146 = scmp.ne.s32.totalorder %s137, %s138
      %p147 = scmp.eq.s32.totalorder %s20, 0
      %p148 = por %p146, %p147
      %p149 = scmp.ne.s32.totalorder %s137, %s138
      %p150 = scmp.eq.s32.totalorder %s21, 1
      %p151 = por %p149, %p150
      %p153 = scmp.ne.s32.totalorder %s138, %s152
      %p154 = scmp.eq.s32.totalorder %s21, 0
      %p155 = por %p153, %p154
      %s157 = sadd.s32 %s156, 1
      %p160 = scmp.eq.s32.totalorder %s15, 1
      %p161 = scmp.ne.s32.totalorder %s156, %s158
      %p162 = scmp.eq.s32.totalorder %s15, 0
      %p163 = por %p161, %p162
      %p164 = scmp.ne.s32.totalorder %s156, %s158
      %p165 = scmp.eq.s32.totalorder %s20, 1
      %p166 = por %p164, %p165
      %p167 = scmp.ne.s32.totalorder %s158, %s159
      %p168 = scmp.eq.s32.totalorder %s20, 0
      %p169 = por %p167, %p168
      %p170 = scmp.ne.s32.totalorder %s158, %s159
      %p171 = scmp.eq.s32.totalorder %s21, 1
      %p172 = por %p170, %p171
      %p174 = scmp.ne.s32.totalorder %s159, %s173
      %p175 = scmp.eq.s32.totalorder %s21, 0
      %p176 = por %p174, %p175
      %s178 = sadd.s32 %s177, 1
      %p181 = scmp.eq.s32.totalorder %s15, 1
      %p182 = scmp.ne.s32.totalorder %s177, %s179
      %p183 = scmp.eq.s32.totalorder %s15, 0
      %p184 = por %p182, %p183
      %p185 = scmp.ne.s32.totalorder %s177, %s179
      %p186 = scmp.eq.s32.totalorder %s20, 1
      %p187 = por %p185, %p186
      %p188 = scmp.ne.s32.totalorder %s179, %s180
      %p189 = scmp.eq.s32.totalorder %s20, 0
      %p190 = por %p188, %p189
      %p191 = scmp.ne.s32.totalorder %s179, %s180
      %p192 = scmp.eq.s32.totalorder %s21, 1
      %p193 = por %p191, %p192
      %p195 = scmp.ne.s32.totalorder %s180, %s194
      %p196 = scmp.eq.s32.totalorder %s21, 0
      %p197 = por %p195, %p196
      %s198 = ssub.s32 %s22, %s41
      %s199 = ssub.s32 %s23, %s37
      %s200 = sor.u32 %s198, %s199
      %p201 = scmp.eq.s32.totalorder %s200, 0
      %s203 = sadd.s32 %s202, 1
      %s204 = scalar_select %p201, %s202, %s203
      %p207 = pneg %p201
      %p208 = scmp.eq.s32.totalorder %s15, 1
      %p209 = por %p207, %p208
      %p210 = scmp.ne.s32.totalorder %s202, %s205
      %p211 = scmp.eq.s32.totalorder %s15, 0
      %p212 = por %p210, %p211
      %p213 = scmp.ne.s32.totalorder %s202, %s205
      %p214 = scmp.eq.s32.totalorder %s20, 1
      %p215 = por %p213, %p214
      %p216 = scmp.ne.s32.totalorder %s205, %s206
      %p217 = scmp.eq.s32.totalorder %s20, 0
      %p218 = por %p216, %p217
      %p219 = scmp.ne.s32.totalorder %s205, %s206
      %p220 = scmp.eq.s32.totalorder %s21, 1
      %p221 = por %p219, %p220
      %p223 = scmp.ne.s32.totalorder %s206, %s222
      %p224 = scmp.eq.s32.totalorder %s21, 0
      %p225 = por %p223, %p224
      %p226 = scmp.le.s32.totalorder 1, %s15
      %p227 = scmp.lt.s32.totalorder %s15, 3
      %p228 = pnand %p226, %p227
      %p229 = pneg %p228
      // Predicated region
      $region9: #{pointnetfeat_forward.2} parent=5 // pred_check
        _
      $region10: #{pointnetfeat_forward.2} parent=5 // pred_check_branch
        %231 = sbr.rel (%p228) target = $region12
      $region11: #{pointnetfeat_forward.2} parent=5 // pred_region
        %s232 = ssub.s32 %s15, 1
        // Predicated region
        $region13: #{pointnetfeat_forward.2} parent=11 // pred_check
          %p233 = pneg %p85
        $region14: #{pointnetfeat_forward.2} parent=11 // pred_check_branch
          %235 = sbr.rel (%p233) target = $region16
        $region15: #{pointnetfeat_forward.2} parent=11 // pred_region
          _
        $region16: #{pointnetfeat_forward.2} parent=11 // pred_fallthru
          _
        // Predicated region
        $region17: #{pointnetfeat_forward.2} parent=11 // pred_check
          %p236 = pneg %p106
        $region18: #{pointnetfeat_forward.2} parent=11 // pred_check_branch
          %238 = sbr.rel (%p236) target = $region20
        $region19: #{pointnetfeat_forward.2} parent=11 // pred_region
          %240 = vsyncadd [#allocation3], 0
          %s242 = sshll.u32 %s2, 4
          %s243 = int_to_ptr.hbm [resolvable:$true] %s242
          %s244 = sshll.u32 [#allocation2], 4
          %s245 = int_to_ptr.vmem [resolvable:$true] %s244
          %247 = dma.hbm_to_vmem [thread:$0]  %s243, 16, %s245, [#allocation3]
        $region20: #{pointnetfeat_forward.2} parent=11 // pred_fallthru
          _
        // Predicated region
        $region21: #{pointnetfeat_forward.2} parent=11 // pred_check
          %p248 = pneg %p127
        $region22: #{pointnetfeat_forward.2} parent=11 // pred_check_branch
          %250 = sbr.rel (%p248) target = $region24
        $region23: #{pointnetfeat_forward.2} parent=11 // pred_region
          _
        $region24: #{pointnetfeat_forward.2} parent=11 // pred_fallthru
          _
        // Predicated region
        $region25: #{pointnetfeat_forward.2} parent=11 // pred_check
          %p251 = pneg %p148
        $region26: #{pointnetfeat_forward.2} parent=11 // pred_check_branch
          %253 = sbr.rel (%p251) target = $region28
        $region27: #{pointnetfeat_forward.2} parent=11 // pred_region
          %255 = vsyncadd [#allocation5], 0
          %s257 = sshll.u32 %s4, 4
          %s258 = int_to_ptr.hbm [resolvable:$true] %s257
          %s259 = sshll.u32 [#allocation4], 4
          %s260 = int_to_ptr.vmem [resolvable:$true] %s259
          %262 = dma.hbm_to_vmem [thread:$0]  %s258, 16, %s260, [#allocation5]
        $region28: #{pointnetfeat_forward.2} parent=11 // pred_fallthru
          _
        // Predicated region
        $region29: #{pointnetfeat_forward.2} parent=11 // pred_check
          %p263 = pneg %p169
        $region30: #{pointnetfeat_forward.2} parent=11 // pred_check_branch
          %265 = sbr.rel (%p263) target = $region32
        $region31: #{pointnetfeat_forward.2} parent=11 // pred_region
          _
        $region32: #{pointnetfeat_forward.2} parent=11 // pred_fallthru
          _
        // Predicated region
        $region33: #{pointnetfeat_forward.2} parent=11 // pred_check
          %p266 = pneg %p190
        $region34: #{pointnetfeat_forward.2} parent=11 // pred_check_branch
          %268 = sbr.rel (%p266) target = $region36
        $region35: #{pointnetfeat_forward.2} parent=11 // pred_region
          %270 = vsyncadd [#allocation5], 0
          %s272 = sshll.u32 %s6, 4
          %s273 = int_to_ptr.hbm [resolvable:$true] %s272
          %s274 = sshll.u32 [#allocation6], 4
          %s275 = int_to_ptr.vmem [resolvable:$true] %s274
          %277 = dma.hbm_to_vmem [thread:$0]  %s273, 128, %s275, [#allocation5]
        $region36: #{pointnetfeat_forward.2} parent=11 // pred_fallthru
          _
      $region12: #{pointnetfeat_forward.2} parent=5 // pred_fallthru
        _
      %p278 = scmp.lt.s32.totalorder %s15, 2
      // Predicated region
      $region37: #{pointnetfeat_forward.2} parent=5 // pred_check
        %p279 = pneg %p278
      $region38: #{pointnetfeat_forward.2} parent=5 // pred_check_branch
        %281 = sbr.rel (%p279) target = $region40
      $region39: #{pointnetfeat_forward.2} parent=5 // pred_region
        // Predicated region
        $region41: #{pointnetfeat_forward.2} parent=39 // pred_check
          %p282 = pneg %p58
        $region42: #{pointnetfeat_forward.2} parent=39 // pred_check_branch
          %284 = sbr.rel (%p282) target = $region44
        $region43: #{pointnetfeat_forward.2} parent=39 // pred_region
          %s285 = sadd.s32 %s22, %s24
          %s286 = smul.u32 26, %s285
          %p287 = scmp.lt.s32.totalorder %s23, 1
          %s288 = scalar_select %p287, %s23, 1
          %p289 = scmp.lt.s32.totalorder %s286, 25
          %s290 = scalar_select %p289, %s286, 25
          %s291 = smul.addr %s288, 26
          %s292 = sadd.s32 %s290, %s291
          %s293 = smul.addr %s292, 4
          %s294 = scalar_lea.vmem %s0, %s293
          %s295 = sadd.s32 %s22, %s24
          %s296 = smul.u32 26, %s295
        $region44: #{pointnetfeat_forward.2} parent=39 // pred_fallthru
          _
      $region40: #{pointnetfeat_forward.2} parent=5 // pred_fallthru
        _
      %p297 = scmp.le.s32.totalorder 1, %s15
      %p298 = scmp.lt.s32.totalorder %s15, 3
      %p299 = pnand %p297, %p298
      %p300 = pneg %p299
      // Predicated region
      $region45: #{pointnetfeat_forward.2} parent=5 // pred_check
        _
      $region46: #{pointnetfeat_forward.2} parent=5 // pred_check_branch
        %302 = sbr.rel (%p299) target = $region48
      $region47: #{pointnetfeat_forward.2} parent=5 // pred_region
        %s303 = ssub.s32 %s15, 1
        // Predicated region
        $region49: #{pointnetfeat_forward.2} parent=47 // pred_check
          %p304 = pneg %p106
        $region50: #{pointnetfeat_forward.2} parent=47 // pred_check_branch
          %306 = sbr.rel (%p304) target = $region52
        $region51: #{pointnetfeat_forward.2} parent=47 // pred_region
          %308 = dma.done [#allocation3], 16
        $region52: #{pointnetfeat_forward.2} parent=47 // pred_fallthru
          _
        // Predicated region
        $region53: #{pointnetfeat_forward.2} parent=47 // pred_check
          %p309 = pneg %p148
        $region54: #{pointnetfeat_forward.2} parent=47 // pred_check_branch
          %311 = sbr.rel (%p309) target = $region56
        $region55: #{pointnetfeat_forward.2} parent=47 // pred_region
          %313 = dma.done [#allocation5], 16
        $region56: #{pointnetfeat_forward.2} parent=47 // pred_fallthru
          _
        // Predicated region
        $region57: #{pointnetfeat_forward.2} parent=47 // pred_check
          %p314 = pneg %p190
        $region58: #{pointnetfeat_forward.2} parent=47 // pred_check_branch
          %316 = sbr.rel (%p314) target = $region60
        $region59: #{pointnetfeat_forward.2} parent=47 // pred_region
          %318 = dma.done [#allocation5], 128
        $region60: #{pointnetfeat_forward.2} parent=47 // pred_fallthru
          _
        %s319 = sadd.s32 %s25, %s27
        %s320 = smul.u32 26, %s319
        %p321 = scmp.lt.s32.totalorder %s26, 1
        %s322 = scalar_select %p321, %s26, 1
        %p323 = scmp.lt.s32.totalorder %s320, 25
        %s324 = scalar_select %p323, %s320, 25
        %s325 = smul.addr %s322, 26
        %s326 = sadd.s32 %s324, %s325
        %s327 = smul.addr %s326, 4
        %s328 = scalar_lea.vmem %s0, %s327
        %p329 = pneg %p64
        %p330 = pneg %p61
        %p331 = pneg %p85
        %p332 = pneg %p82
        %p333 = pneg %p106
        %p334 = pneg %p103
        %p335 = pneg %p127
        %p336 = pneg %p124
        %p337 = pneg %p148
        %p338 = pneg %p145
        %p339 = pneg %p169
        %p340 = pneg %p166
        %p341 = pneg %p190
        %p342 = pneg %p187
        %p343 = pneg %p218
        %p344 = pneg %p215
        %p345 = scmp.lt.s32.totalorder %s25, 0
        %s346 = scalar_select %p345, %s25, 0
        %p347 = scmp.lt.s32.totalorder %s26, 1
        %s348 = scalar_select %p347, %s26, 1
        %s349 = smul.addr %s348, 8
        %s350 = smul.addr %s346, 16
        %s351 = sadd.s32 %s349, %s350
        %s352 = scalar_lea.vmem %s7, %s351
        %s353 = sadd.s32 %s25, %s27
        %s354 = smul.u32 26, %s353
        %p355 = scmp.lt.s32.totalorder %s26, 1
        %s356 = scalar_select %p355, %s26, 1
        %p357 = scmp.lt.s32.totalorder %s354, 25
        %s358 = scalar_select %p357, %s354, 25
        %s359 = smul.addr %s356, 26
        %s360 = sadd.s32 %s358, %s359
        %s361 = smul.addr %s360, 4
        %s362 = scalar_lea.vmem %s0, %s361
        %s363 = sadd.s32 %s25, %s27
        %s364 = smul.u32 26, %s363
        %p365 = scmp.lt.s32.totalorder %s25, 0
        %s366 = scalar_select %p365, %s25, 0
        %p367 = scmp.lt.s32.totalorder %s26, 1
        %s368 = scalar_select %p367, %s26, 1
        %s369 = smul.addr %s368, 8
        %s370 = smul.addr %s366, 16
        %s371 = sadd.s32 %s369, %s370
        %s372 = scalar_lea.vmem %s7, %s371
        %v374 = vld [vmem:[%s362] sm:$0xf]
        %v375 = vld [vmem:[%s362 + $0x4] sm:$0xf]
        %v376 = vld [vmem:[%s362 + $0x8] sm:$0xf]
        %v377 = vld [vmem:[%s362 + $0xc] sm:$0xf]
        %v378 = vld [vmem:[%s362 + $0x10] sm:$0xf]
        %v379 = vld [vmem:[%s362 + $0x14] sm:$0xf]
        %v380 = vld [vmem:[%s362 + $0x18] sm:$0xf]
        %v381 = vld [vmem:[%s362 + $0x1c] sm:$0xf]
        %v382 = vld [vmem:[%s362 + $0x20] sm:$0xf]
        %v383 = vld [vmem:[%s362 + $0x24] sm:$0xf]
        %v384 = vld [vmem:[%s362 + $0x28] sm:$0xf]
        %v385 = vld [vmem:[%s362 + $0x2c] sm:$0xf]
        %v386 = vld [vmem:[%s362 + $0x30] sm:$0xf]
        %v387 = vld [vmem:[%s362 + $0x34] sm:$0xf]
        %v388 = vld [vmem:[%s362 + $0x38] sm:$0xf]
        %v389 = vld [vmem:[%s362 + $0x3c] sm:$0xf]
        %v390 = vld [vmem:[%s362 + $0x40] sm:$0xf]
        %v391 = vld [vmem:[%s362 + $0x44] sm:$0xf]
        %v392 = vld [vmem:[%s362 + $0x48] sm:$0xf]
        %v393 = vld [vmem:[%s362 + $0x4c] sm:$0xf]
        %v394 = vld [vmem:[%s362 + $0x50] sm:$0xf]
        %v395 = vld [vmem:[%s362 + $0x54] sm:$0xf]
        %v396 = vld [vmem:[%s362 + $0x58] sm:$0xf]
        %v397 = vld [vmem:[%s362 + $0x5c] sm:$0xf]
        %v398 = vld [vmem:[%s362 + $0x60] sm:$0xf]
        %v399 = vld [vmem:[%s362 + $0x64] sm:$0xf]
        %v400 = vld [vmem:[%s1] sm:$0x3]
        %v401 = vld [vmem:[#allocation2] sm:$0x1]
        %v403 = vperm.slane %v401, 0
        %v431 = vunpack.c.l.b16 %v374
        %v432 = vunpack.c.l.b16 %v375
        %v433 = vunpack.c.l.b16 %v376
        %v434 = vunpack.c.l.b16 %v377
        %v435 = vunpack.c.l.b16 %v378
        %v436 = vunpack.c.l.b16 %v379
        %v437 = vunpack.c.l.b16 %v380
        %v438 = vunpack.c.l.b16 %v381
        %v439 = vunpack.c.l.b16 %v382
        %v440 = vunpack.c.l.b16 %v383
        %v441 = vunpack.c.l.b16 %v384
        %v442 = vunpack.c.l.b16 %v385
        %v443 = vunpack.c.l.b16 %v386
        %v444 = vunpack.c.l.b16 %v387
        %v445 = vunpack.c.l.b16 %v388
        %v446 = vunpack.c.l.b16 %v389
        %v447 = vunpack.c.l.b16 %v390
        %v448 = vunpack.c.l.b16 %v391
        %v449 = vunpack.c.l.b16 %v392
        %v450 = vunpack.c.l.b16 %v393
        %v451 = vunpack.c.l.b16 %v394
        %v452 = vunpack.c.l.b16 %v395
        %v453 = vunpack.c.l.b16 %v396
        %v454 = vunpack.c.l.b16 %v397
        %v455 = vunpack.c.l.b16 %v398
        %v456 = vunpack.c.l.b16 %v399
        %v457 = vpack.c.b16 %v432, %v431
        %v458 = vpack.c.b16 %v434, %v433
        %v459 = vpack.c.b16 %v436, %v435
        %v460 = vpack.c.b16 %v438, %v437
        %v461 = vpack.c.b16 %v440, %v439
        %v462 = vpack.c.b16 %v442, %v441
        %v463 = vpack.c.b16 %v444, %v443
        %v464 = vpack.c.b16 %v446, %v445
        %v465 = vpack.c.b16 %v448, %v447
        %v466 = vpack.c.b16 %v450, %v449
        %v467 = vpack.c.b16 %v452, %v451
        %v468 = vpack.c.b16 %v454, %v453
        %v469 = vpack.c.b16 %v456, %v455
        %vm470 = vcmask 23552
        %v472 = vsel %vm470, %v457, 0
        %v475 = vsel %vm470, %v458, 0
        %v478 = vsel %vm470, %v459, 0
        %v481 = vsel %vm470, %v460, 0
        %v484 = vsel %vm470, %v461, 0
        %v487 = vsel %vm470, %v462, 0
        %v490 = vsel %vm470, %v463, 0
        %v493 = vsel %vm470, %v464, 0
        %v496 = vsel %vm470, %v465, 0
        %v499 = vsel %vm470, %v466, 0
        %v502 = vsel %vm470, %v467, 0
        %v505 = vsel %vm470, %v468, 0
        %v508 = vsel %vm470, %v469, 0
        %vm510 = vcmask 1040384
        %vm511 = vcmask 1041408
        %v512 = vsel %vm510, 4294967295, 65535
        %v513 = vsel %vm511, %v512, 0
        %v515 = vand.u32 %v400, %v513
        %517 = vmatpush.bf16.msra.mxu0 0
        %518 = vmatpush.bf16.msra.mxu0 0
        %519 = vmatpush.bf16.msra.mxu0 0
        %520 = vmatpush.bf16.msra.mxu0 0
        %521 = vmatpush.bf16.msra.mxu0 0
        %522 = vmatpush.bf16.msra.mxu0 0
        %523 = vmatpush.bf16.msra.mxu0 0
        %524 = vmatpush.bf16.msra.mxu0 %v515
        %525 = vmatmul.bf16.gmra.mxu0 %v472
        %v526 = vpop.f32.mrf.mxu0
        %v527 = vadd.f32 %v403, %v526
        %v528 = vpop.f32.mrf.mxu0
        %v529 = vadd.f32 %v403, %v528
        %530 = vmatmul.bf16.gmra.mxu0 %v475
        %v531 = vpop.f32.mrf.mxu0
        %v532 = vadd.f32 %v403, %v531
        %v533 = vpop.f32.mrf.mxu0
        %v534 = vadd.f32 %v403, %v533
        %535 = vmatmul.bf16.gmra.mxu0 %v478
        %v536 = vpop.f32.mrf.mxu0
        %v537 = vadd.f32 %v403, %v536
        %v538 = vpop.f32.mrf.mxu0
        %v539 = vadd.f32 %v403, %v538
        %540 = vmatmul.bf16.gmra.mxu0 %v481
        %v541 = vpop.f32.mrf.mxu0
        %v542 = vadd.f32 %v403, %v541
        %v543 = vpop.f32.mrf.mxu0
        %v544 = vadd.f32 %v403, %v543
        %545 = vmatmul.bf16.gmra.mxu0 %v484
        %v546 = vpop.f32.mrf.mxu0
        %v547 = vadd.f32 %v403, %v546
        %v548 = vpop.f32.mrf.mxu0
        %v549 = vadd.f32 %v403, %v548
        %550 = vmatmul.bf16.gmra.mxu0 %v487
        %v551 = vpop.f32.mrf.mxu0
        %v552 = vadd.f32 %v403, %v551
        %v553 = vpop.f32.mrf.mxu0
        %v554 = vadd.f32 %v403, %v553
        %555 = vmatmul.bf16.gmra.mxu0 %v490
        %v556 = vpop.f32.mrf.mxu0
        %v557 = vadd.f32 %v403, %v556
        %v558 = vpop.f32.mrf.mxu0
        %v559 = vadd.f32 %v403, %v558
        %560 = vmatmul.bf16.gmra.mxu0 %v493
        %v561 = vpop.f32.mrf.mxu0
        %v562 = vadd.f32 %v403, %v561
        %v563 = vpop.f32.mrf.mxu0
        %v564 = vadd.f32 %v403, %v563
        %565 = vmatmul.bf16.gmra.mxu0 %v496
        %v566 = vpop.f32.mrf.mxu0
        %v567 = vadd.f32 %v403, %v566
        %v568 = vpop.f32.mrf.mxu0
        %v569 = vadd.f32 %v403, %v568
        %570 = vmatmul.bf16.gmra.mxu0 %v499
        %v571 = vpop.f32.mrf.mxu0
        %v572 = vadd.f32 %v403, %v571
        %v573 = vpop.f32.mrf.mxu0
        %v574 = vadd.f32 %v403, %v573
        %575 = vmatmul.bf16.gmra.mxu0 %v502
        %v576 = vpop.f32.mrf.mxu0
        %v577 = vadd.f32 %v403, %v576
        %v578 = vpop.f32.mrf.mxu0
        %v579 = vadd.f32 %v403, %v578
        %580 = vmatmul.bf16.gmra.mxu0 %v505
        %v581 = vpop.f32.mrf.mxu0
        %v582 = vadd.f32 %v403, %v581
        %v583 = vpop.f32.mrf.mxu0
        %v584 = vadd.f32 %v403, %v583
        %585 = vmatmul.bf16.gmra.mxu0 %v508
        %v586 = vpop.f32.mrf.mxu0
        %v587 = vadd.f32 %v403, %v586
        %v588 = vpop.f32.mrf.mxu0
        %v589 = vadd.f32 %v403, %v588
        %590 = vdwg.mxu0
        %v591 = vmax.f32 %v527, 0.0
        %v592 = vmax.f32 %v529, 0.0
        %v593 = vmax.f32 %v532, 0.0
        %v594 = vmax.f32 %v534, 0.0
        %v595 = vmax.f32 %v537, 0.0
        %v596 = vmax.f32 %v539, 0.0
        %v597 = vmax.f32 %v542, 0.0
        %v598 = vmax.f32 %v544, 0.0
        %v599 = vmax.f32 %v547, 0.0
        %v600 = vmax.f32 %v549, 0.0
        %v601 = vmax.f32 %v552, 0.0
        %v602 = vmax.f32 %v554, 0.0
        %v603 = vmax.f32 %v557, 0.0
        %v604 = vmax.f32 %v559, 0.0
        %v605 = vmax.f32 %v562, 0.0
        %v606 = vmax.f32 %v564, 0.0
        %v607 = vmax.f32 %v567, 0.0
        %v608 = vmax.f32 %v569, 0.0
        %v609 = vmax.f32 %v572, 0.0
        %v610 = vmax.f32 %v574, 0.0
        %v611 = vmax.f32 %v577, 0.0
        %v612 = vmax.f32 %v579, 0.0
        %v613 = vmax.f32 %v582, 0.0
        %v614 = vmax.f32 %v584, 0.0
        %v615 = vmax.f32 %v587, 0.0
        %v616 = vmax.f32 %v589, 0.0
        %v617 = vpack.c.bf16 %v592, %v591
        %v618 = vpack.c.bf16 %v594, %v593
        %v619 = vpack.c.bf16 %v596, %v595
        %v620 = vpack.c.bf16 %v598, %v597
        %v621 = vpack.c.bf16 %v600, %v599
        %v622 = vpack.c.bf16 %v602, %v601
        %v623 = vpack.c.bf16 %v604, %v603
        %v624 = vpack.c.bf16 %v606, %v605
        %v625 = vpack.c.bf16 %v608, %v607
        %v626 = vpack.c.bf16 %v610, %v609
        %v627 = vpack.c.bf16 %v612, %v611
        %v628 = vpack.c.bf16 %v614, %v613
        %v629 = vpack.c.bf16 %v616, %v615
        %v630 = vld [vmem:[%s3] sm:$0xf]
        %v631 = vld [vmem:[%s3 + $0x4] sm:$0xf]
        %v632 = vld [vmem:[%s3 + $0x8] sm:$0xf]
        %v633 = vld [vmem:[%s3 + $0xc] sm:$0xf]
        %v634 = vld [vmem:[%s3 + $0x10] sm:$0xf]
        %v635 = vld [vmem:[%s3 + $0x14] sm:$0xf]
        %v636 = vld [vmem:[%s3 + $0x18] sm:$0xf]
        %v637 = vld [vmem:[%s3 + $0x1c] sm:$0xf]
        %v638 = vld [vmem:[#allocation4] sm:$0x1]
        %v640 = vperm.slane %v638, 0
        %v650 = vunpack.c.l.b16 %v630
        %v651 = vunpack.c.l.b16 %v631
        %v652 = vunpack.c.l.b16 %v632
        %v653 = vunpack.c.l.b16 %v633
        %v654 = vunpack.c.l.b16 %v634
        %v655 = vunpack.c.l.b16 %v635
        %v656 = vunpack.c.l.b16 %v636
        %v657 = vunpack.c.l.b16 %v637
        %v658 = vpack.c.b16 %v651, %v650
        %v659 = vpack.c.b16 %v653, %v652
        %v660 = vpack.c.b16 %v655, %v654
        %v661 = vpack.c.b16 %v657, %v656
        %vm666 = vcmask 523264
        %v668 = vsel %vm666, %v617, 0
        %v671 = vsel %vm666, %v618, 0
        %v674 = vsel %vm666, %v619, 0
        %v677 = vsel %vm666, %v620, 0
        %v680 = vsel %vm666, %v621, 0
        %v683 = vsel %vm666, %v622, 0
        %v686 = vsel %vm666, %v623, 0
        %v689 = vsel %vm666, %v624, 0
        %v692 = vsel %vm666, %v625, 0
        %v695 = vsel %vm666, %v626, 0
        %v698 = vsel %vm666, %v627, 0
        %v701 = vsel %vm666, %v628, 0
        %v704 = vsel %vm666, %v629, 0
        %706 = vmatpush.bf16.msra.mxu0 0
        %707 = vmatpush.bf16.msra.mxu0 0
        %708 = vmatpush.bf16.msra.mxu0 0
        %709 = vmatpush.bf16.msra.mxu0 0
        %710 = vmatpush.bf16.msra.mxu0 %v661
        %711 = vmatpush.bf16.msra.mxu0 %v660
        %712 = vmatpush.bf16.msra.mxu0 %v659
        %713 = vmatpush.bf16.msra.mxu0 %v658
        %714 = vmatmul.bf16.gmra.mxu0 %v668
        %v715 = vpop.f32.mrf.mxu0
        %v716 = vadd.f32 %v640, %v715
        %v717 = vpop.f32.mrf.mxu0
        %v718 = vadd.f32 %v640, %v717
        %719 = vmatmul.bf16.gmra.mxu0 %v671
        %v720 = vpop.f32.mrf.mxu0
        %v721 = vadd.f32 %v640, %v720
        %v722 = vpop.f32.mrf.mxu0
        %v723 = vadd.f32 %v640, %v722
        %724 = vmatmul.bf16.gmra.mxu0 %v674
        %v725 = vpop.f32.mrf.mxu0
        %v726 = vadd.f32 %v640, %v725
        %v727 = vpop.f32.mrf.mxu0
        %v728 = vadd.f32 %v640, %v727
        %729 = vmatmul.bf16.gmra.mxu0 %v677
        %v730 = vpop.f32.mrf.mxu0
        %v731 = vadd.f32 %v640, %v730
        %v732 = vpop.f32.mrf.mxu0
        %v733 = vadd.f32 %v640, %v732
        %734 = vmatmul.bf16.gmra.mxu0 %v680
        %v735 = vpop.f32.mrf.mxu0
        %v736 = vadd.f32 %v640, %v735
        %v737 = vpop.f32.mrf.mxu0
        %v738 = vadd.f32 %v640, %v737
        %739 = vmatmul.bf16.gmra.mxu0 %v683
        %v740 = vpop.f32.mrf.mxu0
        %v741 = vadd.f32 %v640, %v740
        %v742 = vpop.f32.mrf.mxu0
        %v743 = vadd.f32 %v640, %v742
        %744 = vmatmul.bf16.gmra.mxu0 %v686
        %v745 = vpop.f32.mrf.mxu0
        %v746 = vadd.f32 %v640, %v745
        %v747 = vpop.f32.mrf.mxu0
        %v748 = vadd.f32 %v640, %v747
        %749 = vmatmul.bf16.gmra.mxu0 %v689
        %v750 = vpop.f32.mrf.mxu0
        %v751 = vadd.f32 %v640, %v750
        %v752 = vpop.f32.mrf.mxu0
        %v753 = vadd.f32 %v640, %v752
        %754 = vmatmul.bf16.gmra.mxu0 %v692
        %v755 = vpop.f32.mrf.mxu0
        %v756 = vadd.f32 %v640, %v755
        %v757 = vpop.f32.mrf.mxu0
        %v758 = vadd.f32 %v640, %v757
        %759 = vmatmul.bf16.gmra.mxu0 %v695
        %v760 = vpop.f32.mrf.mxu0
        %v761 = vadd.f32 %v640, %v760
        %v762 = vpop.f32.mrf.mxu0
        %v763 = vadd.f32 %v640, %v762
        %764 = vmatmul.bf16.gmra.mxu0 %v698
        %v765 = vpop.f32.mrf.mxu0
        %v766 = vadd.f32 %v640, %v765
        %v767 = vpop.f32.mrf.mxu0
        %v768 = vadd.f32 %v640, %v767
        %769 = vmatmul.bf16.gmra.mxu0 %v701
        %v770 = vpop.f32.mrf.mxu0
        %v771 = vadd.f32 %v640, %v770
        %v772 = vpop.f32.mrf.mxu0
        %v773 = vadd.f32 %v640, %v772
        %774 = vmatmul.bf16.gmra.mxu0 %v704
        %v775 = vpop.f32.mrf.mxu0
        %v776 = vadd.f32 %v640, %v775
        %v777 = vpop.f32.mrf.mxu0
        %v778 = vadd.f32 %v640, %v777
        %779 = vdwg.mxu0
        %v780 = vmax.f32 %v716, 0.0
        %v781 = vmax.f32 %v718, 0.0
        %v782 = vmax.f32 %v721, 0.0
        %v783 = vmax.f32 %v723, 0.0
        %v784 = vmax.f32 %v726, 0.0
        %v785 = vmax.f32 %v728, 0.0
        %v786 = vmax.f32 %v731, 0.0
        %v787 = vmax.f32 %v733, 0.0
        %v788 = vmax.f32 %v736, 0.0
        %v789 = vmax.f32 %v738, 0.0
        %v790 = vmax.f32 %v741, 0.0
        %v791 = vmax.f32 %v743, 0.0
        %v792 = vmax.f32 %v746, 0.0
        %v793 = vmax.f32 %v748, 0.0
        %v794 = vmax.f32 %v751, 0.0
        %v795 = vmax.f32 %v753, 0.0
        %v796 = vmax.f32 %v756, 0.0
        %v797 = vmax.f32 %v758, 0.0
        %v798 = vmax.f32 %v761, 0.0
        %v799 = vmax.f32 %v763, 0.0
        %v800 = vmax.f32 %v766, 0.0
        %v801 = vmax.f32 %v768, 0.0
        %v802 = vmax.f32 %v771, 0.0
        %v803 = vmax.f32 %v773, 0.0
        %v804 = vmax.f32 %v776, 0.0
        %v805 = vmax.f32 %v778, 0.0
        %v806 = vpack.c.bf16 %v781, %v780
        %v807 = vpack.c.bf16 %v783, %v782
        %v808 = vpack.c.bf16 %v785, %v784
        %v809 = vpack.c.bf16 %v787, %v786
        %v810 = vpack.c.bf16 %v789, %v788
        %v811 = vpack.c.bf16 %v791, %v790
        %v812 = vpack.c.bf16 %v793, %v792
        %v813 = vpack.c.bf16 %v795, %v794
        %v814 = vpack.c.bf16 %v797, %v796
        %v815 = vpack.c.bf16 %v799, %v798
        %v816 = vpack.c.bf16 %v801, %v800
        %v817 = vpack.c.bf16 %v803, %v802
        %v818 = vpack.c.bf16 %v805, %v804
        %v819 = vld [vmem:[%s5] sm:$0xff]
        %v820 = vld [vmem:[%s5 + $0x8] sm:$0xff]
        %v821 = vld [vmem:[%s5 + $0x10] sm:$0xff]
        %v822 = vld [vmem:[%s5 + $0x18] sm:$0xff]
        %v823 = vld [vmem:[%s5 + $0x20] sm:$0xff]
        %v824 = vld [vmem:[%s5 + $0x28] sm:$0xff]
        %v825 = vld [vmem:[%s5 + $0x30] sm:$0xff]
        %v826 = vld [vmem:[%s5 + $0x38] sm:$0xff]
        %v827 = vld [vmem:[%s5 + $0x40] sm:$0xff]
        %v828 = vld [vmem:[%s5 + $0x48] sm:$0xff]
        %v829 = vld [vmem:[%s5 + $0x50] sm:$0xff]
        %v830 = vld [vmem:[%s5 + $0x58] sm:$0xff]
        %v831 = vld [vmem:[%s5 + $0x60] sm:$0xff]
        %v832 = vld [vmem:[%s5 + $0x68] sm:$0xff]
        %v833 = vld [vmem:[%s5 + $0x70] sm:$0xff]
        %v834 = vld [vmem:[%s5 + $0x78] sm:$0xff]
        %v835 = vld [vmem:[%s5 + $0x80] sm:$0xff]
        %v836 = vld [vmem:[%s5 + $0x88] sm:$0xff]
        %v837 = vld [vmem:[%s5 + $0x90] sm:$0xff]
        %v838 = vld [vmem:[%s5 + $0x98] sm:$0xff]
        %v839 = vld [vmem:[%s5 + $0xa0] sm:$0xff]
        %v840 = vld [vmem:[%s5 + $0xa8] sm:$0xff]
        %v841 = vld [vmem:[%s5 + $0xb0] sm:$0xff]
        %v842 = vld [vmem:[%s5 + $0xb8] sm:$0xff]
        %v843 = vld [vmem:[%s5 + $0xc0] sm:$0xff]
        %v844 = vld [vmem:[%s5 + $0xc8] sm:$0xff]
        %v845 = vld [vmem:[%s5 + $0xd0] sm:$0xff]
        %v846 = vld [vmem:[%s5 + $0xd8] sm:$0xff]
        %v847 = vld [vmem:[%s5 + $0xe0] sm:$0xff]
        %v848 = vld [vmem:[%s5 + $0xe8] sm:$0xff]
        %v849 = vld [vmem:[%s5 + $0xf0] sm:$0xff]
        %v850 = vld [vmem:[%s5 + $0xf8] sm:$0xff]
        %v851 = vld [vmem:[%s5 + $0x100] sm:$0xff]
        %v852 = vld [vmem:[%s5 + $0x108] sm:$0xff]
        %v853 = vld [vmem:[%s5 + $0x110] sm:$0xff]
        %v854 = vld [vmem:[%s5 + $0x118] sm:$0xff]
        %v855 = vld [vmem:[%s5 + $0x120] sm:$0xff]
        %v856 = vld [vmem:[%s5 + $0x128] sm:$0xff]
        %v857 = vld [vmem:[%s5 + $0x130] sm:$0xff]
        %v858 = vld [vmem:[%s5 + $0x138] sm:$0xff]
        %v859 = vld [vmem:[%s5 + $0x140] sm:$0xff]
        %v860 = vld [vmem:[%s5 + $0x148] sm:$0xff]
        %v861 = vld [vmem:[%s5 + $0x150] sm:$0xff]
        %v862 = vld [vmem:[%s5 + $0x158] sm:$0xff]
        %v863 = vld [vmem:[%s5 + $0x160] sm:$0xff]
        %v864 = vld [vmem:[%s5 + $0x168] sm:$0xff]
        %v865 = vld [vmem:[%s5 + $0x170] sm:$0xff]
        %v866 = vld [vmem:[%s5 + $0x178] sm:$0xff]
        %v867 = vld [vmem:[%s5 + $0x180] sm:$0xff]
        %v868 = vld [vmem:[%s5 + $0x188] sm:$0xff]
        %v869 = vld [vmem:[%s5 + $0x190] sm:$0xff]
        %v870 = vld [vmem:[%s5 + $0x198] sm:$0xff]
        %v871 = vld [vmem:[%s5 + $0x1a0] sm:$0xff]
        %v872 = vld [vmem:[%s5 + $0x1a8] sm:$0xff]
        %v873 = vld [vmem:[%s5 + $0x1b0] sm:$0xff]
        %v874 = vld [vmem:[%s5 + $0x1b8] sm:$0xff]
        %v875 = vld [vmem:[%s5 + $0x1c0] sm:$0xff]
        %v876 = vld [vmem:[%s5 + $0x1c8] sm:$0xff]
        %v877 = vld [vmem:[%s5 + $0x1d0] sm:$0xff]
        %v878 = vld [vmem:[%s5 + $0x1d8] sm:$0xff]
        %v879 = vld [vmem:[%s5 + $0x1e0] sm:$0xff]
        %v880 = vld [vmem:[%s5 + $0x1e8] sm:$0xff]
        %v881 = vld [vmem:[%s5 + $0x1f0] sm:$0xff]
        %v882 = vld [vmem:[%s5 + $0x1f8] sm:$0xff]
        %v883 = vld [vmem:[#allocation6] sm:$0xff]
        %v885 = vperm.slane %v883, 0
        %v886 = vperm.slane %v883, 1
        %v887 = vperm.slane %v883, 2
        %v888 = vperm.slane %v883, 3
        %v889 = vperm.slane %v883, 4
        %v890 = vperm.slane %v883, 5
        %v891 = vperm.slane %v883, 6
        %v892 = vperm.slane %v883, 7
        %v965 = vunpack.c.l.b16 %v819
        %v966 = vunpack.c.h.b16 %v819
        %v967 = vunpack.c.l.b16 %v820
        %v968 = vunpack.c.h.b16 %v820
        %v969 = vunpack.c.l.b16 %v821
        %v970 = vunpack.c.h.b16 %v821
        %v971 = vunpack.c.l.b16 %v822
        %v972 = vunpack.c.h.b16 %v822
        %v973 = vunpack.c.l.b16 %v823
        %v974 = vunpack.c.h.b16 %v823
        %v975 = vunpack.c.l.b16 %v824
        %v976 = vunpack.c.h.b16 %v824
        %v977 = vunpack.c.l.b16 %v825
        %v978 = vunpack.c.h.b16 %v825
        %v979 = vunpack.c.l.b16 %v826
        %v980 = vunpack.c.h.b16 %v826
        %v981 = vunpack.c.l.b16 %v827
        %v982 = vunpack.c.h.b16 %v827
        %v983 = vunpack.c.l.b16 %v828
        %v984 = vunpack.c.h.b16 %v828
        %v985 = vunpack.c.l.b16 %v829
        %v986 = vunpack.c.h.b16 %v829
        %v987 = vunpack.c.l.b16 %v830
        %v988 = vunpack.c.h.b16 %v830
        %v989 = vunpack.c.l.b16 %v831
        %v990 = vunpack.c.h.b16 %v831
        %v991 = vunpack.c.l.b16 %v832
        %v992 = vunpack.c.h.b16 %v832
        %v993 = vunpack.c.l.b16 %v833
        %v994 = vunpack.c.h.b16 %v833
        %v995 = vunpack.c.l.b16 %v834
        %v996 = vunpack.c.h.b16 %v834
        %v997 = vunpack.c.l.b16 %v835
        %v998 = vunpack.c.h.b16 %v835
        %v999 = vunpack.c.l.b16 %v836
        %v1000 = vunpack.c.h.b16 %v836
        %v1001 = vunpack.c.l.b16 %v837
        %v1002 = vunpack.c.h.b16 %v837
        %v1003 = vunpack.c.l.b16 %v838
        %v1004 = vunpack.c.h.b16 %v838
        %v1005 = vunpack.c.l.b16 %v839
        %v1006 = vunpack.c.h.b16 %v839
        %v1007 = vunpack.c.l.b16 %v840
        %v1008 = vunpack.c.h.b16 %v840
        %v1009 = vunpack.c.l.b16 %v841
        %v1010 = vunpack.c.h.b16 %v841
        %v1011 = vunpack.c.l.b16 %v842
        %v1012 = vunpack.c.h.b16 %v842
        %v1013 = vunpack.c.l.b16 %v843
        %v1014 = vunpack.c.h.b16 %v843
        %v1015 = vunpack.c.l.b16 %v844
        %v1016 = vunpack.c.h.b16 %v844
        %v1017 = vunpack.c.l.b16 %v845
        %v1018 = vunpack.c.h.b16 %v845
        %v1019 = vunpack.c.l.b16 %v846
        %v1020 = vunpack.c.h.b16 %v846
        %v1021 = vunpack.c.l.b16 %v847
        %v1022 = vunpack.c.h.b16 %v847
        %v1023 = vunpack.c.l.b16 %v848
        %v1024 = vunpack.c.h.b16 %v848
        %v1025 = vunpack.c.l.b16 %v849
        %v1026 = vunpack.c.h.b16 %v849
        %v1027 = vunpack.c.l.b16 %v850
        %v1028 = vunpack.c.h.b16 %v850
        %v1029 = vunpack.c.l.b16 %v851
        %v1030 = vunpack.c.h.b16 %v851
        %v1031 = vunpack.c.l.b16 %v852
        %v1032 = vunpack.c.h.b16 %v852
        %v1033 = vunpack.c.l.b16 %v853
        %v1034 = vunpack.c.h.b16 %v853
        %v1035 = vunpack.c.l.b16 %v854
        %v1036 = vunpack.c.h.b16 %v854
        %v1037 = vunpack.c.l.b16 %v855
        %v1038 = vunpack.c.h.b16 %v855
        %v1039 = vunpack.c.l.b16 %v856
        %v1040 = vunpack.c.h.b16 %v856
        %v1041 = vunpack.c.l.b16 %v857
        %v1042 = vunpack.c.h.b16 %v857
        %v1043 = vunpack.c.l.b16 %v858
        %v1044 = vunpack.c.h.b16 %v858
        %v1045 = vunpack.c.l.b16 %v859
        %v1046 = vunpack.c.h.b16 %v859
        %v1047 = vunpack.c.l.b16 %v860
        %v1048 = vunpack.c.h.b16 %v860
        %v1049 = vunpack.c.l.b16 %v861
        %v1050 = vunpack.c.h.b16 %v861
        %v1051 = vunpack.c.l.b16 %v862
        %v1052 = vunpack.c.h.b16 %v862
        %v1053 = vunpack.c.l.b16 %v863
        %v1054 = vunpack.c.h.b16 %v863
        %v1055 = vunpack.c.l.b16 %v864
        %v1056 = vunpack.c.h.b16 %v864
        %v1057 = vunpack.c.l.b16 %v865
        %v1058 = vunpack.c.h.b16 %v865
        %v1059 = vunpack.c.l.b16 %v866
        %v1060 = vunpack.c.h.b16 %v866
        %v1061 = vunpack.c.l.b16 %v867
        %v1062 = vunpack.c.h.b16 %v867
        %v1063 = vunpack.c.l.b16 %v868
        %v1064 = vunpack.c.h.b16 %v868
        %v1065 = vunpack.c.l.b16 %v869
        %v1066 = vunpack.c.h.b16 %v869
        %v1067 = vunpack.c.l.b16 %v870
        %v1068 = vunpack.c.h.b16 %v870
        %v1069 = vunpack.c.l.b16 %v871
        %v1070 = vunpack.c.h.b16 %v871
        %v1071 = vunpack.c.l.b16 %v872
        %v1072 = vunpack.c.h.b16 %v872
        %v1073 = vunpack.c.l.b16 %v873
        %v1074 = vunpack.c.h.b16 %v873
        %v1075 = vunpack.c.l.b16 %v874
        %v1076 = vunpack.c.h.b16 %v874
        %v1077 = vunpack.c.l.b16 %v875
        %v1078 = vunpack.c.h.b16 %v875
        %v1079 = vunpack.c.l.b16 %v876
        %v1080 = vunpack.c.h.b16 %v876
        %v1081 = vunpack.c.l.b16 %v877
        %v1082 = vunpack.c.h.b16 %v877
        %v1083 = vunpack.c.l.b16 %v878
        %v1084 = vunpack.c.h.b16 %v878
        %v1085 = vunpack.c.l.b16 %v879
        %v1086 = vunpack.c.h.b16 %v879
        %v1087 = vunpack.c.l.b16 %v880
        %v1088 = vunpack.c.h.b16 %v880
        %v1089 = vunpack.c.l.b16 %v881
        %v1090 = vunpack.c.h.b16 %v881
        %v1091 = vunpack.c.l.b16 %v882
        %v1092 = vunpack.c.h.b16 %v882
        %v1093 = vpack.c.b16 %v973, %v965
        %v1094 = vpack.c.b16 %v974, %v966
        %v1095 = vpack.c.b16 %v975, %v967
        %v1096 = vpack.c.b16 %v976, %v968
        %v1097 = vpack.c.b16 %v977, %v969
        %v1098 = vpack.c.b16 %v978, %v970
        %v1099 = vpack.c.b16 %v979, %v971
        %v1100 = vpack.c.b16 %v980, %v972
        %v1101 = vpack.c.b16 %v989, %v981
        %v1102 = vpack.c.b16 %v990, %v982
        %v1103 = vpack.c.b16 %v991, %v983
        %v1104 = vpack.c.b16 %v992, %v984
        %v1105 = vpack.c.b16 %v993, %v985
        %v1106 = vpack.c.b16 %v994, %v986
        %v1107 = vpack.c.b16 %v995, %v987
        %v1108 = vpack.c.b16 %v996, %v988
        %v1109 = vpack.c.b16 %v1005, %v997
        %v1110 = vpack.c.b16 %v1006, %v998
        %v1111 = vpack.c.b16 %v1007, %v999
        %v1112 = vpack.c.b16 %v1008, %v1000
        %v1113 = vpack.c.b16 %v1009, %v1001
        %v1114 = vpack.c.b16 %v1010, %v1002
        %v1115 = vpack.c.b16 %v1011, %v1003
        %v1116 = vpack.c.b16 %v1012, %v1004
        %v1117 = vpack.c.b16 %v1021, %v1013
        %v1118 = vpack.c.b16 %v1022, %v1014
        %v1119 = vpack.c.b16 %v1023, %v1015
        %v1120 = vpack.c.b16 %v1024, %v1016
        %v1121 = vpack.c.b16 %v1025, %v1017
        %v1122 = vpack.c.b16 %v1026, %v1018
        %v1123 = vpack.c.b16 %v1027, %v1019
        %v1124 = vpack.c.b16 %v1028, %v1020
        %v1125 = vpack.c.b16 %v1037, %v1029
        %v1126 = vpack.c.b16 %v1038, %v1030
        %v1127 = vpack.c.b16 %v1039, %v1031
        %v1128 = vpack.c.b16 %v1040, %v1032
        %v1129 = vpack.c.b16 %v1041, %v1033
        %v1130 = vpack.c.b16 %v1042, %v1034
        %v1131 = vpack.c.b16 %v1043, %v1035
        %v1132 = vpack.c.b16 %v1044, %v1036
        %v1133 = vpack.c.b16 %v1053, %v1045
        %v1134 = vpack.c.b16 %v1054, %v1046
        %v1135 = vpack.c.b16 %v1055, %v1047
        %v1136 = vpack.c.b16 %v1056, %v1048
        %v1137 = vpack.c.b16 %v1057, %v1049
        %v1138 = vpack.c.b16 %v1058, %v1050
        %v1139 = vpack.c.b16 %v1059, %v1051
        %v1140 = vpack.c.b16 %v1060, %v1052
        %v1141 = vpack.c.b16 %v1069, %v1061
        %v1142 = vpack.c.b16 %v1070, %v1062
        %v1143 = vpack.c.b16 %v1071, %v1063
        %v1144 = vpack.c.b16 %v1072, %v1064
        %v1145 = vpack.c.b16 %v1073, %v1065
        %v1146 = vpack.c.b16 %v1074, %v1066
        %v1147 = vpack.c.b16 %v1075, %v1067
        %v1148 = vpack.c.b16 %v1076, %v1068
        %v1149 = vpack.c.b16 %v1085, %v1077
        %v1150 = vpack.c.b16 %v1086, %v1078
        %v1151 = vpack.c.b16 %v1087, %v1079
        %v1152 = vpack.c.b16 %v1088, %v1080
        %v1153 = vpack.c.b16 %v1089, %v1081
        %v1154 = vpack.c.b16 %v1090, %v1082
        %v1155 = vpack.c.b16 %v1091, %v1083
        %v1156 = vpack.c.b16 %v1092, %v1084
        %1221 = vmatpush.bf16.msra.mxu0 %v1149
        %1222 = vmatpush.bf16.msra.mxu0 %v1141
        %1223 = vmatpush.bf16.msra.mxu0 %v1133
        %1224 = vmatpush.bf16.msra.mxu0 %v1125
        %1225 = vmatpush.bf16.msra.mxu0 %v1117
        %1226 = vmatpush.bf16.msra.mxu0 %v1109
        %1227 = vmatpush.bf16.msra.mxu0 %v1101
        %1228 = vmatpush.bf16.msra.mxu0 %v1093
        %1229 = vmatmul.bf16.gmra.mxu0 %v806
        %v1230 = vpop.f32.mrf.mxu0
        %v1231 = vadd.f32 %v885, %v1230
        %v1232 = vpop.f32.mrf.mxu0
        %v1233 = vadd.f32 %v885, %v1232
        %1234 = vmatmul.bf16.gmra.mxu0 %v807
        %v1235 = vpop.f32.mrf.mxu0
        %v1236 = vadd.f32 %v885, %v1235
        %v1237 = vpop.f32.mrf.mxu0
        %v1238 = vadd.f32 %v885, %v1237
        %1239 = vmatmul.bf16.gmra.mxu0 %v808
        %v1240 = vpop.f32.mrf.mxu0
        %v1241 = vadd.f32 %v885, %v1240
        %v1242 = vpop.f32.mrf.mxu0
        %v1243 = vadd.f32 %v885, %v1242
        %1244 = vmatmul.bf16.gmra.mxu0 %v809
        %v1245 = vpop.f32.mrf.mxu0
        %v1246 = vadd.f32 %v885, %v1245
        %v1247 = vpop.f32.mrf.mxu0
        %v1248 = vadd.f32 %v885, %v1247
        %1249 = vmatmul.bf16.gmra.mxu0 %v810
        %v1250 = vpop.f32.mrf.mxu0
        %v1251 = vadd.f32 %v885, %v1250
        %v1252 = vpop.f32.mrf.mxu0
        %v1253 = vadd.f32 %v885, %v1252
        %1254 = vmatmul.bf16.gmra.mxu0 %v811
        %v1255 = vpop.f32.mrf.mxu0
        %v1256 = vadd.f32 %v885, %v1255
        %v1257 = vpop.f32.mrf.mxu0
        %v1258 = vadd.f32 %v885, %v1257
        %1259 = vmatmul.bf16.gmra.mxu0 %v812
        %v1260 = vpop.f32.mrf.mxu0
        %v1261 = vadd.f32 %v885, %v1260
        %v1262 = vpop.f32.mrf.mxu0
        %v1263 = vadd.f32 %v885, %v1262
        %1264 = vmatmul.bf16.gmra.mxu0 %v813
        %v1265 = vpop.f32.mrf.mxu0
        %v1266 = vadd.f32 %v885, %v1265
        %v1267 = vpop.f32.mrf.mxu0
        %v1268 = vadd.f32 %v885, %v1267
        %1269 = vmatmul.bf16.gmra.mxu0 %v814
        %v1270 = vpop.f32.mrf.mxu0
        %v1271 = vadd.f32 %v885, %v1270
        %v1272 = vpop.f32.mrf.mxu0
        %v1273 = vadd.f32 %v885, %v1272
        %1274 = vmatmul.bf16.gmra.mxu0 %v815
        %v1275 = vpop.f32.mrf.mxu0
        %v1276 = vadd.f32 %v885, %v1275
        %v1277 = vpop.f32.mrf.mxu0
        %v1278 = vadd.f32 %v885, %v1277
        %1279 = vmatmul.bf16.gmra.mxu0 %v816
        %v1280 = vpop.f32.mrf.mxu0
        %v1281 = vadd.f32 %v885, %v1280
        %v1282 = vpop.f32.mrf.mxu0
        %v1283 = vadd.f32 %v885, %v1282
        %1284 = vmatmul.bf16.gmra.mxu0 %v817
        %v1285 = vpop.f32.mrf.mxu0
        %v1286 = vadd.f32 %v885, %v1285
        %v1287 = vpop.f32.mrf.mxu0
        %v1288 = vadd.f32 %v885, %v1287
        %1289 = vmatmul.bf16.gmra.mxu0 %v818
        %v1290 = vpop.f32.mrf.mxu0
        %v1291 = vadd.f32 %v885, %v1290
        %v1292 = vpop.f32.mrf.mxu0
        %v1293 = vadd.f32 %v885, %v1292
        %1294 = vdwg.mxu0
        %1295 = vmatpush.bf16.msra.mxu0 %v1150
        %1296 = vmatpush.bf16.msra.mxu0 %v1142
        %1297 = vmatpush.bf16.msra.mxu0 %v1134
        %1298 = vmatpush.bf16.msra.mxu0 %v1126
        %1299 = vmatpush.bf16.msra.mxu0 %v1118
        %1300 = vmatpush.bf16.msra.mxu0 %v1110
        %1301 = vmatpush.bf16.msra.mxu0 %v1102
        %1302 = vmatpush.bf16.msra.mxu0 %v1094
        %1303 = vmatmul.bf16.gmra.mxu0 %v806
        %v1304 = vpop.f32.mrf.mxu0
        %v1305 = vadd.f32 %v886, %v1304
        %v1306 = vpop.f32.mrf.mxu0
        %v1307 = vadd.f32 %v886, %v1306
        %1308 = vmatmul.bf16.gmra.mxu0 %v807
        %v1309 = vpop.f32.mrf.mxu0
        %v1310 = vadd.f32 %v886, %v1309
        %v1311 = vpop.f32.mrf.mxu0
        %v1312 = vadd.f32 %v886, %v1311
        %1313 = vmatmul.bf16.gmra.mxu0 %v808
        %v1314 = vpop.f32.mrf.mxu0
        %v1315 = vadd.f32 %v886, %v1314
        %v1316 = vpop.f32.mrf.mxu0
        %v1317 = vadd.f32 %v886, %v1316
        %1318 = vmatmul.bf16.gmra.mxu0 %v809
        %v1319 = vpop.f32.mrf.mxu0
        %v1320 = vadd.f32 %v886, %v1319
        %v1321 = vpop.f32.mrf.mxu0
        %v1322 = vadd.f32 %v886, %v1321
        %1323 = vmatmul.bf16.gmra.mxu0 %v810
        %v1324 = vpop.f32.mrf.mxu0
        %v1325 = vadd.f32 %v886, %v1324
        %v1326 = vpop.f32.mrf.mxu0
        %v1327 = vadd.f32 %v886, %v1326
        %1328 = vmatmul.bf16.gmra.mxu0 %v811
        %v1329 = vpop.f32.mrf.mxu0
        %v1330 = vadd.f32 %v886, %v1329
        %v1331 = vpop.f32.mrf.mxu0
        %v1332 = vadd.f32 %v886, %v1331
        %1333 = vmatmul.bf16.gmra.mxu0 %v812
        %v1334 = vpop.f32.mrf.mxu0
        %v1335 = vadd.f32 %v886, %v1334
        %v1336 = vpop.f32.mrf.mxu0
        %v1337 = vadd.f32 %v886, %v1336
        %1338 = vmatmul.bf16.gmra.mxu0 %v813
        %v1339 = vpop.f32.mrf.mxu0
        %v1340 = vadd.f32 %v886, %v1339
        %v1341 = vpop.f32.mrf.mxu0
        %v1342 = vadd.f32 %v886, %v1341
        %1343 = vmatmul.bf16.gmra.mxu0 %v814
        %v1344 = vpop.f32.mrf.mxu0
        %v1345 = vadd.f32 %v886, %v1344
        %v1346 = vpop.f32.mrf.mxu0
        %v1347 = vadd.f32 %v886, %v1346
        %1348 = vmatmul.bf16.gmra.mxu0 %v815
        %v1349 = vpop.f32.mrf.mxu0
        %v1350 = vadd.f32 %v886, %v1349
        %v1351 = vpop.f32.mrf.mxu0
        %v1352 = vadd.f32 %v886, %v1351
        %1353 = vmatmul.bf16.gmra.mxu0 %v816
        %v1354 = vpop.f32.mrf.mxu0
        %v1355 = vadd.f32 %v886, %v1354
        %v1356 = vpop.f32.mrf.mxu0
        %v1357 = vadd.f32 %v886, %v1356
        %1358 = vmatmul.bf16.gmra.mxu0 %v817
        %v1359 = vpop.f32.mrf.mxu0
        %v1360 = vadd.f32 %v886, %v1359
        %v1361 = vpop.f32.mrf.mxu0
        %v1362 = vadd.f32 %v886, %v1361
        %1363 = vmatmul.bf16.gmra.mxu0 %v818
        %v1364 = vpop.f32.mrf.mxu0
        %v1365 = vadd.f32 %v886, %v1364
        %v1366 = vpop.f32.mrf.mxu0
        %v1367 = vadd.f32 %v886, %v1366
        %1368 = vdwg.mxu0
        %1369 = vmatpush.bf16.msra.mxu0 %v1151
        %1370 = vmatpush.bf16.msra.mxu0 %v1143
        %1371 = vmatpush.bf16.msra.mxu0 %v1135
        %1372 = vmatpush.bf16.msra.mxu0 %v1127
        %1373 = vmatpush.bf16.msra.mxu0 %v1119
        %1374 = vmatpush.bf16.msra.mxu0 %v1111
        %1375 = vmatpush.bf16.msra.mxu0 %v1103
        %1376 = vmatpush.bf16.msra.mxu0 %v1095
        %1377 = vmatmul.bf16.gmra.mxu0 %v806
        %v1378 = vpop.f32.mrf.mxu0
        %v1379 = vadd.f32 %v887, %v1378
        %v1380 = vpop.f32.mrf.mxu0
        %v1381 = vadd.f32 %v887, %v1380
        %1382 = vmatmul.bf16.gmra.mxu0 %v807
        %v1383 = vpop.f32.mrf.mxu0
        %v1384 = vadd.f32 %v887, %v1383
        %v1385 = vpop.f32.mrf.mxu0
        %v1386 = vadd.f32 %v887, %v1385
        %1387 = vmatmul.bf16.gmra.mxu0 %v808
        %v1388 = vpop.f32.mrf.mxu0
        %v1389 = vadd.f32 %v887, %v1388
        %v1390 = vpop.f32.mrf.mxu0
        %v1391 = vadd.f32 %v887, %v1390
        %1392 = vmatmul.bf16.gmra.mxu0 %v809
        %v1393 = vpop.f32.mrf.mxu0
        %v1394 = vadd.f32 %v887, %v1393
        %v1395 = vpop.f32.mrf.mxu0
        %v1396 = vadd.f32 %v887, %v1395
        %1397 = vmatmul.bf16.gmra.mxu0 %v810
        %v1398 = vpop.f32.mrf.mxu0
        %v1399 = vadd.f32 %v887, %v1398
        %v1400 = vpop.f32.mrf.mxu0
        %v1401 = vadd.f32 %v887, %v1400
        %1402 = vmatmul.bf16.gmra.mxu0 %v811
        %v1403 = vpop.f32.mrf.mxu0
        %v1404 = vadd.f32 %v887, %v1403
        %v1405 = vpop.f32.mrf.mxu0
        %v1406 = vadd.f32 %v887, %v1405
        %1407 = vmatmul.bf16.gmra.mxu0 %v812
        %v1408 = vpop.f32.mrf.mxu0
        %v1409 = vadd.f32 %v887, %v1408
        %v1410 = vpop.f32.mrf.mxu0
        %v1411 = vadd.f32 %v887, %v1410
        %1412 = vmatmul.bf16.gmra.mxu0 %v813
        %v1413 = vpop.f32.mrf.mxu0
        %v1414 = vadd.f32 %v887, %v1413
        %v1415 = vpop.f32.mrf.mxu0
        %v1416 = vadd.f32 %v887, %v1415
        %1417 = vmatmul.bf16.gmra.mxu0 %v814
        %v1418 = vpop.f32.mrf.mxu0
        %v1419 = vadd.f32 %v887, %v1418
        %v1420 = vpop.f32.mrf.mxu0
        %v1421 = vadd.f32 %v887, %v1420
        %1422 = vmatmul.bf16.gmra.mxu0 %v815
        %v1423 = vpop.f32.mrf.mxu0
        %v1424 = vadd.f32 %v887, %v1423
        %v1425 = vpop.f32.mrf.mxu0
        %v1426 = vadd.f32 %v887, %v1425
        %1427 = vmatmul.bf16.gmra.mxu0 %v816
        %v1428 = vpop.f32.mrf.mxu0
        %v1429 = vadd.f32 %v887, %v1428
        %v1430 = vpop.f32.mrf.mxu0
        %v1431 = vadd.f32 %v887, %v1430
        %1432 = vmatmul.bf16.gmra.mxu0 %v817
        %v1433 = vpop.f32.mrf.mxu0
        %v1434 = vadd.f32 %v887, %v1433
        %v1435 = vpop.f32.mrf.mxu0
        %v1436 = vadd.f32 %v887, %v1435
        %1437 = vmatmul.bf16.gmra.mxu0 %v818
        %v1438 = vpop.f32.mrf.mxu0
        %v1439 = vadd.f32 %v887, %v1438
        %v1440 = vpop.f32.mrf.mxu0
        %v1441 = vadd.f32 %v887, %v1440
        %1442 = vdwg.mxu0
        %1443 = vmatpush.bf16.msra.mxu0 %v1152
        %1444 = vmatpush.bf16.msra.mxu0 %v1144
        %1445 = vmatpush.bf16.msra.mxu0 %v1136
        %1446 = vmatpush.bf16.msra.mxu0 %v1128
        %1447 = vmatpush.bf16.msra.mxu0 %v1120
        %1448 = vmatpush.bf16.msra.mxu0 %v1112
        %1449 = vmatpush.bf16.msra.mxu0 %v1104
        %1450 = vmatpush.bf16.msra.mxu0 %v1096
        %1451 = vmatmul.bf16.gmra.mxu0 %v806
        %v1452 = vpop.f32.mrf.mxu0
        %v1453 = vadd.f32 %v888, %v1452
        %v1454 = vpop.f32.mrf.mxu0
        %v1455 = vadd.f32 %v888, %v1454
        %1456 = vmatmul.bf16.gmra.mxu0 %v807
        %v1457 = vpop.f32.mrf.mxu0
        %v1458 = vadd.f32 %v888, %v1457
        %v1459 = vpop.f32.mrf.mxu0
        %v1460 = vadd.f32 %v888, %v1459
        %1461 = vmatmul.bf16.gmra.mxu0 %v808
        %v1462 = vpop.f32.mrf.mxu0
        %v1463 = vadd.f32 %v888, %v1462
        %v1464 = vpop.f32.mrf.mxu0
        %v1465 = vadd.f32 %v888, %v1464
        %1466 = vmatmul.bf16.gmra.mxu0 %v809
        %v1467 = vpop.f32.mrf.mxu0
        %v1468 = vadd.f32 %v888, %v1467
        %v1469 = vpop.f32.mrf.mxu0
        %v1470 = vadd.f32 %v888, %v1469
        %1471 = vmatmul.bf16.gmra.mxu0 %v810
        %v1472 = vpop.f32.mrf.mxu0
        %v1473 = vadd.f32 %v888, %v1472
        %v1474 = vpop.f32.mrf.mxu0
        %v1475 = vadd.f32 %v888, %v1474
        %1476 = vmatmul.bf16.gmra.mxu0 %v811
        %v1477 = vpop.f32.mrf.mxu0
        %v1478 = vadd.f32 %v888, %v1477
        %v1479 = vpop.f32.mrf.mxu0
        %v1480 = vadd.f32 %v888, %v1479
        %1481 = vmatmul.bf16.gmra.mxu0 %v812
        %v1482 = vpop.f32.mrf.mxu0
        %v1483 = vadd.f32 %v888, %v1482
        %v1484 = vpop.f32.mrf.mxu0
        %v1485 = vadd.f32 %v888, %v1484
        %1486 = vmatmul.bf16.gmra.mxu0 %v813
        %v1487 = vpop.f32.mrf.mxu0
        %v1488 = vadd.f32 %v888, %v1487
        %v1489 = vpop.f32.mrf.mxu0
        %v1490 = vadd.f32 %v888, %v1489
        %1491 = vmatmul.bf16.gmra.mxu0 %v814
        %v1492 = vpop.f32.mrf.mxu0
        %v1493 = vadd.f32 %v888, %v1492
        %v1494 = vpop.f32.mrf.mxu0
        %v1495 = vadd.f32 %v888, %v1494
        %1496 = vmatmul.bf16.gmra.mxu0 %v815
        %v1497 = vpop.f32.mrf.mxu0
        %v1498 = vadd.f32 %v888, %v1497
        %v1499 = vpop.f32.mrf.mxu0
        %v1500 = vadd.f32 %v888, %v1499
        %1501 = vmatmul.bf16.gmra.mxu0 %v816
        %v1502 = vpop.f32.mrf.mxu0
        %v1503 = vadd.f32 %v888, %v1502
        %v1504 = vpop.f32.mrf.mxu0
        %v1505 = vadd.f32 %v888, %v1504
        %1506 = vmatmul.bf16.gmra.mxu0 %v817
        %v1507 = vpop.f32.mrf.mxu0
        %v1508 = vadd.f32 %v888, %v1507
        %v1509 = vpop.f32.mrf.mxu0
        %v1510 = vadd.f32 %v888, %v1509
        %1511 = vmatmul.bf16.gmra.mxu0 %v818
        %v1512 = vpop.f32.mrf.mxu0
        %v1513 = vadd.f32 %v888, %v1512
        %v1514 = vpop.f32.mrf.mxu0
        %v1515 = vadd.f32 %v888, %v1514
        %1516 = vdwg.mxu0
        %1517 = vmatpush.bf16.msra.mxu0 %v1153
        %1518 = vmatpush.bf16.msra.mxu0 %v1145
        %1519 = vmatpush.bf16.msra.mxu0 %v1137
        %1520 = vmatpush.bf16.msra.mxu0 %v1129
        %1521 = vmatpush.bf16.msra.mxu0 %v1121
        %1522 = vmatpush.bf16.msra.mxu0 %v1113
        %1523 = vmatpush.bf16.msra.mxu0 %v1105
        %1524 = vmatpush.bf16.msra.mxu0 %v1097
        %1525 = vmatmul.bf16.gmra.mxu0 %v806
        %v1526 = vpop.f32.mrf.mxu0
        %v1527 = vadd.f32 %v889, %v1526
        %v1528 = vpop.f32.mrf.mxu0
        %v1529 = vadd.f32 %v889, %v1528
        %1530 = vmatmul.bf16.gmra.mxu0 %v807
        %v1531 = vpop.f32.mrf.mxu0
        %v1532 = vadd.f32 %v889, %v1531
        %v1533 = vpop.f32.mrf.mxu0
        %v1534 = vadd.f32 %v889, %v1533
        %1535 = vmatmul.bf16.gmra.mxu0 %v808
        %v1536 = vpop.f32.mrf.mxu0
        %v1537 = vadd.f32 %v889, %v1536
        %v1538 = vpop.f32.mrf.mxu0
        %v1539 = vadd.f32 %v889, %v1538
        %1540 = vmatmul.bf16.gmra.mxu0 %v809
        %v1541 = vpop.f32.mrf.mxu0
        %v1542 = vadd.f32 %v889, %v1541
        %v1543 = vpop.f32.mrf.mxu0
        %v1544 = vadd.f32 %v889, %v1543
        %1545 = vmatmul.bf16.gmra.mxu0 %v810
        %v1546 = vpop.f32.mrf.mxu0
        %v1547 = vadd.f32 %v889, %v1546
        %v1548 = vpop.f32.mrf.mxu0
        %v1549 = vadd.f32 %v889, %v1548
        %1550 = vmatmul.bf16.gmra.mxu0 %v811
        %v1551 = vpop.f32.mrf.mxu0
        %v1552 = vadd.f32 %v889, %v1551
        %v1553 = vpop.f32.mrf.mxu0
        %v1554 = vadd.f32 %v889, %v1553
        %1555 = vmatmul.bf16.gmra.mxu0 %v812
        %v1556 = vpop.f32.mrf.mxu0
        %v1557 = vadd.f32 %v889, %v1556
        %v1558 = vpop.f32.mrf.mxu0
        %v1559 = vadd.f32 %v889, %v1558
        %1560 = vmatmul.bf16.gmra.mxu0 %v813
        %v1561 = vpop.f32.mrf.mxu0
        %v1562 = vadd.f32 %v889, %v1561
        %v1563 = vpop.f32.mrf.mxu0
        %v1564 = vadd.f32 %v889, %v1563
        %1565 = vmatmul.bf16.gmra.mxu0 %v814
        %v1566 = vpop.f32.mrf.mxu0
        %v1567 = vadd.f32 %v889, %v1566
        %v1568 = vpop.f32.mrf.mxu0
        %v1569 = vadd.f32 %v889, %v1568
        %1570 = vmatmul.bf16.gmra.mxu0 %v815
        %v1571 = vpop.f32.mrf.mxu0
        %v1572 = vadd.f32 %v889, %v1571
        %v1573 = vpop.f32.mrf.mxu0
        %v1574 = vadd.f32 %v889, %v1573
        %1575 = vmatmul.bf16.gmra.mxu0 %v816
        %v1576 = vpop.f32.mrf.mxu0
        %v1577 = vadd.f32 %v889, %v1576
        %v1578 = vpop.f32.mrf.mxu0
        %v1579 = vadd.f32 %v889, %v1578
        %1580 = vmatmul.bf16.gmra.mxu0 %v817
        %v1581 = vpop.f32.mrf.mxu0
        %v1582 = vadd.f32 %v889, %v1581
        %v1583 = vpop.f32.mrf.mxu0
        %v1584 = vadd.f32 %v889, %v1583
        %1585 = vmatmul.bf16.gmra.mxu0 %v818
        %v1586 = vpop.f32.mrf.mxu0
        %v1587 = vadd.f32 %v889, %v1586
        %v1588 = vpop.f32.mrf.mxu0
        %v1589 = vadd.f32 %v889, %v1588
        %1590 = vdwg.mxu0
        %1591 = vmatpush.bf16.msra.mxu0 %v1154
        %1592 = vmatpush.bf16.msra.mxu0 %v1146
        %1593 = vmatpush.bf16.msra.mxu0 %v1138
        %1594 = vmatpush.bf16.msra.mxu0 %v1130
        %1595 = vmatpush.bf16.msra.mxu0 %v1122
        %1596 = vmatpush.bf16.msra.mxu0 %v1114
        %1597 = vmatpush.bf16.msra.mxu0 %v1106
        %1598 = vmatpush.bf16.msra.mxu0 %v1098
        %1599 = vmatmul.bf16.gmra.mxu0 %v806
        %v1600 = vpop.f32.mrf.mxu0
        %v1601 = vadd.f32 %v890, %v1600
        %v1602 = vpop.f32.mrf.mxu0
        %v1603 = vadd.f32 %v890, %v1602
        %1604 = vmatmul.bf16.gmra.mxu0 %v807
        %v1605 = vpop.f32.mrf.mxu0
        %v1606 = vadd.f32 %v890, %v1605
        %v1607 = vpop.f32.mrf.mxu0
        %v1608 = vadd.f32 %v890, %v1607
        %1609 = vmatmul.bf16.gmra.mxu0 %v808
        %v1610 = vpop.f32.mrf.mxu0
        %v1611 = vadd.f32 %v890, %v1610
        %v1612 = vpop.f32.mrf.mxu0
        %v1613 = vadd.f32 %v890, %v1612
        %1614 = vmatmul.bf16.gmra.mxu0 %v809
        %v1615 = vpop.f32.mrf.mxu0
        %v1616 = vadd.f32 %v890, %v1615
        %v1617 = vpop.f32.mrf.mxu0
        %v1618 = vadd.f32 %v890, %v1617
        %1619 = vmatmul.bf16.gmra.mxu0 %v810
        %v1620 = vpop.f32.mrf.mxu0
        %v1621 = vadd.f32 %v890, %v1620
        %v1622 = vpop.f32.mrf.mxu0
        %v1623 = vadd.f32 %v890, %v1622
        %1624 = vmatmul.bf16.gmra.mxu0 %v811
        %v1625 = vpop.f32.mrf.mxu0
        %v1626 = vadd.f32 %v890, %v1625
        %v1627 = vpop.f32.mrf.mxu0
        %v1628 = vadd.f32 %v890, %v1627
        %1629 = vmatmul.bf16.gmra.mxu0 %v812
        %v1630 = vpop.f32.mrf.mxu0
        %v1631 = vadd.f32 %v890, %v1630
        %v1632 = vpop.f32.mrf.mxu0
        %v1633 = vadd.f32 %v890, %v1632
        %1634 = vmatmul.bf16.gmra.mxu0 %v813
        %v1635 = vpop.f32.mrf.mxu0
        %v1636 = vadd.f32 %v890, %v1635
        %v1637 = vpop.f32.mrf.mxu0
        %v1638 = vadd.f32 %v890, %v1637
        %1639 = vmatmul.bf16.gmra.mxu0 %v814
        %v1640 = vpop.f32.mrf.mxu0
        %v1641 = vadd.f32 %v890, %v1640
        %v1642 = vpop.f32.mrf.mxu0
        %v1643 = vadd.f32 %v890, %v1642
        %1644 = vmatmul.bf16.gmra.mxu0 %v815
        %v1645 = vpop.f32.mrf.mxu0
        %v1646 = vadd.f32 %v890, %v1645
        %v1647 = vpop.f32.mrf.mxu0
        %v1648 = vadd.f32 %v890, %v1647
        %1649 = vmatmul.bf16.gmra.mxu0 %v816
        %v1650 = vpop.f32.mrf.mxu0
        %v1651 = vadd.f32 %v890, %v1650
        %v1652 = vpop.f32.mrf.mxu0
        %v1653 = vadd.f32 %v890, %v1652
        %1654 = vmatmul.bf16.gmra.mxu0 %v817
        %v1655 = vpop.f32.mrf.mxu0
        %v1656 = vadd.f32 %v890, %v1655
        %v1657 = vpop.f32.mrf.mxu0
        %v1658 = vadd.f32 %v890, %v1657
        %1659 = vmatmul.bf16.gmra.mxu0 %v818
        %v1660 = vpop.f32.mrf.mxu0
        %v1661 = vadd.f32 %v890, %v1660
        %v1662 = vpop.f32.mrf.mxu0
        %v1663 = vadd.f32 %v890, %v1662
        %1664 = vdwg.mxu0
        %1665 = vmatpush.bf16.msra.mxu0 %v1155
        %1666 = vmatpush.bf16.msra.mxu0 %v1147
        %1667 = vmatpush.bf16.msra.mxu0 %v1139
        %1668 = vmatpush.bf16.msra.mxu0 %v1131
        %1669 = vmatpush.bf16.msra.mxu0 %v1123
        %1670 = vmatpush.bf16.msra.mxu0 %v1115
        %1671 = vmatpush.bf16.msra.mxu0 %v1107
        %1672 = vmatpush.bf16.msra.mxu0 %v1099
        %1673 = vmatmul.bf16.gmra.mxu0 %v806
        %v1674 = vpop.f32.mrf.mxu0
        %v1675 = vadd.f32 %v891, %v1674
        %v1676 = vpop.f32.mrf.mxu0
        %v1677 = vadd.f32 %v891, %v1676
        %1678 = vmatmul.bf16.gmra.mxu0 %v807
        %v1679 = vpop.f32.mrf.mxu0
        %v1680 = vadd.f32 %v891, %v1679
        %v1681 = vpop.f32.mrf.mxu0
        %v1682 = vadd.f32 %v891, %v1681
        %1683 = vmatmul.bf16.gmra.mxu0 %v808
        %v1684 = vpop.f32.mrf.mxu0
        %v1685 = vadd.f32 %v891, %v1684
        %v1686 = vpop.f32.mrf.mxu0
        %v1687 = vadd.f32 %v891, %v1686
        %1688 = vmatmul.bf16.gmra.mxu0 %v809
        %v1689 = vpop.f32.mrf.mxu0
        %v1690 = vadd.f32 %v891, %v1689
        %v1691 = vpop.f32.mrf.mxu0
        %v1692 = vadd.f32 %v891, %v1691
        %1693 = vmatmul.bf16.gmra.mxu0 %v810
        %v1694 = vpop.f32.mrf.mxu0
        %v1695 = vadd.f32 %v891, %v1694
        %v1696 = vpop.f32.mrf.mxu0
        %v1697 = vadd.f32 %v891, %v1696
        %1698 = vmatmul.bf16.gmra.mxu0 %v811
        %v1699 = vpop.f32.mrf.mxu0
        %v1700 = vadd.f32 %v891, %v1699
        %v1701 = vpop.f32.mrf.mxu0
        %v1702 = vadd.f32 %v891, %v1701
        %1703 = vmatmul.bf16.gmra.mxu0 %v812
        %v1704 = vpop.f32.mrf.mxu0
        %v1705 = vadd.f32 %v891, %v1704
        %v1706 = vpop.f32.mrf.mxu0
        %v1707 = vadd.f32 %v891, %v1706
        %1708 = vmatmul.bf16.gmra.mxu0 %v813
        %v1709 = vpop.f32.mrf.mxu0
        %v1710 = vadd.f32 %v891, %v1709
        %v1711 = vpop.f32.mrf.mxu0
        %v1712 = vadd.f32 %v891, %v1711
        %1713 = vmatmul.bf16.gmra.mxu0 %v814
        %v1714 = vpop.f32.mrf.mxu0
        %v1715 = vadd.f32 %v891, %v1714
        %v1716 = vpop.f32.mrf.mxu0
        %v1717 = vadd.f32 %v891, %v1716
        %1718 = vmatmul.bf16.gmra.mxu0 %v815
        %v1719 = vpop.f32.mrf.mxu0
        %v1720 = vadd.f32 %v891, %v1719
        %v1721 = vpop.f32.mrf.mxu0
        %v1722 = vadd.f32 %v891, %v1721
        %1723 = vmatmul.bf16.gmra.mxu0 %v816
        %v1724 = vpop.f32.mrf.mxu0
        %v1725 = vadd.f32 %v891, %v1724
        %v1726 = vpop.f32.mrf.mxu0
        %v1727 = vadd.f32 %v891, %v1726
        %1728 = vmatmul.bf16.gmra.mxu0 %v817
        %v1729 = vpop.f32.mrf.mxu0
        %v1730 = vadd.f32 %v891, %v1729
        %v1731 = vpop.f32.mrf.mxu0
        %v1732 = vadd.f32 %v891, %v1731
        %1733 = vmatmul.bf16.gmra.mxu0 %v818
        %v1734 = vpop.f32.mrf.mxu0
        %v1735 = vadd.f32 %v891, %v1734
        %v1736 = vpop.f32.mrf.mxu0
        %v1737 = vadd.f32 %v891, %v1736
        %1738 = vdwg.mxu0
        %1739 = vmatpush.bf16.msra.mxu0 %v1156
        %1740 = vmatpush.bf16.msra.mxu0 %v1148
        %1741 = vmatpush.bf16.msra.mxu0 %v1140
        %1742 = vmatpush.bf16.msra.mxu0 %v1132
        %1743 = vmatpush.bf16.msra.mxu0 %v1124
        %1744 = vmatpush.bf16.msra.mxu0 %v1116
        %1745 = vmatpush.bf16.msra.mxu0 %v1108
        %1746 = vmatpush.bf16.msra.mxu0 %v1100
        %1747 = vmatmul.bf16.gmra.mxu0 %v806
        %v1748 = vpop.f32.mrf.mxu0
        %v1749 = vadd.f32 %v892, %v1748
        %v1750 = vpop.f32.mrf.mxu0
        %v1751 = vadd.f32 %v892, %v1750
        %1752 = vmatmul.bf16.gmra.mxu0 %v807
        %v1753 = vpop.f32.mrf.mxu0
        %v1754 = vadd.f32 %v892, %v1753
        %v1755 = vpop.f32.mrf.mxu0
        %v1756 = vadd.f32 %v892, %v1755
        %1757 = vmatmul.bf16.gmra.mxu0 %v808
        %v1758 = vpop.f32.mrf.mxu0
        %v1759 = vadd.f32 %v892, %v1758
        %v1760 = vpop.f32.mrf.mxu0
        %v1761 = vadd.f32 %v892, %v1760
        %1762 = vmatmul.bf16.gmra.mxu0 %v809
        %v1763 = vpop.f32.mrf.mxu0
        %v1764 = vadd.f32 %v892, %v1763
        %v1765 = vpop.f32.mrf.mxu0
        %v1766 = vadd.f32 %v892, %v1765
        %1767 = vmatmul.bf16.gmra.mxu0 %v810
        %v1768 = vpop.f32.mrf.mxu0
        %v1769 = vadd.f32 %v892, %v1768
        %v1770 = vpop.f32.mrf.mxu0
        %v1771 = vadd.f32 %v892, %v1770
        %1772 = vmatmul.bf16.gmra.mxu0 %v811
        %v1773 = vpop.f32.mrf.mxu0
        %v1774 = vadd.f32 %v892, %v1773
        %v1775 = vpop.f32.mrf.mxu0
        %v1776 = vadd.f32 %v892, %v1775
        %1777 = vmatmul.bf16.gmra.mxu0 %v812
        %v1778 = vpop.f32.mrf.mxu0
        %v1779 = vadd.f32 %v892, %v1778
        %v1780 = vpop.f32.mrf.mxu0
        %v1781 = vadd.f32 %v892, %v1780
        %1782 = vmatmul.bf16.gmra.mxu0 %v813
        %v1783 = vpop.f32.mrf.mxu0
        %v1784 = vadd.f32 %v892, %v1783
        %v1785 = vpop.f32.mrf.mxu0
        %v1786 = vadd.f32 %v892, %v1785
        %1787 = vmatmul.bf16.gmra.mxu0 %v814
        %v1788 = vpop.f32.mrf.mxu0
        %v1789 = vadd.f32 %v892, %v1788
        %v1790 = vpop.f32.mrf.mxu0
        %v1791 = vadd.f32 %v892, %v1790
        %1792 = vmatmul.bf16.gmra.mxu0 %v815
        %v1793 = vpop.f32.mrf.mxu0
        %v1794 = vadd.f32 %v892, %v1793
        %v1795 = vpop.f32.mrf.mxu0
        %v1796 = vadd.f32 %v892, %v1795
        %1797 = vmatmul.bf16.gmra.mxu0 %v816
        %v1798 = vpop.f32.mrf.mxu0
        %v1799 = vadd.f32 %v892, %v1798
        %v1800 = vpop.f32.mrf.mxu0
        %v1801 = vadd.f32 %v892, %v1800
        %1802 = vmatmul.bf16.gmra.mxu0 %v817
        %v1803 = vpop.f32.mrf.mxu0
        %v1804 = vadd.f32 %v892, %v1803
        %v1805 = vpop.f32.mrf.mxu0
        %v1806 = vadd.f32 %v892, %v1805
        %1807 = vmatmul.bf16.gmra.mxu0 %v818
        %v1808 = vpop.f32.mrf.mxu0
        %v1809 = vadd.f32 %v892, %v1808
        %v1810 = vpop.f32.mrf.mxu0
        %v1811 = vadd.f32 %v892, %v1810
        %1812 = vdwg.mxu0
        %v1813 = vmax.f32 %v1231, 0.0
        %v1814 = vmax.f32 %v1305, 0.0
        %v1815 = vmax.f32 %v1379, 0.0
        %v1816 = vmax.f32 %v1453, 0.0
        %v1817 = vmax.f32 %v1527, 0.0
        %v1818 = vmax.f32 %v1601, 0.0
        %v1819 = vmax.f32 %v1675, 0.0
        %v1820 = vmax.f32 %v1749, 0.0
        %v1821 = vmax.f32 %v1233, 0.0
        %v1822 = vmax.f32 %v1307, 0.0
        %v1823 = vmax.f32 %v1381, 0.0
        %v1824 = vmax.f32 %v1455, 0.0
        %v1825 = vmax.f32 %v1529, 0.0
        %v1826 = vmax.f32 %v1603, 0.0
        %v1827 = vmax.f32 %v1677, 0.0
        %v1828 = vmax.f32 %v1751, 0.0
        %v1829 = vmax.f32 %v1236, 0.0
        %v1830 = vmax.f32 %v1310, 0.0
        %v1831 = vmax.f32 %v1384, 0.0
        %v1832 = vmax.f32 %v1458, 0.0
        %v1833 = vmax.f32 %v1532, 0.0
        %v1834 = vmax.f32 %v1606, 0.0
        %v1835 = vmax.f32 %v1680, 0.0
        %v1836 = vmax.f32 %v1754, 0.0
        %v1837 = vmax.f32 %v1238, 0.0
        %v1838 = vmax.f32 %v1312, 0.0
        %v1839 = vmax.f32 %v1386, 0.0
        %v1840 = vmax.f32 %v1460, 0.0
        %v1841 = vmax.f32 %v1534, 0.0
        %v1842 = vmax.f32 %v1608, 0.0
        %v1843 = vmax.f32 %v1682, 0.0
        %v1844 = vmax.f32 %v1756, 0.0
        %v1845 = vmax.f32 %v1241, 0.0
        %v1846 = vmax.f32 %v1315, 0.0
        %v1847 = vmax.f32 %v1389, 0.0
        %v1848 = vmax.f32 %v1463, 0.0
        %v1849 = vmax.f32 %v1537, 0.0
        %v1850 = vmax.f32 %v1611, 0.0
        %v1851 = vmax.f32 %v1685, 0.0
        %v1852 = vmax.f32 %v1759, 0.0
        %v1853 = vmax.f32 %v1243, 0.0
        %v1854 = vmax.f32 %v1317, 0.0
        %v1855 = vmax.f32 %v1391, 0.0
        %v1856 = vmax.f32 %v1465, 0.0
        %v1857 = vmax.f32 %v1539, 0.0
        %v1858 = vmax.f32 %v1613, 0.0
        %v1859 = vmax.f32 %v1687, 0.0
        %v1860 = vmax.f32 %v1761, 0.0
        %v1861 = vmax.f32 %v1246, 0.0
        %v1862 = vmax.f32 %v1320, 0.0
        %v1863 = vmax.f32 %v1394, 0.0
        %v1864 = vmax.f32 %v1468, 0.0
        %v1865 = vmax.f32 %v1542, 0.0
        %v1866 = vmax.f32 %v1616, 0.0
        %v1867 = vmax.f32 %v1690, 0.0
        %v1868 = vmax.f32 %v1764, 0.0
        %v1869 = vmax.f32 %v1248, 0.0
        %v1870 = vmax.f32 %v1322, 0.0
        %v1871 = vmax.f32 %v1396, 0.0
        %v1872 = vmax.f32 %v1470, 0.0
        %v1873 = vmax.f32 %v1544, 0.0
        %v1874 = vmax.f32 %v1618, 0.0
        %v1875 = vmax.f32 %v1692, 0.0
        %v1876 = vmax.f32 %v1766, 0.0
        %v1877 = vmax.f32 %v1251, 0.0
        %v1878 = vmax.f32 %v1325, 0.0
        %v1879 = vmax.f32 %v1399, 0.0
        %v1880 = vmax.f32 %v1473, 0.0
        %v1881 = vmax.f32 %v1547, 0.0
        %v1882 = vmax.f32 %v1621, 0.0
        %v1883 = vmax.f32 %v1695, 0.0
        %v1884 = vmax.f32 %v1769, 0.0
        %v1885 = vmax.f32 %v1253, 0.0
        %v1886 = vmax.f32 %v1327, 0.0
        %v1887 = vmax.f32 %v1401, 0.0
        %v1888 = vmax.f32 %v1475, 0.0
        %v1889 = vmax.f32 %v1549, 0.0
        %v1890 = vmax.f32 %v1623, 0.0
        %v1891 = vmax.f32 %v1697, 0.0
        %v1892 = vmax.f32 %v1771, 0.0
        %v1893 = vmax.f32 %v1256, 0.0
        %v1894 = vmax.f32 %v1330, 0.0
        %v1895 = vmax.f32 %v1404, 0.0
        %v1896 = vmax.f32 %v1478, 0.0
        %v1897 = vmax.f32 %v1552, 0.0
        %v1898 = vmax.f32 %v1626, 0.0
        %v1899 = vmax.f32 %v1700, 0.0
        %v1900 = vmax.f32 %v1774, 0.0
        %v1901 = vmax.f32 %v1258, 0.0
        %v1902 = vmax.f32 %v1332, 0.0
        %v1903 = vmax.f32 %v1406, 0.0
        %v1904 = vmax.f32 %v1480, 0.0
        %v1905 = vmax.f32 %v1554, 0.0
        %v1906 = vmax.f32 %v1628, 0.0
        %v1907 = vmax.f32 %v1702, 0.0
        %v1908 = vmax.f32 %v1776, 0.0
        %v1909 = vmax.f32 %v1261, 0.0
        %v1910 = vmax.f32 %v1335, 0.0
        %v1911 = vmax.f32 %v1409, 0.0
        %v1912 = vmax.f32 %v1483, 0.0
        %v1913 = vmax.f32 %v1557, 0.0
        %v1914 = vmax.f32 %v1631, 0.0
        %v1915 = vmax.f32 %v1705, 0.0
        %v1916 = vmax.f32 %v1779, 0.0
        %v1917 = vmax.f32 %v1263, 0.0
        %v1918 = vmax.f32 %v1337, 0.0
        %v1919 = vmax.f32 %v1411, 0.0
        %v1920 = vmax.f32 %v1485, 0.0
        %v1921 = vmax.f32 %v1559, 0.0
        %v1922 = vmax.f32 %v1633, 0.0
        %v1923 = vmax.f32 %v1707, 0.0
        %v1924 = vmax.f32 %v1781, 0.0
        %v1925 = vmax.f32 %v1266, 0.0
        %v1926 = vmax.f32 %v1340, 0.0
        %v1927 = vmax.f32 %v1414, 0.0
        %v1928 = vmax.f32 %v1488, 0.0
        %v1929 = vmax.f32 %v1562, 0.0
        %v1930 = vmax.f32 %v1636, 0.0
        %v1931 = vmax.f32 %v1710, 0.0
        %v1932 = vmax.f32 %v1784, 0.0
        %v1933 = vmax.f32 %v1268, 0.0
        %v1934 = vmax.f32 %v1342, 0.0
        %v1935 = vmax.f32 %v1416, 0.0
        %v1936 = vmax.f32 %v1490, 0.0
        %v1937 = vmax.f32 %v1564, 0.0
        %v1938 = vmax.f32 %v1638, 0.0
        %v1939 = vmax.f32 %v1712, 0.0
        %v1940 = vmax.f32 %v1786, 0.0
        %v1941 = vmax.f32 %v1271, 0.0
        %v1942 = vmax.f32 %v1345, 0.0
        %v1943 = vmax.f32 %v1419, 0.0
        %v1944 = vmax.f32 %v1493, 0.0
        %v1945 = vmax.f32 %v1567, 0.0
        %v1946 = vmax.f32 %v1641, 0.0
        %v1947 = vmax.f32 %v1715, 0.0
        %v1948 = vmax.f32 %v1789, 0.0
        %v1949 = vmax.f32 %v1273, 0.0
        %v1950 = vmax.f32 %v1347, 0.0
        %v1951 = vmax.f32 %v1421, 0.0
        %v1952 = vmax.f32 %v1495, 0.0
        %v1953 = vmax.f32 %v1569, 0.0
        %v1954 = vmax.f32 %v1643, 0.0
        %v1955 = vmax.f32 %v1717, 0.0
        %v1956 = vmax.f32 %v1791, 0.0
        %v1957 = vmax.f32 %v1276, 0.0
        %v1958 = vmax.f32 %v1350, 0.0
        %v1959 = vmax.f32 %v1424, 0.0
        %v1960 = vmax.f32 %v1498, 0.0
        %v1961 = vmax.f32 %v1572, 0.0
        %v1962 = vmax.f32 %v1646, 0.0
        %v1963 = vmax.f32 %v1720, 0.0
        %v1964 = vmax.f32 %v1794, 0.0
        %v1965 = vmax.f32 %v1278, 0.0
        %v1966 = vmax.f32 %v1352, 0.0
        %v1967 = vmax.f32 %v1426, 0.0
        %v1968 = vmax.f32 %v1500, 0.0
        %v1969 = vmax.f32 %v1574, 0.0
        %v1970 = vmax.f32 %v1648, 0.0
        %v1971 = vmax.f32 %v1722, 0.0
        %v1972 = vmax.f32 %v1796, 0.0
        %v1973 = vmax.f32 %v1281, 0.0
        %v1974 = vmax.f32 %v1355, 0.0
        %v1975 = vmax.f32 %v1429, 0.0
        %v1976 = vmax.f32 %v1503, 0.0
        %v1977 = vmax.f32 %v1577, 0.0
        %v1978 = vmax.f32 %v1651, 0.0
        %v1979 = vmax.f32 %v1725, 0.0
        %v1980 = vmax.f32 %v1799, 0.0
        %v1981 = vmax.f32 %v1283, 0.0
        %v1982 = vmax.f32 %v1357, 0.0
        %v1983 = vmax.f32 %v1431, 0.0
        %v1984 = vmax.f32 %v1505, 0.0
        %v1985 = vmax.f32 %v1579, 0.0
        %v1986 = vmax.f32 %v1653, 0.0
        %v1987 = vmax.f32 %v1727, 0.0
        %v1988 = vmax.f32 %v1801, 0.0
        %v1989 = vmax.f32 %v1286, 0.0
        %v1990 = vmax.f32 %v1360, 0.0
        %v1991 = vmax.f32 %v1434, 0.0
        %v1992 = vmax.f32 %v1508, 0.0
        %v1993 = vmax.f32 %v1582, 0.0
        %v1994 = vmax.f32 %v1656, 0.0
        %v1995 = vmax.f32 %v1730, 0.0
        %v1996 = vmax.f32 %v1804, 0.0
        %v1997 = vmax.f32 %v1288, 0.0
        %v1998 = vmax.f32 %v1362, 0.0
        %v1999 = vmax.f32 %v1436, 0.0
        %v2000 = vmax.f32 %v1510, 0.0
        %v2001 = vmax.f32 %v1584, 0.0
        %v2002 = vmax.f32 %v1658, 0.0
        %v2003 = vmax.f32 %v1732, 0.0
        %v2004 = vmax.f32 %v1806, 0.0
        %v2005 = vmax.f32 %v1291, 0.0
        %v2006 = vmax.f32 %v1365, 0.0
        %v2007 = vmax.f32 %v1439, 0.0
        %v2008 = vmax.f32 %v1513, 0.0
        %v2009 = vmax.f32 %v1587, 0.0
        %v2010 = vmax.f32 %v1661, 0.0
        %v2011 = vmax.f32 %v1735, 0.0
        %v2012 = vmax.f32 %v1809, 0.0
        %v2013 = vmax.f32 %v1293, 0.0
        %v2014 = vmax.f32 %v1367, 0.0
        %v2015 = vmax.f32 %v1441, 0.0
        %v2016 = vmax.f32 %v1515, 0.0
        %v2017 = vmax.f32 %v1589, 0.0
        %v2018 = vmax.f32 %v1663, 0.0
        %v2019 = vmax.f32 %v1737, 0.0
        %v2020 = vmax.f32 %v1811, 0.0
        %v2021 = vmax.f32 %v1813, %v1821
        %v2022 = vmax.f32 %v2021, %v1829
        %v2023 = vmax.f32 %v2022, %v1837
        %v2024 = vmax.f32 %v2023, %v1845
        %v2025 = vmax.f32 %v2024, %v1853
        %v2026 = vmax.f32 %v2025, %v1861
        %v2027 = vmax.f32 %v2026, %v1869
        %v2028 = vmax.f32 %v2027, %v1877
        %v2029 = vmax.f32 %v2028, %v1885
        %v2030 = vmax.f32 %v2029, %v1893
        %v2031 = vmax.f32 %v2030, %v1901
        %v2032 = vmax.f32 %v2031, %v1909
        %v2033 = vmax.f32 %v2032, %v1917
        %v2034 = vmax.f32 %v2033, %v1925
        %v2035 = vmax.f32 %v2034, %v1933
        %v2036 = vmax.f32 %v2035, %v1941
        %v2037 = vmax.f32 %v2036, %v1949
        %v2038 = vmax.f32 %v2037, %v1957
        %v2039 = vmax.f32 %v2038, %v1965
        %v2040 = vmax.f32 %v2039, %v1973
        %v2041 = vmax.f32 %v2040, %v1981
        %v2042 = vmax.f32 %v2041, %v1989
        %v2043 = vmax.f32 %v2042, %v1997
        %v2044 = vmax.f32 %v2043, %v2005
        %v2045 = vmax.f32 %v2044, %v2013
        %v2046 = vrot.slane %v2045, 4
        %v2047 = vmax.f32 %v2045, %v2046
        %v2048 = vrot.slane %v2047, 2
        %v2049 = vmax.f32 %v2047, %v2048
        %v2050 = vrot.slane %v2049, 1
        %v2051 = vmax.f32 %v2049, %v2050
        %v2052 = vmax.f32 %v1814, %v1822
        %v2053 = vmax.f32 %v2052, %v1830
        %v2054 = vmax.f32 %v2053, %v1838
        %v2055 = vmax.f32 %v2054, %v1846
        %v2056 = vmax.f32 %v2055, %v1854
        %v2057 = vmax.f32 %v2056, %v1862
        %v2058 = vmax.f32 %v2057, %v1870
        %v2059 = vmax.f32 %v2058, %v1878
        %v2060 = vmax.f32 %v2059, %v1886
        %v2061 = vmax.f32 %v2060, %v1894
        %v2062 = vmax.f32 %v2061, %v1902
        %v2063 = vmax.f32 %v2062, %v1910
        %v2064 = vmax.f32 %v2063, %v1918
        %v2065 = vmax.f32 %v2064, %v1926
        %v2066 = vmax.f32 %v2065, %v1934
        %v2067 = vmax.f32 %v2066, %v1942
        %v2068 = vmax.f32 %v2067, %v1950
        %v2069 = vmax.f32 %v2068, %v1958
        %v2070 = vmax.f32 %v2069, %v1966
        %v2071 = vmax.f32 %v2070, %v1974
        %v2072 = vmax.f32 %v2071, %v1982
        %v2073 = vmax.f32 %v2072, %v1990
        %v2074 = vmax.f32 %v2073, %v1998
        %v2075 = vmax.f32 %v2074, %v2006
        %v2076 = vmax.f32 %v2075, %v2014
        %v2077 = vrot.slane %v2076, 4
        %v2078 = vmax.f32 %v2076, %v2077
        %v2079 = vrot.slane %v2078, 2
        %v2080 = vmax.f32 %v2078, %v2079
        %v2081 = vrot.slane %v2080, 1
        %v2082 = vmax.f32 %v2080, %v2081
        %v2083 = vmax.f32 %v1815, %v1823
        %v2084 = vmax.f32 %v2083, %v1831
        %v2085 = vmax.f32 %v2084, %v1839
        %v2086 = vmax.f32 %v2085, %v1847
        %v2087 = vmax.f32 %v2086, %v1855
        %v2088 = vmax.f32 %v2087, %v1863
        %v2089 = vmax.f32 %v2088, %v1871
        %v2090 = vmax.f32 %v2089, %v1879
        %v2091 = vmax.f32 %v2090, %v1887
        %v2092 = vmax.f32 %v2091, %v1895
        %v2093 = vmax.f32 %v2092, %v1903
        %v2094 = vmax.f32 %v2093, %v1911
        %v2095 = vmax.f32 %v2094, %v1919
        %v2096 = vmax.f32 %v2095, %v1927
        %v2097 = vmax.f32 %v2096, %v1935
        %v2098 = vmax.f32 %v2097, %v1943
        %v2099 = vmax.f32 %v2098, %v1951
        %v2100 = vmax.f32 %v2099, %v1959
        %v2101 = vmax.f32 %v2100, %v1967
        %v2102 = vmax.f32 %v2101, %v1975
        %v2103 = vmax.f32 %v2102, %v1983
        %v2104 = vmax.f32 %v2103, %v1991
        %v2105 = vmax.f32 %v2104, %v1999
        %v2106 = vmax.f32 %v2105, %v2007
        %v2107 = vmax.f32 %v2106, %v2015
        %v2108 = vrot.slane %v2107, 4
        %v2109 = vmax.f32 %v2107, %v2108
        %v2110 = vrot.slane %v2109, 2
        %v2111 = vmax.f32 %v2109, %v2110
        %v2112 = vrot.slane %v2111, 1
        %v2113 = vmax.f32 %v2111, %v2112
        %v2114 = vmax.f32 %v1816, %v1824
        %v2115 = vmax.f32 %v2114, %v1832
        %v2116 = vmax.f32 %v2115, %v1840
        %v2117 = vmax.f32 %v2116, %v1848
        %v2118 = vmax.f32 %v2117, %v1856
        %v2119 = vmax.f32 %v2118, %v1864
        %v2120 = vmax.f32 %v2119, %v1872
        %v2121 = vmax.f32 %v2120, %v1880
        %v2122 = vmax.f32 %v2121, %v1888
        %v2123 = vmax.f32 %v2122, %v1896
        %v2124 = vmax.f32 %v2123, %v1904
        %v2125 = vmax.f32 %v2124, %v1912
        %v2126 = vmax.f32 %v2125, %v1920
        %v2127 = vmax.f32 %v2126, %v1928
        %v2128 = vmax.f32 %v2127, %v1936
        %v2129 = vmax.f32 %v2128, %v1944
        %v2130 = vmax.f32 %v2129, %v1952
        %v2131 = vmax.f32 %v2130, %v1960
        %v2132 = vmax.f32 %v2131, %v1968
        %v2133 = vmax.f32 %v2132, %v1976
        %v2134 = vmax.f32 %v2133, %v1984
        %v2135 = vmax.f32 %v2134, %v1992
        %v2136 = vmax.f32 %v2135, %v2000
        %v2137 = vmax.f32 %v2136, %v2008
        %v2138 = vmax.f32 %v2137, %v2016
        %v2139 = vrot.slane %v2138, 4
        %v2140 = vmax.f32 %v2138, %v2139
        %v2141 = vrot.slane %v2140, 2
        %v2142 = vmax.f32 %v2140, %v2141
        %v2143 = vrot.slane %v2142, 1
        %v2144 = vmax.f32 %v2142, %v2143
        %v2145 = vmax.f32 %v1817, %v1825
        %v2146 = vmax.f32 %v2145, %v1833
        %v2147 = vmax.f32 %v2146, %v1841
        %v2148 = vmax.f32 %v2147, %v1849
        %v2149 = vmax.f32 %v2148, %v1857
        %v2150 = vmax.f32 %v2149, %v1865
        %v2151 = vmax.f32 %v2150, %v1873
        %v2152 = vmax.f32 %v2151, %v1881
        %v2153 = vmax.f32 %v2152, %v1889
        %v2154 = vmax.f32 %v2153, %v1897
        %v2155 = vmax.f32 %v2154, %v1905
        %v2156 = vmax.f32 %v2155, %v1913
        %v2157 = vmax.f32 %v2156, %v1921
        %v2158 = vmax.f32 %v2157, %v1929
        %v2159 = vmax.f32 %v2158, %v1937
        %v2160 = vmax.f32 %v2159, %v1945
        %v2161 = vmax.f32 %v2160, %v1953
        %v2162 = vmax.f32 %v2161, %v1961
        %v2163 = vmax.f32 %v2162, %v1969
        %v2164 = vmax.f32 %v2163, %v1977
        %v2165 = vmax.f32 %v2164, %v1985
        %v2166 = vmax.f32 %v2165, %v1993
        %v2167 = vmax.f32 %v2166, %v2001
        %v2168 = vmax.f32 %v2167, %v2009
        %v2169 = vmax.f32 %v2168, %v2017
        %v2170 = vrot.slane %v2169, 4
        %v2171 = vmax.f32 %v2169, %v2170
        %v2172 = vrot.slane %v2171, 2
        %v2173 = vmax.f32 %v2171, %v2172
        %v2174 = vrot.slane %v2173, 1
        %v2175 = vmax.f32 %v2173, %v2174
        %v2176 = vmax.f32 %v1818, %v1826
        %v2177 = vmax.f32 %v2176, %v1834
        %v2178 = vmax.f32 %v2177, %v1842
        %v2179 = vmax.f32 %v2178, %v1850
        %v2180 = vmax.f32 %v2179, %v1858
        %v2181 = vmax.f32 %v2180, %v1866
        %v2182 = vmax.f32 %v2181, %v1874
        %v2183 = vmax.f32 %v2182, %v1882
        %v2184 = vmax.f32 %v2183, %v1890
        %v2185 = vmax.f32 %v2184, %v1898
        %v2186 = vmax.f32 %v2185, %v1906
        %v2187 = vmax.f32 %v2186, %v1914
        %v2188 = vmax.f32 %v2187, %v1922
        %v2189 = vmax.f32 %v2188, %v1930
        %v2190 = vmax.f32 %v2189, %v1938
        %v2191 = vmax.f32 %v2190, %v1946
        %v2192 = vmax.f32 %v2191, %v1954
        %v2193 = vmax.f32 %v2192, %v1962
        %v2194 = vmax.f32 %v2193, %v1970
        %v2195 = vmax.f32 %v2194, %v1978
        %v2196 = vmax.f32 %v2195, %v1986
        %v2197 = vmax.f32 %v2196, %v1994
        %v2198 = vmax.f32 %v2197, %v2002
        %v2199 = vmax.f32 %v2198, %v2010
        %v2200 = vmax.f32 %v2199, %v2018
        %v2201 = vrot.slane %v2200, 4
        %v2202 = vmax.f32 %v2200, %v2201
        %v2203 = vrot.slane %v2202, 2
        %v2204 = vmax.f32 %v2202, %v2203
        %v2205 = vrot.slane %v2204, 1
        %v2206 = vmax.f32 %v2204, %v2205
        %v2207 = vmax.f32 %v1819, %v1827
        %v2208 = vmax.f32 %v2207, %v1835
        %v2209 = vmax.f32 %v2208, %v1843
        %v2210 = vmax.f32 %v2209, %v1851
        %v2211 = vmax.f32 %v2210, %v1859
        %v2212 = vmax.f32 %v2211, %v1867
        %v2213 = vmax.f32 %v2212, %v1875
        %v2214 = vmax.f32 %v2213, %v1883
        %v2215 = vmax.f32 %v2214, %v1891
        %v2216 = vmax.f32 %v2215, %v1899
        %v2217 = vmax.f32 %v2216, %v1907
        %v2218 = vmax.f32 %v2217, %v1915
        %v2219 = vmax.f32 %v2218, %v1923
        %v2220 = vmax.f32 %v2219, %v1931
        %v2221 = vmax.f32 %v2220, %v1939
        %v2222 = vmax.f32 %v2221, %v1947
        %v2223 = vmax.f32 %v2222, %v1955
        %v2224 = vmax.f32 %v2223, %v1963
        %v2225 = vmax.f32 %v2224, %v1971
        %v2226 = vmax.f32 %v2225, %v1979
        %v2227 = vmax.f32 %v2226, %v1987
        %v2228 = vmax.f32 %v2227, %v1995
        %v2229 = vmax.f32 %v2228, %v2003
        %v2230 = vmax.f32 %v2229, %v2011
        %v2231 = vmax.f32 %v2230, %v2019
        %v2232 = vrot.slane %v2231, 4
        %v2233 = vmax.f32 %v2231, %v2232
        %v2234 = vrot.slane %v2233, 2
        %v2235 = vmax.f32 %v2233, %v2234
        %v2236 = vrot.slane %v2235, 1
        %v2237 = vmax.f32 %v2235, %v2236
        %v2238 = vmax.f32 %v1820, %v1828
        %v2239 = vmax.f32 %v2238, %v1836
        %v2240 = vmax.f32 %v2239, %v1844
        %v2241 = vmax.f32 %v2240, %v1852
        %v2242 = vmax.f32 %v2241, %v1860
        %v2243 = vmax.f32 %v2242, %v1868
        %v2244 = vmax.f32 %v2243, %v1876
        %v2245 = vmax.f32 %v2244, %v1884
        %v2246 = vmax.f32 %v2245, %v1892
        %v2247 = vmax.f32 %v2246, %v1900
        %v2248 = vmax.f32 %v2247, %v1908
        %v2249 = vmax.f32 %v2248, %v1916
        %v2250 = vmax.f32 %v2249, %v1924
        %v2251 = vmax.f32 %v2250, %v1932
        %v2252 = vmax.f32 %v2251, %v1940
        %v2253 = vmax.f32 %v2252, %v1948
        %v2254 = vmax.f32 %v2253, %v1956
        %v2255 = vmax.f32 %v2254, %v1964
        %v2256 = vmax.f32 %v2255, %v1972
        %v2257 = vmax.f32 %v2256, %v1980
        %v2258 = vmax.f32 %v2257, %v1988
        %v2259 = vmax.f32 %v2258, %v1996
        %v2260 = vmax.f32 %v2259, %v2004
        %v2261 = vmax.f32 %v2260, %v2012
        %v2262 = vmax.f32 %v2261, %v2020
        %v2263 = vrot.slane %v2262, 4
        %v2264 = vmax.f32 %v2262, %v2263
        %v2265 = vrot.slane %v2264, 2
        %v2266 = vmax.f32 %v2264, %v2265
        %v2267 = vrot.slane %v2266, 1
        %v2268 = vmax.f32 %v2266, %v2267
        %p2269 = scmp.eq.s32.totalorder %s27, 0
        // Predicated region
        $region61: #{pointnetfeat_forward.2} parent=47 // pred_check
          %p2270 = pneg %p2269
        $region62: #{pointnetfeat_forward.2} parent=47 // pred_check_branch
          %2272 = sbr.rel (%p2270) target = $region64
        $region63: #{pointnetfeat_forward.2} parent=47 // pred_region
          %v2281 = vrot.slane %v2082, 7
          %v2282 = vrot.slane %v2113, 6
          %v2283 = vrot.slane %v2144, 5
          %v2284 = vrot.slane %v2175, 4
          %v2285 = vrot.slane %v2206, 3
          %v2286 = vrot.slane %v2237, 2
          %v2287 = vrot.slane %v2268, 1
          %v2288 = vsel %vm510, %v2051, %v2281
          %vm2289 = vcmask 1042434
          %v2290 = vsel %vm2289, %v2282, %v2283
          %v2291 = vsel %vm511, %v2288, %v2290
          %vm2292 = vcmask 1044484
          %v2293 = vsel %vm2292, %v2284, %v2285
          %vm2294 = vcmask 1046534
          %v2295 = vsel %vm2294, %v2286, %v2287
          %vm2296 = vcmask 1045508
          %v2297 = vsel %vm2296, %v2293, %v2295
          %vm2298 = vcmask 1043456
          %v2299 = vsel %vm2298, %v2291, %v2297
          %2301 = vst [vmem:[%s372] sm:$0xff] %v2299
        $region64: #{pointnetfeat_forward.2} parent=47 // pred_fallthru
          _
        %p2302 = scmp.ne.s32.totalorder %s27, 0
        // Predicated region
        $region65: #{pointnetfeat_forward.2} parent=47 // pred_check
          %p2303 = pneg %p2302
        $region66: #{pointnetfeat_forward.2} parent=47 // pred_check_branch
          %2305 = sbr.rel (%p2303) target = $region68
        $region67: #{pointnetfeat_forward.2} parent=47 // pred_region
          %v2306 = vld [vmem:[%s372] sm:$0xff]
          %v2315 = vrot.slane %v2082, 7
          %v2316 = vrot.slane %v2113, 6
          %v2317 = vrot.slane %v2144, 5
          %v2318 = vrot.slane %v2175, 4
          %v2319 = vrot.slane %v2206, 3
          %v2320 = vrot.slane %v2237, 2
          %v2321 = vrot.slane %v2268, 1
          %v2322 = vsel %vm510, %v2051, %v2315
          %vm2323 = vcmask 1042434
          %v2324 = vsel %vm2323, %v2316, %v2317
          %v2325 = vsel %vm511, %v2322, %v2324
          %vm2326 = vcmask 1044484
          %v2327 = vsel %vm2326, %v2318, %v2319
          %vm2328 = vcmask 1046534
          %v2329 = vsel %vm2328, %v2320, %v2321
          %vm2330 = vcmask 1045508
          %v2331 = vsel %vm2330, %v2327, %v2329
          %vm2332 = vcmask 1043456
          %v2333 = vsel %vm2332, %v2325, %v2331
          %v2335 = vmax.f32 %v2306, %v2333
          %2336 = vst [vmem:[%s372] sm:$0xff] %v2335
        $region68: #{pointnetfeat_forward.2} parent=47 // pred_fallthru
          _
        %p2337 = scmp.lt.s32.totalorder %s25, 0
        %s2338 = scalar_select %p2337, %s25, 0
        %p2339 = scmp.lt.s32.totalorder %s26, 1
        %s2340 = scalar_select %p2339, %s26, 1
        %s2341 = smul.addr %s2340, 8
        %s2342 = smul.addr %s2338, 16
        %s2343 = sadd.s32 %s2341, %s2342
        %s2344 = scalar_lea.vmem %s7, %s2343
        // Predicated region
        $region69: #{pointnetfeat_forward.2} parent=47 // pred_check
          %p2345 = pneg %p215
        $region70: #{pointnetfeat_forward.2} parent=47 // pred_check_branch
          %2347 = sbr.rel (%p2345) target = $region72
        $region71: #{pointnetfeat_forward.2} parent=47 // pred_region
          _
        $region72: #{pointnetfeat_forward.2} parent=47 // pred_fallthru
          _
      $region48: #{pointnetfeat_forward.2} parent=5 // pred_fallthru
        _
      %p2348 = scmp.le.s32.totalorder 2, %s15
      // Predicated region
      $region73: #{pointnetfeat_forward.2} parent=5 // pred_check
        %p2349 = pneg %p2348
      $region74: #{pointnetfeat_forward.2} parent=5 // pred_check_branch
        %2351 = sbr.rel (%p2349) target = $region76
      $region75: #{pointnetfeat_forward.2} parent=5 // pred_region
        %s2352 = ssub.s32 %s15, 2
        // Predicated region
        $region77: #{pointnetfeat_forward.2} parent=75 // pred_check
          %p2353 = pneg %p221
        $region78: #{pointnetfeat_forward.2} parent=75 // pred_check_branch
          %2355 = sbr.rel (%p2353) target = $region80
        $region79: #{pointnetfeat_forward.2} parent=75 // pred_region
          %p2356 = scmp.lt.s32.totalorder %s28, 0
          %s2357 = scalar_select %p2356, %s28, 0
          %p2358 = scmp.lt.s32.totalorder %s29, 1
          %s2359 = scalar_select %p2358, %s29, 1
          %s2360 = smul.addr %s2359, 8
          %s2361 = smul.addr %s2357, 16
          %s2362 = sadd.s32 %s2360, %s2361
          %s2363 = scalar_lea.vmem %s7, %s2362
        $region80: #{pointnetfeat_forward.2} parent=75 // pred_fallthru
          _
      $region76: #{pointnetfeat_forward.2} parent=5 // pred_fallthru
        _
    $region6: #{pointnetfeat_forward.2} parent=1 // loop_footer
      %s19 = sadd.s32 1, %s15
    $region7: #{pointnetfeat_forward.2} parent=1 // loop_footer_branch
      %14 = sbr.rel target = $region3
    $region8: #{pointnetfeat_forward.2} parent=1 // loop_exit
      _
    %2364 = vsyncpa [#allocation3], 1
    %s2365 = scalar_lea.sflag [#allocation3], 1
    %2366 = vsyncpa %s2365, 1
    %2367 = vsyncpa [#allocation5], 1

</llo_original>
